<compile_context>
chip_gen: v5e
topology: v5e:2x2
jax: 0.10.0
libtpu: 0.0.40
codegen_flags: <defaults>
</compile_context>

<pallas_src>
import functools
import math

import jax
import jax.numpy as jnp
from jax.experimental import pallas as pl
from jax.experimental.pallas import tpu as pltpu

_VMEM_LIMIT = 32 * 1024 * 1024


def _cparams(*sem):
    return pltpu.CompilerParams(dimension_semantics=sem,
                                vmem_limit_bytes=_VMEM_LIMIT)


def _pick_tile(dim, target, quantum):
    """Largest tile that divides `dim`, is <= `target`, and is a multiple of
    `quantum`.  Falls back to the full dim (always a legal block shape)."""
    if dim <= target:
        return dim
    t = (target // quantum) * quantum
    while t >= quantum:
        if dim % t == 0:
            return t
        t -= quantum
    return dim


# ------------------------------ tiled linear ---------------------------------
def _linear_kernel(x_ref, w_ref, *rest, nk, has_bias, has_res, activation):
    # rest = ([bias], [residual], out, acc_scratch)
    b_ref = rest[0] if has_bias else None
    res_ref = rest[1 if has_bias else 0] if has_res else None
    o_ref = rest[-2]
    acc_ref = rest[-1]

    @pl.when(pl.program_id(2) == 0)
    def _():
        acc_ref[...] = jnp.zeros_like(acc_ref)

    acc_ref[...] += jnp.dot(x_ref[...], w_ref[...],
                            preferred_element_type=jnp.float32)

    @pl.when(pl.program_id(2) == nk - 1)
    def _():
        y = acc_ref[...]
        if has_bias:
            y = y + b_ref[...].astype(jnp.float32)
        if activation == "gelu":  # exact erf-GELU (nn.GELU default)
            y = 0.5 * y * (1.0 + jax.lax.erf(y * (1.0 / math.sqrt(2.0))))
        if has_res:
            y = y + res_ref[...].astype(jnp.float32)
        o_ref[...] = y.astype(o_ref.dtype)


def linear(x2d, w, b=None, residual=None, activation="none",
           out_dtype=jnp.float32):
    m, k = x2d.shape
    _, n = w.shape
    x2d = x2d.astype(jnp.bfloat16)      # bf16 operands, f32 accumulation
    w = w.astype(jnp.bfloat16)

    tm = _pick_tile(m, 256, 8)
    tn = _pick_tile(n, 256, 128)
    tk = _pick_tile(k, 512, 128)
    gm, gn, gk = m // tm, n // tn, k // tk

    in_specs = [pl.BlockSpec((tm, tk), lambda i, j, kk: (i, kk)),
                pl.BlockSpec((tk, tn), lambda i, j, kk: (kk, j))]
    args = [x2d, w]
    if b is not None:
        in_specs.append(pl.BlockSpec((1, tn), lambda i, j, kk: (0, j)))
        args.append(b.reshape(1, n).astype(jnp.float32))
    if residual is not None:
        in_specs.append(pl.BlockSpec((tm, tn), lambda i, j, kk: (i, j)))
        args.append(residual)

    kernel = functools.partial(_linear_kernel, nk=gk, has_bias=b is not None,
                               has_res=residual is not None,
                               activation=activation)
    return pl.pallas_call(
        kernel,
        out_shape=jax.ShapeDtypeStruct((m, n), out_dtype),
        grid=(gm, gn, gk),
        in_specs=in_specs,
        out_specs=pl.BlockSpec((tm, tn), lambda i, j, kk: (i, j)),
        scratch_shapes=[pltpu.VMEM((tm, tn), jnp.float32)],
        compiler_params=_cparams("parallel", "parallel", "arbitrary"),
    )(*args)


# ------------------------------ layernorm ------------------------------------
def _layernorm_kernel(x_ref, g_ref, b_ref, o_ref):
    x = x_ref[...].astype(jnp.float32)
    mu = jnp.mean(x, axis=-1, keepdims=True)
    var = jnp.mean(jnp.square(x - mu), axis=-1, keepdims=True)
    y = (x - mu) * jax.lax.rsqrt(var + 1e-5)
    o_ref[...] = (y * g_ref[...] + b_ref[...]).astype(o_ref.dtype)


def layernorm(x2d, g, b, out_dtype=jnp.bfloat16):
    m, d = x2d.shape
    tr = _pick_tile(m, 512, 8)
    return pl.pallas_call(
        _layernorm_kernel,
        out_shape=jax.ShapeDtypeStruct((m, d), out_dtype),
        grid=(m // tr,),
        in_specs=[pl.BlockSpec((tr, d), lambda i: (i, 0)),
                  pl.BlockSpec((1, d), lambda i: (0, 0)),
                  pl.BlockSpec((1, d), lambda i: (0, 0))],
        out_specs=pl.BlockSpec((tr, d), lambda i: (i, 0)),
        compiler_params=_cparams("parallel"),
    )(x2d, g.reshape(1, d), b.reshape(1, d))


# ------------------------------ attention ------------------------------------
def _attention_kernel(qkv_ref, o_ref, *, n_heads, dh, scale, causal):
    # qkv_ref: (1, S, 3*D) bf16 for one batch element; heads sliced in-VMEM.
    seq = qkv_ref.shape[1]
    d = n_heads * dh
    if causal:
        qi = jax.lax.broadcasted_iota(jnp.int32, (seq, seq), 0)
        ki = jax.lax.broadcasted_iota(jnp.int32, (seq, seq), 1)
        keep = qi >= ki
    # TODO(synk): add q/kv tiling (flash-style online softmax) if seq length
    # ever grows beyond CLIP's <=257 tokens; full S x S per head fits VMEM here.
    for h in range(n_heads):
        q = qkv_ref[0, :, h * dh:(h + 1) * dh]
        k = qkv_ref[0, :, d + h * dh: d + (h + 1) * dh]
        v = qkv_ref[0, :, 2 * d + h * dh: 2 * d + (h + 1) * dh]
        s_mat = jax.lax.dot_general(
            q, k, (((1,), (1,)), ((), ())),
            preferred_element_type=jnp.float32) * scale
        if causal:
            s_mat = jnp.where(keep, s_mat, -1e30)
        mx = jnp.max(s_mat, axis=-1, keepdims=True)
        p = jnp.exp(s_mat - mx)
        denom = jnp.sum(p, axis=-1, keepdims=True)
        p = p * pl.reciprocal(denom, approx=True)
        o = jnp.dot(p.astype(q.dtype), v, preferred_element_type=jnp.float32)
        o_ref[0, :, h * dh:(h + 1) * dh] = o.astype(o_ref.dtype)


def attention(qkv, n_heads, causal):
    b, s, d3 = qkv.shape
    d = d3 // 3
    dh = d // n_heads
    kernel = functools.partial(_attention_kernel, n_heads=n_heads, dh=dh,
                               scale=1.0 / math.sqrt(dh), causal=causal)
    return pl.pallas_call(
        kernel,
        out_shape=jax.ShapeDtypeStruct((b, s, d), jnp.bfloat16),
        grid=(b,),
        in_specs=[pl.BlockSpec((1, s, d3), lambda i: (i, 0, 0))],
        out_specs=pl.BlockSpec((1, s, d), lambda i: (i, 0, 0)),
        compiler_params=_cparams("parallel"),
    )(qkv)


# ------------------------------ l2 normalize ---------------------------------
def _l2norm_kernel(x_ref, o_ref):
    x = x_ref[...].astype(jnp.float32)
    ss = jnp.sum(x * x, axis=-1, keepdims=True)
    denom = jnp.maximum(jnp.sqrt(ss), 1e-12)   # matches F.normalize eps clamp
    o_ref[...] = x * pl.reciprocal(denom, approx=True)


def l2_normalize(x2d):
    m, d = x2d.shape
    tr = _pick_tile(m, 256, 8)
    return pl.pallas_call(
        _l2norm_kernel,
        out_shape=jax.ShapeDtypeStruct((m, d), jnp.float32),
        grid=(m // tr,),
        in_specs=[pl.BlockSpec((tr, d), lambda i: (i, 0))],
        out_specs=pl.BlockSpec((tr, d), lambda i: (i, 0)),
        compiler_params=_cparams("parallel"),
    )(x2d.astype(jnp.float32))


# --------------------------- transformer block --------------------------------
def residual_block(x, p, n_heads, causal=False):
    # pre-LN residual attention block (no LayerScale: ls_init_value=None).
    # Residual stream stays f32; residual adds are fused into the projection
    # matmul epilogues; LN outputs / QKV / MLP-hidden travel in bf16.
    b, s, d = x.shape
    x2d = x.reshape(b * s, d)

    h = layernorm(x2d, p["ln1_g"], p["ln1_b"], out_dtype=jnp.bfloat16)
    qkv = linear(h, p["attn"]["in_w"], p["attn"]["in_b"],
                 out_dtype=jnp.bfloat16)
    attn = attention(qkv.reshape(b, s, 3 * d), n_heads, causal)
    x2d = linear(attn.reshape(b * s, d), p["attn"]["out_w"],
                 p["attn"]["out_b"], residual=x2d, out_dtype=jnp.float32)

    h = layernorm(x2d, p["ln2_g"], p["ln2_b"], out_dtype=jnp.bfloat16)
    h = linear(h, p["fc_w"], p["fc_b"], activation="gelu",
               out_dtype=jnp.bfloat16)
    x2d = linear(h, p["proj_w"], p["proj_b"], residual=x2d,
                 out_dtype=jnp.float32)
    return x2d.reshape(b, s, d)


# -------------------------------- CLIP towers ---------------------------------
def encode_image(image, vp, cfg):
    # VisionTransformer: conv patch-embed -> [CLS] + pos -> ln_pre -> blocks ->
    # ln_post -> tok pool -> proj -> L2 normalize
    b = image.shape[0]
    ps = cfg["patch_size"]
    gh, gw = image.shape[2] // ps, image.shape[3] // ps
    w = cfg["vision_width"]

    # Conv2d(3, width, kernel=ps, stride=ps, bias=False) as patch matmul (im2col).
    patches = (
        image.reshape(b, 3, gh, ps, gw, ps)
        .transpose(0, 2, 4, 1, 3, 5)            # (B, gh, gw, C, kh, kw)
        .reshape(b * gh * gw, 3 * ps * ps)
    )
    x = linear(patches, vp["conv_w"], out_dtype=jnp.bfloat16)
    x = x.reshape(b, gh * gw, w).astype(jnp.float32)

    cls = jnp.broadcast_to(vp["class_embedding"].reshape(1, 1, w), (b, 1, w))
    x = jnp.concatenate([cls, x], axis=1)
    x = x + vp["pos_embed"][None]
    s = x.shape[1]

    x = layernorm(x.reshape(b * s, w), vp["ln_pre_g"], vp["ln_pre_b"],
                  out_dtype=jnp.float32).reshape(b, s, w)
    for blk in vp["blocks"]:
        x = residual_block(x, blk, cfg["vision_heads"], causal=False)
    x = layernorm(x.reshape(b * s, w), vp["ln_post_g"], vp["ln_post_b"],
                  out_dtype=jnp.float32).reshape(b, s, w)

    pooled = x[:, 0]                              # pool_type='tok'
    pooled = linear(pooled, vp["proj"], out_dtype=jnp.float32)
    return l2_normalize(pooled)


def encode_text(text, tp, cfg):
    # TextTransformer: token_embed + pos -> causal blocks -> ln_final ->
    # argmax-token pool -> @ text_projection -> L2 normalize
    b, s = text.shape
    w = cfg["text_width"]

    # TODO(synk): token-embedding gather is a data-dependent lookup; kept in plain JAX.
    x = jnp.take(tp["token_embedding"], text, axis=0)
    x = x + tp["pos_embed"][None]

    for blk in tp["blocks"]:
        x = residual_block(x, blk, cfg["text_heads"], causal=True)
    x = layernorm(x.reshape(b * s, w), tp["ln_final_g"], tp["ln_final_b"],
                  out_dtype=jnp.float32).reshape(b, s, w)

    eot = jnp.argmax(text, axis=-1)               # pool_type='argmax'
    pooled = x[jnp.arange(b), eot]
    pooled = linear(pooled, tp["text_projection"], out_dtype=jnp.float32)
    return l2_normalize(pooled)


def clip_forward(params, image, text, cfg):
    image_features = encode_image(image, params["visual"], cfg)
    text_features = encode_text(text, params["text"], cfg)
    logit_scale_exp = jnp.exp(params["logit_scale"])
    return image_features, text_features, logit_scale_exp


# ----------------------------- parameter init ---------------------------------
def _init_block(keys, width, mlp_ratio):
    hidden = int(width * mlp_ratio)
    k = iter(keys)
    s = 0.02
    wdt = jnp.bfloat16   # matmul weights stored bf16 (f32 accumulation in-kernel)
    return {
        "ln1_g": jnp.ones((width,), jnp.float32),
        "ln1_b": jnp.zeros((width,), jnp.float32),
        "attn": {
            "in_w": (jax.random.normal(next(k), (width, 3 * width), jnp.float32) * s).astype(wdt),
            "in_b": jnp.zeros((3 * width,), jnp.float32),
            "out_w": (jax.random.normal(next(k), (width, width), jnp.float32) * s).astype(wdt),
            "out_b": jnp.zeros((width,), jnp.float32),
        },
        "ln2_g": jnp.ones((width,), jnp.float32),
        "ln2_b": jnp.zeros((width,), jnp.float32),
        "fc_w": (jax.random.normal(next(k), (width, hidden), jnp.float32) * s).astype(wdt),
        "fc_b": jnp.zeros((hidden,), jnp.float32),
        "proj_w": (jax.random.normal(next(k), (hidden, width), jnp.float32) * s).astype(wdt),
        "proj_b": jnp.zeros((width,), jnp.float32),
    }


def init_params(key, cfg):
    ps, vw, tw = cfg["patch_size"], cfg["vision_width"], cfg["text_width"]
    ed, ctx, vs = cfg["embed_dim"], cfg["context_length"], cfg["vocab_size"]
    gh = cfg["image_size"] // ps
    n_tok = gh * gh + 1
    keys = jax.random.split(key, 64)
    k = iter(keys)
    s = 0.02
    wdt = jnp.bfloat16

    visual = {
        "conv_w": (jax.random.normal(next(k), (3 * ps * ps, vw), jnp.float32) * s).astype(wdt),
        "class_embedding": jax.random.normal(next(k), (vw,), jnp.float32) * s,
        "pos_embed": jax.random.normal(next(k), (n_tok, vw), jnp.float32) * s,
        "ln_pre_g": jnp.ones((vw,), jnp.float32),
        "ln_pre_b": jnp.zeros((vw,), jnp.float32),
        "blocks": [
            _init_block(jax.random.split(next(k), 4), vw, cfg["mlp_ratio"])
            for _ in range(cfg["vision_layers"])
        ],
        "ln_post_g": jnp.ones((vw,), jnp.float32),
        "ln_post_b": jnp.zeros((vw,), jnp.float32),
        "proj": (jax.random.normal(next(k), (vw, ed), jnp.float32) * (vw ** -0.5)).astype(wdt),
    }

    textp = {
        "token_embedding": jax.random.normal(next(k), (vs, tw), jnp.float32) * s,
        "pos_embed": jax.random.normal(next(k), (ctx, tw), jnp.float32) * 0.01,
        "blocks": [
            _init_block(jax.random.split(next(k), 4), tw, cfg["mlp_ratio"])
            for _ in range(cfg["text_layers"])
        ],
        "ln_final_g": jnp.ones((tw,), jnp.float32),
        "ln_final_b": jnp.zeros((tw,), jnp.float32),
        "text_projection": (jax.random.normal(next(k), (tw, ed), jnp.float32) * (tw ** -0.5)).astype(wdt),
        # causal mask is generated in-kernel (broadcasted_iota); no dense buffer.
    }

    return {
        "visual": visual,
        "text": textp,
        "logit_scale": jnp.asarray(math.log(1.0 / 0.07), jnp.float32),
    }


# ----------------------------------- main --------------------------------------
if __name__ == "__main__":
    cfg = {
        "embed_dim": 32,
        "image_size": 16,
        "patch_size": 8,
        "vision_width": 32,
        "vision_heads": 2,
        "vision_layers": 2,
        "text_width": 32,
        "text_heads": 2,
        "text_layers": 2,
        "mlp_ratio": 4.0,
        "context_length": 8,
        "vocab_size": 64,
    }

    root = jax.random.PRNGKey(0)
    k_param, k_img, k_txt = jax.random.split(root, 3)
    params = init_params(k_param, cfg)

    image = jax.random.normal(k_img, (2, 3, 16, 16), jnp.float32)   # NCHW
    text = jax.random.randint(k_txt, (2, 8), 1, cfg["vocab_size"], dtype=jnp.int32)

    fwd = jax.jit(functools.partial(clip_forward, cfg=cfg))
    img_feat, txt_feat, logit_scale_exp = fwd(params, image, text)
    jax.block_until_ready((img_feat, txt_feat, logit_scale_exp))

    assert img_feat.shape == (2, cfg["embed_dim"])
    assert txt_feat.shape == (2, cfg["embed_dim"])
    assert jnp.all(jnp.isfinite(img_feat)) and jnp.all(jnp.isfinite(txt_feat))
    print("KERNEL_OK")
</pallas_src>

<mosaic_0001>
module attributes {stable_mosaic.version = 11 : i64} {
  func.func @_layernorm_kernel(%arg0: i32, %arg1: memref<10x32xf32, #tpu.memory_space<vmem>>, %arg2: memref<1x32xf32, #tpu.memory_space<vmem>>, %arg3: memref<1x32xf32, #tpu.memory_space<vmem>>, %arg4: memref<10x32xf32, #tpu.memory_space<vmem>>) attributes {dimension_semantics = [#tpu.dimension_semantics<parallel>], iteration_bounds = array<i64: 1>, scalar_prefetch = 0 : i64, scratch_operands = 0 : i64, tpu.core_type = #tpu.core_type<tc>, window_params = [{transform_indices = @transform_0, window_bounds = array<i64: 10, 32>}, {pipeline_mode = #tpu.pipeline_mode<synchronous>, transform_indices = @transform_1, window_bounds = array<i64: 1, 32>}, {pipeline_mode = #tpu.pipeline_mode<synchronous>, transform_indices = @transform_2, window_bounds = array<i64: 1, 32>}, {transform_indices = @transform_3, window_bounds = array<i64: 10, 32>}]} {
    %c0 = arith.constant 0 : index
    %c0_0 = arith.constant 0 : index
    %0 = vector.load %arg1[%c0, %c0_0] : memref<10x32xf32, #tpu.memory_space<vmem>>, vector<10x32xf32>
    %cst = arith.constant dense<0.000000e+00> : vector<10xf32>
    %1 = vector.multi_reduction <add>, %0, %cst [1] : vector<10x32xf32> to vector<10xf32>
    %2 = vector.shape_cast %1 : vector<10xf32> to vector<10x1xf32>
    %cst_1 = arith.constant 3.200000e+01 : f32
    %3 = vector.broadcast %cst_1 : f32 to vector<10x1xf32>
    %4 = arith.divf %2, %3 : vector<10x1xf32>
    %5 = vector.broadcast %4 : vector<10x1xf32> to vector<10x32xf32>
    %6 = arith.subf %0, %5 : vector<10x32xf32>
    %7 = arith.mulf %6, %6 : vector<10x32xf32>
    %cst_2 = arith.constant dense<0.000000e+00> : vector<10xf32>
    %8 = vector.multi_reduction <add>, %7, %cst_2 [1] : vector<10x32xf32> to vector<10xf32>
    %9 = vector.shape_cast %8 : vector<10xf32> to vector<10x1xf32>
    %cst_3 = arith.constant 3.200000e+01 : f32
    %10 = vector.broadcast %cst_3 : f32 to vector<10x1xf32>
    %11 = arith.divf %9, %10 : vector<10x1xf32>
    %12 = vector.broadcast %4 : vector<10x1xf32> to vector<10x32xf32>
    %13 = arith.subf %0, %12 : vector<10x32xf32>
    %cst_4 = arith.constant 9.99999974E-6 : f32
    %14 = vector.broadcast %cst_4 : f32 to vector<10x1xf32>
    %15 = arith.addf %11, %14 : vector<10x1xf32>
    %16 = math.rsqrt %15 : vector<10x1xf32>
    %17 = vector.broadcast %16 : vector<10x1xf32> to vector<10x32xf32>
    %18 = arith.mulf %13, %17 : vector<10x32xf32>
    %c0_5 = arith.constant 0 : index
    %c0_6 = arith.constant 0 : index
    %19 = vector.load %arg2[%c0_5, %c0_6] : memref<1x32xf32, #tpu.memory_space<vmem>>, vector<1x32xf32>
    %20 = vector.broadcast %19 : vector<1x32xf32> to vector<10x32xf32>
    %21 = arith.mulf %18, %20 : vector<10x32xf32>
    %c0_7 = arith.constant 0 : index
    %c0_8 = arith.constant 0 : index
    %22 = vector.load %arg3[%c0_7, %c0_8] : memref<1x32xf32, #tpu.memory_space<vmem>>, vector<1x32xf32>
    %23 = vector.broadcast %22 : vector<1x32xf32> to vector<10x32xf32>
    %24 = arith.addf %21, %23 : vector<10x32xf32>
    %c0_9 = arith.constant 0 : index
    %c0_10 = arith.constant 0 : index
    %25 = vector.load %arg4[%c0_9, %c0_10] : memref<10x32xf32, #tpu.memory_space<vmem>>, vector<10x32xf32>
    tpu.vector_store %arg4[%c0_9, %c0_10], %24 {strides = array<i32>} : memref<10x32xf32, #tpu.memory_space<vmem>>, vector<10x32xf32>,
    return
  }
  func.func @transform_0(%arg0: i32) -> (i32, i32) {
    %c0_i32 = arith.constant 0 : i32
    %c0_i32_0 = arith.constant 0 : i32
    return %arg0, %c0_i32 : i32, i32
  }
  func.func @transform_1(%arg0: i32) -> (i32, i32) {
    %c0_i32 = arith.constant 0 : i32
    %c0_i32_0 = arith.constant 0 : i32
    %c0_i32_1 = arith.constant 0 : i32
    return %c0_i32, %c0_i32_0 : i32, i32
  }
  func.func @transform_2(%arg0: i32) -> (i32, i32) {
    %c0_i32 = arith.constant 0 : i32
    %c0_i32_0 = arith.constant 0 : i32
    %c0_i32_1 = arith.constant 0 : i32
    return %c0_i32, %c0_i32_0 : i32, i32
  }
  func.func @transform_3(%arg0: i32) -> (i32, i32) {
    %c0_i32 = arith.constant 0 : i32
    %c0_i32_0 = arith.constant 0 : i32
    return %arg0, %c0_i32 : i32, i32
  }
}

module attributes {stable_mosaic.version = 11 : i64} {
  func.func @_layernorm_kernel(%arg0: i32, %arg1: memref<10x32xf32, #tpu.memory_space<vmem>>, %arg2: memref<1x32xf32, #tpu.memory_space<vmem>>, %arg3: memref<1x32xf32, #tpu.memory_space<vmem>>, %arg4: memref<10x32xbf16, #tpu.memory_space<vmem>>) attributes {dimension_semantics = [#tpu.dimension_semantics<parallel>], iteration_bounds = array<i64: 1>, scalar_prefetch = 0 : i64, scratch_operands = 0 : i64, tpu.core_type = #tpu.core_type<tc>, window_params = [{transform_indices = @transform_0, window_bounds = array<i64: 10, 32>}, {pipeline_mode = #tpu.pipeline_mode<synchronous>, transform_indices = @transform_1, window_bounds = array<i64: 1, 32>}, {pipeline_mode = #tpu.pipeline_mode<synchronous>, transform_indices = @transform_2, window_bounds = array<i64: 1, 32>}, {transform_indices = @transform_3, window_bounds = array<i64: 10, 32>}]} {
    %c0 = arith.constant 0 : index
    %c0_0 = arith.constant 0 : index
    %0 = vector.load %arg1[%c0, %c0_0] : memref<10x32xf32, #tpu.memory_space<vmem>>, vector<10x32xf32>
    %cst = arith.constant dense<0.000000e+00> : vector<10xf32>
    %1 = vector.multi_reduction <add>, %0, %cst [1] : vector<10x32xf32> to vector<10xf32>
    %2 = vector.shape_cast %1 : vector<10xf32> to vector<10x1xf32>
    %cst_1 = arith.constant 3.200000e+01 : f32
    %3 = vector.broadcast %cst_1 : f32 to vector<10x1xf32>
    %4 = arith.divf %2, %3 : vector<10x1xf32>
    %5 = vector.broadcast %4 : vector<10x1xf32> to vector<10x32xf32>
    %6 = arith.subf %0, %5 : vector<10x32xf32>
    %7 = arith.mulf %6, %6 : vector<10x32xf32>
    %cst_2 = arith.constant dense<0.000000e+00> : vector<10xf32>
    %8 = vector.multi_reduction <add>, %7, %cst_2 [1] : vector<10x32xf32> to vector<10xf32>
    %9 = vector.shape_cast %8 : vector<10xf32> to vector<10x1xf32>
    %cst_3 = arith.constant 3.200000e+01 : f32
    %10 = vector.broadcast %cst_3 : f32 to vector<10x1xf32>
    %11 = arith.divf %9, %10 : vector<10x1xf32>
    %12 = vector.broadcast %4 : vector<10x1xf32> to vector<10x32xf32>
    %13 = arith.subf %0, %12 : vector<10x32xf32>
    %cst_4 = arith.constant 9.99999974E-6 : f32
    %14 = vector.broadcast %cst_4 : f32 to vector<10x1xf32>
    %15 = arith.addf %11, %14 : vector<10x1xf32>
    %16 = math.rsqrt %15 : vector<10x1xf32>
    %17 = vector.broadcast %16 : vector<10x1xf32> to vector<10x32xf32>
    %18 = arith.mulf %13, %17 : vector<10x32xf32>
    %c0_5 = arith.constant 0 : index
    %c0_6 = arith.constant 0 : index
    %19 = vector.load %arg2[%c0_5, %c0_6] : memref<1x32xf32, #tpu.memory_space<vmem>>, vector<1x32xf32>
    %20 = vector.broadcast %19 : vector<1x32xf32> to vector<10x32xf32>
    %21 = arith.mulf %18, %20 : vector<10x32xf32>
    %c0_7 = arith.constant 0 : index
    %c0_8 = arith.constant 0 : index
    %22 = vector.load %arg3[%c0_7, %c0_8] : memref<1x32xf32, #tpu.memory_space<vmem>>, vector<1x32xf32>
    %23 = vector.broadcast %22 : vector<1x32xf32> to vector<10x32xf32>
    %24 = arith.addf %21, %23 : vector<10x32xf32>
    %25 = arith.truncf %24 : vector<10x32xf32> to vector<10x32xbf16>
    %c0_9 = arith.constant 0 : index
    %c0_10 = arith.constant 0 : index
    %26 = vector.load %arg4[%c0_9, %c0_10] : memref<10x32xbf16, #tpu.memory_space<vmem>>, vector<10x32xbf16>
    tpu.vector_store %arg4[%c0_9, %c0_10], %25 {strides = array<i32>} : memref<10x32xbf16, #tpu.memory_space<vmem>>, vector<10x32xbf16>,
    return
  }
  func.func @transform_0(%arg0: i32) -> (i32, i32) {
    %c0_i32 = arith.constant 0 : i32
    %c0_i32_0 = arith.constant 0 : i32
    return %arg0, %c0_i32 : i32, i32
  }
  func.func @transform_1(%arg0: i32) -> (i32, i32) {
    %c0_i32 = arith.constant 0 : i32
    %c0_i32_0 = arith.constant 0 : i32
    %c0_i32_1 = arith.constant 0 : i32
    return %c0_i32, %c0_i32_0 : i32, i32
  }
  func.func @transform_2(%arg0: i32) -> (i32, i32) {
    %c0_i32 = arith.constant 0 : i32
    %c0_i32_0 = arith.constant 0 : i32
    %c0_i32_1 = arith.constant 0 : i32
    return %c0_i32, %c0_i32_0 : i32, i32
  }
  func.func @transform_3(%arg0: i32) -> (i32, i32) {
    %c0_i32 = arith.constant 0 : i32
    %c0_i32_0 = arith.constant 0 : i32
    return %arg0, %c0_i32 : i32, i32
  }
}

module attributes {stable_mosaic.version = 11 : i64} {
  func.func @_linear_kernel(%arg0: i32, %arg1: i32, %arg2: i32, %arg3: memref<10x32xbf16, #tpu.memory_space<vmem>>, %arg4: memref<32x96xbf16, #tpu.memory_space<vmem>>, %arg5: memref<1x96xf32, #tpu.memory_space<vmem>>, %arg6: memref<10x96xbf16, #tpu.memory_space<vmem>>, %arg7: memref<10x96xf32, #tpu.memory_space<vmem>>) attributes {dimension_semantics = [#tpu.dimension_semantics<parallel>, #tpu.dimension_semantics<parallel>, #tpu.dimension_semantics<arbitrary>], iteration_bounds = array<i64: 1, 1, 1>, scalar_prefetch = 0 : i64, scratch_operands = 1 : i64, tpu.core_type = #tpu.core_type<tc>, window_params = [{transform_indices = @transform_0, window_bounds = array<i64: 10, 32>}, {transform_indices = @transform_1, window_bounds = array<i64: 32, 96>}, {transform_indices = @transform_2, window_bounds = array<i64: 1, 96>}, {transform_indices = @transform_3, window_bounds = array<i64: 10, 96>}]} {
    %c0_i32 = arith.constant 0 : i32
    %0 = arith.cmpi eq, %arg2, %c0_i32 : i32
    %1 = arith.extui %0 : i1 to i32
    %c0_i32_0 = arith.constant 0 : i32
    %2 = arith.cmpi ne, %1, %c0_i32_0 : i32
    scf.if %2 {
      %cst_10 = arith.constant 0.000000e+00 : f32
      %12 = vector.broadcast %cst_10 : f32 to vector<10x96xf32>
      %c0_11 = arith.constant 0 : index
      %c0_12 = arith.constant 0 : index
      %13 = vector.load %arg7[%c0_11, %c0_12] : memref<10x96xf32, #tpu.memory_space<vmem>>, vector<10x96xf32>
      tpu.vector_store %arg7[%c0_11, %c0_12], %12 {strides = array<i32>} : memref<10x96xf32, #tpu.memory_space<vmem>>, vector<10x96xf32>,
    } else {
    }
    %c0 = arith.constant 0 : index
    %c0_1 = arith.constant 0 : index
    %3 = vector.load %arg7[%c0, %c0_1] : memref<10x96xf32, #tpu.memory_space<vmem>>, vector<10x96xf32>
    %c0_2 = arith.constant 0 : index
    %c0_3 = arith.constant 0 : index
    %4 = vector.load %arg3[%c0_2, %c0_3] : memref<10x32xbf16, #tpu.memory_space<vmem>>, vector<10x32xbf16>
    %c0_4 = arith.constant 0 : index
    %c0_5 = arith.constant 0 : index
    %5 = vector.load %arg4[%c0_4, %c0_5] : memref<32x96xbf16, #tpu.memory_space<vmem>>, vector<32x96xbf16>
    %cst = arith.constant dense<0.000000e+00> : vector<10x96xf32>
    %6 = tpu.matmul %4, %5, %cst {dimension_numbers = #tpu.dot_dimension_numbers<[1], [0], [0], [1], [0, 0, 1, 1], [], []>} : vector<10x32xbf16>, vector<32x96xbf16>, vector<10x96xf32> -> vector<10x96xf32>
    %7 = arith.addf %3, %6 : vector<10x96xf32>
    %c0_6 = arith.constant 0 : index
    %c0_7 = arith.constant 0 : index
    %8 = vector.load %arg7[%c0_6, %c0_7] : memref<10x96xf32, #tpu.memory_space<vmem>>, vector<10x96xf32>
    tpu.vector_store %arg7[%c0_6, %c0_7], %7 {strides = array<i32>} : memref<10x96xf32, #tpu.memory_space<vmem>>, vector<10x96xf32>,
    %c0_i32_8 = arith.constant 0 : i32
    %9 = arith.cmpi eq, %arg2, %c0_i32_8 : i32
    %10 = arith.extui %9 : i1 to i32
    %c0_i32_9 = arith.constant 0 : i32
    %11 = arith.cmpi ne, %10, %c0_i32_9 : i32
    scf.if %11 {
      %c0_10 = arith.constant 0 : index
      %c0_11 = arith.constant 0 : index
      %12 = vector.load %arg7[%c0_10, %c0_11] : memref<10x96xf32, #tpu.memory_space<vmem>>, vector<10x96xf32>
      %c0_12 = arith.constant 0 : index
      %c0_13 = arith.constant 0 : index
      %13 = vector.load %arg5[%c0_12, %c0_13] : memref<1x96xf32, #tpu.memory_space<vmem>>, vector<1x96xf32>
      %14 = vector.broadcast %13 : vector<1x96xf32> to vector<10x96xf32>
      %15 = arith.addf %12, %14 : vector<10x96xf32>
      %16 = arith.truncf %15 : vector<10x96xf32> to vector<10x96xbf16>
      %c0_14 = arith.constant 0 : index
      %c0_15 = arith.constant 0 : index
      %17 = vector.load %arg6[%c0_14, %c0_15] : memref<10x96xbf16, #tpu.memory_space<vmem>>, vector<10x96xbf16>
      tpu.vector_store %arg6[%c0_14, %c0_15], %16 {strides = array<i32>} : memref<10x96xbf16, #tpu.memory_space<vmem>>, vector<10x96xbf16>,
    } else {
    }
    return
  }
  func.func @transform_0(%arg0: i32, %arg1: i32, %arg2: i32) -> (i32, i32) {
    %c0_i32 = arith.constant 0 : i32
    return %arg0, %arg2 : i32, i32
  }
  func.func @transform_1(%arg0: i32, %arg1: i32, %arg2: i32) -> (i32, i32) {
    %c0_i32 = arith.constant 0 : i32
    return %arg2, %arg1 : i32, i32
  }
  func.func @transform_2(%arg0: i32, %arg1: i32, %arg2: i32) -> (i32, i32) {
    %c0_i32 = arith.constant 0 : i32
    %c0_i32_0 = arith.constant 0 : i32
    return %c0_i32, %arg1 : i32, i32
  }
  func.func @transform_3(%arg0: i32, %arg1: i32, %arg2: i32) -> (i32, i32) {
    %c0_i32 = arith.constant 0 : i32
    return %arg0, %arg1 : i32, i32
  }
}

module attributes {stable_mosaic.version = 11 : i64} {
  func.func @_linear_kernel(%arg0: i32, %arg1: i32, %arg2: i32, %arg3: memref<8x192xbf16, #tpu.memory_space<vmem>>, %arg4: memref<192x32xbf16, #tpu.memory_space<vmem>>, %arg5: memref<8x32xbf16, #tpu.memory_space<vmem>>, %arg6: memref<8x32xf32, #tpu.memory_space<vmem>>) attributes {dimension_semantics = [#tpu.dimension_semantics<parallel>, #tpu.dimension_semantics<parallel>, #tpu.dimension_semantics<arbitrary>], iteration_bounds = array<i64: 1, 1, 1>, scalar_prefetch = 0 : i64, scratch_operands = 1 : i64, tpu.core_type = #tpu.core_type<tc>, window_params = [{transform_indices = @transform_0, window_bounds = array<i64: 8, 192>}, {transform_indices = @transform_1, window_bounds = array<i64: 192, 32>}, {transform_indices = @transform_2, window_bounds = array<i64: 8, 32>}]} {
    %c0_i32 = arith.constant 0 : i32
    %0 = arith.cmpi eq, %arg2, %c0_i32 : i32
    %1 = arith.extui %0 : i1 to i32
    %c0_i32_0 = arith.constant 0 : i32
    %2 = arith.cmpi ne, %1, %c0_i32_0 : i32
    scf.if %2 {
      %cst_10 = arith.constant 0.000000e+00 : f32
      %12 = vector.broadcast %cst_10 : f32 to vector<8x32xf32>
      %c0_11 = arith.constant 0 : index
      %c0_12 = arith.constant 0 : index
      %13 = vector.load %arg6[%c0_11, %c0_12] : memref<8x32xf32, #tpu.memory_space<vmem>>, vector<8x32xf32>
      tpu.vector_store %arg6[%c0_11, %c0_12], %12 {strides = array<i32>} : memref<8x32xf32, #tpu.memory_space<vmem>>, vector<8x32xf32>,
    } else {
    }
    %c0 = arith.constant 0 : index
    %c0_1 = arith.constant 0 : index
    %3 = vector.load %arg6[%c0, %c0_1] : memref<8x32xf32, #tpu.memory_space<vmem>>, vector<8x32xf32>
    %c0_2 = arith.constant 0 : index
    %c0_3 = arith.constant 0 : index
    %4 = vector.load %arg3[%c0_2, %c0_3] : memref<8x192xbf16, #tpu.memory_space<vmem>>, vector<8x192xbf16>
    %c0_4 = arith.constant 0 : index
    %c0_5 = arith.constant 0 : index
    %5 = vector.load %arg4[%c0_4, %c0_5] : memref<192x32xbf16, #tpu.memory_space<vmem>>, vector<192x32xbf16>
    %cst = arith.constant dense<0.000000e+00> : vector<8x32xf32>
    %6 = tpu.matmul %4, %5, %cst {dimension_numbers = #tpu.dot_dimension_numbers<[1], [0], [0], [1], [0, 0, 1, 1], [], []>} : vector<8x192xbf16>, vector<192x32xbf16>, vector<8x32xf32> -> vector<8x32xf32>
    %7 = arith.addf %3, %6 : vector<8x32xf32>
    %c0_6 = arith.constant 0 : index
    %c0_7 = arith.constant 0 : index
    %8 = vector.load %arg6[%c0_6, %c0_7] : memref<8x32xf32, #tpu.memory_space<vmem>>, vector<8x32xf32>
    tpu.vector_store %arg6[%c0_6, %c0_7], %7 {strides = array<i32>} : memref<8x32xf32, #tpu.memory_space<vmem>>, vector<8x32xf32>,
    %c0_i32_8 = arith.constant 0 : i32
    %9 = arith.cmpi eq, %arg2, %c0_i32_8 : i32
    %10 = arith.extui %9 : i1 to i32
    %c0_i32_9 = arith.constant 0 : i32
    %11 = arith.cmpi ne, %10, %c0_i32_9 : i32
    scf.if %11 {
      %c0_10 = arith.constant 0 : index
      %c0_11 = arith.constant 0 : index
      %12 = vector.load %arg6[%c0_10, %c0_11] : memref<8x32xf32, #tpu.memory_space<vmem>>, vector<8x32xf32>
      %13 = arith.truncf %12 : vector<8x32xf32> to vector<8x32xbf16>
      %c0_12 = arith.constant 0 : index
      %c0_13 = arith.constant 0 : index
      %14 = vector.load %arg5[%c0_12, %c0_13] : memref<8x32xbf16, #tpu.memory_space<vmem>>, vector<8x32xbf16>
      tpu.vector_store %arg5[%c0_12, %c0_13], %13 {strides = array<i32>} : memref<8x32xbf16, #tpu.memory_space<vmem>>, vector<8x32xbf16>,
    } else {
    }
    return
  }
  func.func @transform_0(%arg0: i32, %arg1: i32, %arg2: i32) -> (i32, i32) {
    %c0_i32 = arith.constant 0 : i32
    return %arg0, %arg2 : i32, i32
  }
  func.func @transform_1(%arg0: i32, %arg1: i32, %arg2: i32) -> (i32, i32) {
    %c0_i32 = arith.constant 0 : i32
    return %arg2, %arg1 : i32, i32
  }
  func.func @transform_2(%arg0: i32, %arg1: i32, %arg2: i32) -> (i32, i32) {
    %c0_i32 = arith.constant 0 : i32
    return %arg0, %arg1 : i32, i32
  }
}

module attributes {stable_mosaic.version = 11 : i64} {
  func.func @_attention_kernel(%arg0: i32, %arg1: memref<1x5x96xbf16, #tpu.memory_space<vmem>>, %arg2: memref<1x5x32xbf16, #tpu.memory_space<vmem>>) attributes {dimension_semantics = [#tpu.dimension_semantics<parallel>], iteration_bounds = array<i64: 2>, scalar_prefetch = 0 : i64, scratch_operands = 0 : i64, tpu.core_type = #tpu.core_type<tc>, window_params = [{transform_indices = @transform_0, window_bounds = array<i64: 1, 5, 96>}, {transform_indices = @transform_1, window_bounds = array<i64: 1, 5, 32>}]} {
    %c0 = arith.constant 0 : index
    %c0_0 = arith.constant 0 : index
    %c0_1 = arith.constant 0 : index
    %0 = vector.load %arg1[%c0, %c0_0, %c0_1] : memref<1x5x96xbf16, #tpu.memory_space<vmem>>, vector<1x5x16xbf16>
    %1 = vector.shape_cast %0 : vector<1x5x16xbf16> to vector<5x16xbf16>
    %c0_2 = arith.constant 0 : index
    %c0_3 = arith.constant 0 : index
    %c32 = arith.constant 32 : index
    %2 = vector.load %arg1[%c0_2, %c0_3, %c32] : memref<1x5x96xbf16, #tpu.memory_space<vmem>>, vector<1x5x16xbf16>
    %3 = vector.shape_cast %2 : vector<1x5x16xbf16> to vector<5x16xbf16>
    %c0_4 = arith.constant 0 : index
    %c0_5 = arith.constant 0 : index
    %c64 = arith.constant 64 : index
    %4 = vector.load %arg1[%c0_4, %c0_5, %c64] : memref<1x5x96xbf16, #tpu.memory_space<vmem>>, vector<1x5x16xbf16>
    %5 = vector.shape_cast %4 : vector<1x5x16xbf16> to vector<5x16xbf16>
    %cst = arith.constant dense<0.000000e+00> : vector<5x5xf32>
    %6 = tpu.matmul %1, %3, %cst {dimension_numbers = #tpu.dot_dimension_numbers<[1], [1], [0], [0], [0, 0, 1, 0], [], []>} : vector<5x16xbf16>, vector<5x16xbf16>, vector<5x5xf32> -> vector<5x5xf32>
    %cst_6 = arith.constant 2.500000e-01 : f32
    %7 = vector.broadcast %cst_6 : f32 to vector<5x5xf32>
    %8 = arith.mulf %6, %7 : vector<5x5xf32>
    %cst_7 = arith.constant dense<0xFF800000> : vector<5xf32>
    %9 = vector.multi_reduction <maximumf>, %8, %cst_7 [1] : vector<5x5xf32> to vector<5xf32>
    %10 = vector.shape_cast %9 : vector<5xf32> to vector<5x1xf32>
    %11 = vector.broadcast %10 : vector<5x1xf32> to vector<5x5xf32>
    %12 = arith.subf %8, %11 : vector<5x5xf32>
    %13 = math.exp %12 : vector<5x5xf32>
    %cst_8 = arith.constant dense<0.000000e+00> : vector<5xf32>
    %14 = vector.multi_reduction <add>, %13, %cst_8 [1] : vector<5x5xf32> to vector<5xf32>
    %15 = vector.shape_cast %14 : vector<5xf32> to vector<5x1xf32>
    %16 = tpu.reciprocal %15 {approx = true} : vector<5x1xf32> -> vector<5x1xf32>
    %17 = vector.broadcast %16 : vector<5x1xf32> to vector<5x5xf32>
    %18 = arith.mulf %13, %17 : vector<5x5xf32>
    %19 = arith.truncf %18 : vector<5x5xf32> to vector<5x5xbf16>
    %cst_9 = arith.constant dense<0.000000e+00> : vector<5x16xf32>
    %20 = tpu.matmul %19, %5, %cst_9 {dimension_numbers = #tpu.dot_dimension_numbers<[1], [0], [0], [1], [0, 0, 1, 1], [], []>} : vector<5x5xbf16>, vector<5x16xbf16>, vector<5x16xf32> -> vector<5x16xf32>
    %21 = arith.truncf %20 : vector<5x16xf32> to vector<5x16xbf16>
    %c0_10 = arith.constant 0 : index
    %c0_11 = arith.constant 0 : index
    %c0_12 = arith.constant 0 : index
    %22 = vector.load %arg2[%c0_10, %c0_11, %c0_12] : memref<1x5x32xbf16, #tpu.memory_space<vmem>>, vector<1x5x16xbf16>
    %23 = vector.shape_cast %22 : vector<1x5x16xbf16> to vector<5x16xbf16>
    %24 = vector.shape_cast %21 : vector<5x16xbf16> to vector<1x5x16xbf16>
    tpu.vector_store %arg2[%c0_10, %c0_11, %c0_12], %24 {strides = array<i32>} : memref<1x5x32xbf16, #tpu.memory_space<vmem>>, vector<1x5x16xbf16>,
    %c0_13 = arith.constant 0 : index
    %c0_14 = arith.constant 0 : index
    %c16 = arith.constant 16 : index
    %25 = vector.load %arg1[%c0_13, %c0_14, %c16] : memref<1x5x96xbf16, #tpu.memory_space<vmem>>, vector<1x5x16xbf16>
    %26 = vector.shape_cast %25 : vector<1x5x16xbf16> to vector<5x16xbf16>
    %c0_15 = arith.constant 0 : index
    %c0_16 = arith.constant 0 : index
    %c48 = arith.constant 48 : index
    %27 = vector.load %arg1[%c0_15, %c0_16, %c48] : memref<1x5x96xbf16, #tpu.memory_space<vmem>>, vector<1x5x16xbf16>
    %28 = vector.shape_cast %27 : vector<1x5x16xbf16> to vector<5x16xbf16>
    %c0_17 = arith.constant 0 : index
    %c0_18 = arith.constant 0 : index
    %c80 = arith.constant 80 : index
    %29 = vector.load %arg1[%c0_17, %c0_18, %c80] : memref<1x5x96xbf16, #tpu.memory_space<vmem>>, vector<1x5x16xbf16>
    %30 = vector.shape_cast %29 : vector<1x5x16xbf16> to vector<5x16xbf16>
    %cst_19 = arith.constant dense<0.000000e+00> : vector<5x5xf32>
    %31 = tpu.matmul %26, %28, %cst_19 {dimension_numbers = #tpu.dot_dimension_numbers<[1], [1], [0], [0], [0, 0, 1, 0], [], []>} : vector<5x16xbf16>, vector<5x16xbf16>, vector<5x5xf32> -> vector<5x5xf32>
    %cst_20 = arith.constant 2.500000e-01 : f32
    %32 = vector.broadcast %cst_20 : f32 to vector<5x5xf32>
    %33 = arith.mulf %31, %32 : vector<5x5xf32>
    %cst_21 = arith.constant dense<0xFF800000> : vector<5xf32>
    %34 = vector.multi_reduction <maximumf>, %33, %cst_21 [1] : vector<5x5xf32> to vector<5xf32>
    %35 = vector.shape_cast %34 : vector<5xf32> to vector<5x1xf32>
    %36 = vector.broadcast %35 : vector<5x1xf32> to vector<5x5xf32>
    %37 = arith.subf %33, %36 : vector<5x5xf32>
    %38 = math.exp %37 : vector<5x5xf32>
    %cst_22 = arith.constant dense<0.000000e+00> : vector<5xf32>
    %39 = vector.multi_reduction <add>, %38, %cst_22 [1] : vector<5x5xf32> to vector<5xf32>
    %40 = vector.shape_cast %39 : vector<5xf32> to vector<5x1xf32>
    %41 = tpu.reciprocal %40 {approx = true} : vector<5x1xf32> -> vector<5x1xf32>
    %42 = vector.broadcast %41 : vector<5x1xf32> to vector<5x5xf32>
    %43 = arith.mulf %38, %42 : vector<5x5xf32>
    %44 = arith.truncf %43 : vector<5x5xf32> to vector<5x5xbf16>
    %cst_23 = arith.constant dense<0.000000e+00> : vector<5x16xf32>
    %45 = tpu.matmul %44, %30, %cst_23 {dimension_numbers = #tpu.dot_dimension_numbers<[1], [0], [0], [1], [0, 0, 1, 1], [], []>} : vector<5x5xbf16>, vector<5x16xbf16>, vector<5x16xf32> -> vector<5x16xf32>
    %46 = arith.truncf %45 : vector<5x16xf32> to vector<5x16xbf16>
    %c0_24 = arith.constant 0 : index
    %c0_25 = arith.constant 0 : index
    %c16_26 = arith.constant 16 : index
    %47 = vector.load %arg2[%c0_24, %c0_25, %c16_26] : memref<1x5x32xbf16, #tpu.memory_space<vmem>>, vector<1x5x16xbf16>
    %48 = vector.shape_cast %47 : vector<1x5x16xbf16> to vector<5x16xbf16>
    %49 = vector.shape_cast %46 : vector<5x16xbf16> to vector<1x5x16xbf16>
    tpu.vector_store %arg2[%c0_24, %c0_25, %c16_26], %49 {strides = array<i32>} : memref<1x5x32xbf16, #tpu.memory_space<vmem>>, vector<1x5x16xbf16>,
    return
  }
  func.func @transform_0(%arg0: i32) -> (i32, i32, i32) {
    %c0_i32 = arith.constant 0 : i32
    %c0_i32_0 = arith.constant 0 : i32
    %c0_i32_1 = arith.constant 0 : i32
    return %arg0, %c0_i32, %c0_i32_0 : i32, i32, i32
  }
  func.func @transform_1(%arg0: i32) -> (i32, i32, i32) {
    %c0_i32 = arith.constant 0 : i32
    %c0_i32_0 = arith.constant 0 : i32
    %c0_i32_1 = arith.constant 0 : i32
    return %arg0, %c0_i32, %c0_i32_0 : i32, i32, i32
  }
}

module attributes {stable_mosaic.version = 11 : i64} {
  func.func @_linear_kernel(%arg0: i32, %arg1: i32, %arg2: i32, %arg3: memref<10x32xbf16, #tpu.memory_space<vmem>>, %arg4: memref<32x32xbf16, #tpu.memory_space<vmem>>, %arg5: memref<1x32xf32, #tpu.memory_space<vmem>>, %arg6: memref<10x32xf32, #tpu.memory_space<vmem>>, %arg7: memref<10x32xf32, #tpu.memory_space<vmem>>, %arg8: memref<10x32xf32, #tpu.memory_space<vmem>>) attributes {dimension_semantics = [#tpu.dimension_semantics<parallel>, #tpu.dimension_semantics<parallel>, #tpu.dimension_semantics<arbitrary>], iteration_bounds = array<i64: 1, 1, 1>, scalar_prefetch = 0 : i64, scratch_operands = 1 : i64, tpu.core_type = #tpu.core_type<tc>, window_params = [{transform_indices = @transform_0, window_bounds = array<i64: 10, 32>}, {transform_indices = @transform_1, window_bounds = array<i64: 32, 32>}, {transform_indices = @transform_2, window_bounds = array<i64: 1, 32>}, {transform_indices = @transform_3, window_bounds = array<i64: 10, 32>}, {transform_indices = @transform_4, window_bounds = array<i64: 10, 32>}]} {
    %c0_i32 = arith.constant 0 : i32
    %0 = arith.cmpi eq, %arg2, %c0_i32 : i32
    %1 = arith.extui %0 : i1 to i32
    %c0_i32_0 = arith.constant 0 : i32
    %2 = arith.cmpi ne, %1, %c0_i32_0 : i32
    scf.if %2 {
      %cst_10 = arith.constant 0.000000e+00 : f32
      %12 = vector.broadcast %cst_10 : f32 to vector<10x32xf32>
      %c0_11 = arith.constant 0 : index
      %c0_12 = arith.constant 0 : index
      %13 = vector.load %arg8[%c0_11, %c0_12] : memref<10x32xf32, #tpu.memory_space<vmem>>, vector<10x32xf32>
      tpu.vector_store %arg8[%c0_11, %c0_12], %12 {strides = array<i32>} : memref<10x32xf32, #tpu.memory_space<vmem>>, vector<10x32xf32>,
    } else {
    }
    %c0 = arith.constant 0 : index
    %c0_1 = arith.constant 0 : index
    %3 = vector.load %arg8[%c0, %c0_1] : memref<10x32xf32, #tpu.memory_space<vmem>>, vector<10x32xf32>
    %c0_2 = arith.constant 0 : index
    %c0_3 = arith.constant 0 : index
    %4 = vector.load %arg3[%c0_2, %c0_3] : memref<10x32xbf16, #tpu.memory_space<vmem>>, vector<10x32xbf16>
    %c0_4 = arith.constant 0 : index
    %c0_5 = arith.constant 0 : index
    %5 = vector.load %arg4[%c0_4, %c0_5] : memref<32x32xbf16, #tpu.memory_space<vmem>>, vector<32x32xbf16>
    %cst = arith.constant dense<0.000000e+00> : vector<10x32xf32>
    %6 = tpu.matmul %4, %5, %cst {dimension_numbers = #tpu.dot_dimension_numbers<[1], [0], [0], [1], [0, 0, 1, 1], [], []>} : vector<10x32xbf16>, vector<32x32xbf16>, vector<10x32xf32> -> vector<10x32xf32>
    %7 = arith.addf %3, %6 : vector<10x32xf32>
    %c0_6 = arith.constant 0 : index
    %c0_7 = arith.constant 0 : index
    %8 = vector.load %arg8[%c0_6, %c0_7] : memref<10x32xf32, #tpu.memory_space<vmem>>, vector<10x32xf32>
    tpu.vector_store %arg8[%c0_6, %c0_7], %7 {strides = array<i32>} : memref<10x32xf32, #tpu.memory_space<vmem>>, vector<10x32xf32>,
    %c0_i32_8 = arith.constant 0 : i32
    %9 = arith.cmpi eq, %arg2, %c0_i32_8 : i32
    %10 = arith.extui %9 : i1 to i32
    %c0_i32_9 = arith.constant 0 : i32
    %11 = arith.cmpi ne, %10, %c0_i32_9 : i32
    scf.if %11 {
      %c0_10 = arith.constant 0 : index
      %c0_11 = arith.constant 0 : index
      %12 = vector.load %arg8[%c0_10, %c0_11] : memref<10x32xf32, #tpu.memory_space<vmem>>, vector<10x32xf32>
      %c0_12 = arith.constant 0 : index
      %c0_13 = arith.constant 0 : index
      %13 = vector.load %arg5[%c0_12, %c0_13] : memref<1x32xf32, #tpu.memory_space<vmem>>, vector<1x32xf32>
      %14 = vector.broadcast %13 : vector<1x32xf32> to vector<10x32xf32>
      %15 = arith.addf %12, %14 : vector<10x32xf32>
      %c0_14 = arith.constant 0 : index
      %c0_15 = arith.constant 0 : index
      %16 = vector.load %arg6[%c0_14, %c0_15] : memref<10x32xf32, #tpu.memory_space<vmem>>, vector<10x32xf32>
      %17 = arith.addf %15, %16 : vector<10x32xf32>
      %c0_16 = arith.constant 0 : index
      %c0_17 = arith.constant 0 : index
      %18 = vector.load %arg7[%c0_16, %c0_17] : memref<10x32xf32, #tpu.memory_space<vmem>>, vector<10x32xf32>
      tpu.vector_store %arg7[%c0_16, %c0_17], %17 {strides = array<i32>} : memref<10x32xf32, #tpu.memory_space<vmem>>, vector<10x32xf32>,
    } else {
    }
    return
  }
  func.func @transform_0(%arg0: i32, %arg1: i32, %arg2: i32) -> (i32, i32) {
    %c0_i32 = arith.constant 0 : i32
    return %arg0, %arg2 : i32, i32
  }
  func.func @transform_1(%arg0: i32, %arg1: i32, %arg2: i32) -> (i32, i32) {
    %c0_i32 = arith.constant 0 : i32
    return %arg2, %arg1 : i32, i32
  }
  func.func @transform_2(%arg0: i32, %arg1: i32, %arg2: i32) -> (i32, i32) {
    %c0_i32 = arith.constant 0 : i32
    %c0_i32_0 = arith.constant 0 : i32
    return %c0_i32, %arg1 : i32, i32
  }
  func.func @transform_3(%arg0: i32, %arg1: i32, %arg2: i32) -> (i32, i32) {
    %c0_i32 = arith.constant 0 : i32
    return %arg0, %arg1 : i32, i32
  }
  func.func @transform_4(%arg0: i32, %arg1: i32, %arg2: i32) -> (i32, i32) {
    %c0_i32 = arith.constant 0 : i32
    return %arg0, %arg1 : i32, i32
  }
}

module attributes {stable_mosaic.version = 11 : i64} {
  func.func @_linear_kernel(%arg0: i32, %arg1: i32, %arg2: i32, %arg3: memref<10x32xbf16, #tpu.memory_space<vmem>>, %arg4: memref<32x128xbf16, #tpu.memory_space<vmem>>, %arg5: memref<1x128xf32, #tpu.memory_space<vmem>>, %arg6: memref<10x128xbf16, #tpu.memory_space<vmem>>, %arg7: memref<10x128xf32, #tpu.memory_space<vmem>>) attributes {dimension_semantics = [#tpu.dimension_semantics<parallel>, #tpu.dimension_semantics<parallel>, #tpu.dimension_semantics<arbitrary>], iteration_bounds = array<i64: 1, 1, 1>, scalar_prefetch = 0 : i64, scratch_operands = 1 : i64, tpu.core_type = #tpu.core_type<tc>, window_params = [{transform_indices = @transform_0, window_bounds = array<i64: 10, 32>}, {transform_indices = @transform_1, window_bounds = array<i64: 32, 128>}, {transform_indices = @transform_2, window_bounds = array<i64: 1, 128>}, {transform_indices = @transform_3, window_bounds = array<i64: 10, 128>}]} {
    %c0_i32 = arith.constant 0 : i32
    %0 = arith.cmpi eq, %arg2, %c0_i32 : i32
    %1 = arith.extui %0 : i1 to i32
    %c0_i32_0 = arith.constant 0 : i32
    %2 = arith.cmpi ne, %1, %c0_i32_0 : i32
    scf.if %2 {
      %cst_10 = arith.constant 0.000000e+00 : f32
      %12 = vector.broadcast %cst_10 : f32 to vector<10x128xf32>
      %c0_11 = arith.constant 0 : index
      %c0_12 = arith.constant 0 : index
      %13 = vector.load %arg7[%c0_11, %c0_12] : memref<10x128xf32, #tpu.memory_space<vmem>>, vector<10x128xf32>
      tpu.vector_store %arg7[%c0_11, %c0_12], %12 {strides = array<i32>} : memref<10x128xf32, #tpu.memory_space<vmem>>, vector<10x128xf32>,
    } else {
    }
    %c0 = arith.constant 0 : index
    %c0_1 = arith.constant 0 : index
    %3 = vector.load %arg7[%c0, %c0_1] : memref<10x128xf32, #tpu.memory_space<vmem>>, vector<10x128xf32>
    %c0_2 = arith.constant 0 : index
    %c0_3 = arith.constant 0 : index
    %4 = vector.load %arg3[%c0_2, %c0_3] : memref<10x32xbf16, #tpu.memory_space<vmem>>, vector<10x32xbf16>
    %c0_4 = arith.constant 0 : index
    %c0_5 = arith.constant 0 : index
    %5 = vector.load %arg4[%c0_4, %c0_5] : memref<32x128xbf16, #tpu.memory_space<vmem>>, vector<32x128xbf16>
    %cst = arith.constant dense<0.000000e+00> : vector<10x128xf32>
    %6 = tpu.matmul %4, %5, %cst {dimension_numbers = #tpu.dot_dimension_numbers<[1], [0], [0], [1], [0, 0, 1, 1], [], []>} : vector<10x32xbf16>, vector<32x128xbf16>, vector<10x128xf32> -> vector<10x128xf32>
    %7 = arith.addf %3, %6 : vector<10x128xf32>
    %c0_6 = arith.constant 0 : index
    %c0_7 = arith.constant 0 : index
    %8 = vector.load %arg7[%c0_6, %c0_7] : memref<10x128xf32, #tpu.memory_space<vmem>>, vector<10x128xf32>
    tpu.vector_store %arg7[%c0_6, %c0_7], %7 {strides = array<i32>} : memref<10x128xf32, #tpu.memory_space<vmem>>, vector<10x128xf32>,
    %c0_i32_8 = arith.constant 0 : i32
    %9 = arith.cmpi eq, %arg2, %c0_i32_8 : i32
    %10 = arith.extui %9 : i1 to i32
    %c0_i32_9 = arith.constant 0 : i32
    %11 = arith.cmpi ne, %10, %c0_i32_9 : i32
    scf.if %11 {
      %c0_10 = arith.constant 0 : index
      %c0_11 = arith.constant 0 : index
      %12 = vector.load %arg7[%c0_10, %c0_11] : memref<10x128xf32, #tpu.memory_space<vmem>>, vector<10x128xf32>
      %c0_12 = arith.constant 0 : index
      %c0_13 = arith.constant 0 : index
      %13 = vector.load %arg5[%c0_12, %c0_13] : memref<1x128xf32, #tpu.memory_space<vmem>>, vector<1x128xf32>
      %14 = vector.broadcast %13 : vector<1x128xf32> to vector<10x128xf32>
      %15 = arith.addf %12, %14 : vector<10x128xf32>
      %cst_14 = arith.constant 5.000000e-01 : f32
      %16 = vector.broadcast %cst_14 : f32 to vector<10x128xf32>
      %17 = arith.mulf %16, %15 : vector<10x128xf32>
      %cst_15 = arith.constant 0.707106769 : f32
      %18 = vector.broadcast %cst_15 : f32 to vector<10x128xf32>
      %19 = arith.mulf %15, %18 : vector<10x128xf32>
      %20 = math.erf %19 : vector<10x128xf32>
      %cst_16 = arith.constant 1.000000e+00 : f32
      %21 = vector.broadcast %cst_16 : f32 to vector<10x128xf32>
      %22 = arith.addf %21, %20 : vector<10x128xf32>
      %23 = arith.mulf %17, %22 : vector<10x128xf32>
      %24 = arith.truncf %23 : vector<10x128xf32> to vector<10x128xbf16>
      %c0_17 = arith.constant 0 : index
      %c0_18 = arith.constant 0 : index
      %25 = vector.load %arg6[%c0_17, %c0_18] : memref<10x128xbf16, #tpu.memory_space<vmem>>, vector<10x128xbf16>
      tpu.vector_store %arg6[%c0_17, %c0_18], %24 {strides = array<i32>} : memref<10x128xbf16, #tpu.memory_space<vmem>>, vector<10x128xbf16>,
    } else {
    }
    return
  }
  func.func @transform_0(%arg0: i32, %arg1: i32, %arg2: i32) -> (i32, i32) {
    %c0_i32 = arith.constant 0 : i32
    return %arg0, %arg2 : i32, i32
  }
  func.func @transform_1(%arg0: i32, %arg1: i32, %arg2: i32) -> (i32, i32) {
    %c0_i32 = arith.constant 0 : i32
    return %arg2, %arg1 : i32, i32
  }
  func.func @transform_2(%arg0: i32, %arg1: i32, %arg2: i32) -> (i32, i32) {
    %c0_i32 = arith.constant 0 : i32
    %c0_i32_0 = arith.constant 0 : i32
    return %c0_i32, %arg1 : i32, i32
  }
  func.func @transform_3(%arg0: i32, %arg1: i32, %arg2: i32) -> (i32, i32) {
    %c0_i32 = arith.constant 0 : i32
    return %arg0, %arg1 : i32, i32
  }
}

module attributes {stable_mosaic.version = 11 : i64} {
  func.func @_linear_kernel(%arg0: i32, %arg1: i32, %arg2: i32, %arg3: memref<10x128xbf16, #tpu.memory_space<vmem>>, %arg4: memref<128x32xbf16, #tpu.memory_space<vmem>>, %arg5: memref<1x32xf32, #tpu.memory_space<vmem>>, %arg6: memref<10x32xf32, #tpu.memory_space<vmem>>, %arg7: memref<10x32xf32, #tpu.memory_space<vmem>>, %arg8: memref<10x32xf32, #tpu.memory_space<vmem>>) attributes {dimension_semantics = [#tpu.dimension_semantics<parallel>, #tpu.dimension_semantics<parallel>, #tpu.dimension_semantics<arbitrary>], iteration_bounds = array<i64: 1, 1, 1>, scalar_prefetch = 0 : i64, scratch_operands = 1 : i64, tpu.core_type = #tpu.core_type<tc>, window_params = [{transform_indices = @transform_0, window_bounds = array<i64: 10, 128>}, {transform_indices = @transform_1, window_bounds = array<i64: 128, 32>}, {transform_indices = @transform_2, window_bounds = array<i64: 1, 32>}, {transform_indices = @transform_3, window_bounds = array<i64: 10, 32>}, {transform_indices = @transform_4, window_bounds = array<i64: 10, 32>}]} {
    %c0_i32 = arith.constant 0 : i32
    %0 = arith.cmpi eq, %arg2, %c0_i32 : i32
    %1 = arith.extui %0 : i1 to i32
    %c0_i32_0 = arith.constant 0 : i32
    %2 = arith.cmpi ne, %1, %c0_i32_0 : i32
    scf.if %2 {
      %cst_10 = arith.constant 0.000000e+00 : f32
      %12 = vector.broadcast %cst_10 : f32 to vector<10x32xf32>
      %c0_11 = arith.constant 0 : index
      %c0_12 = arith.constant 0 : index
      %13 = vector.load %arg8[%c0_11, %c0_12] : memref<10x32xf32, #tpu.memory_space<vmem>>, vector<10x32xf32>
      tpu.vector_store %arg8[%c0_11, %c0_12], %12 {strides = array<i32>} : memref<10x32xf32, #tpu.memory_space<vmem>>, vector<10x32xf32>,
    } else {
    }
    %c0 = arith.constant 0 : index
    %c0_1 = arith.constant 0 : index
    %3 = vector.load %arg8[%c0, %c0_1] : memref<10x32xf32, #tpu.memory_space<vmem>>, vector<10x32xf32>
    %c0_2 = arith.constant 0 : index
    %c0_3 = arith.constant 0 : index
    %4 = vector.load %arg3[%c0_2, %c0_3] : memref<10x128xbf16, #tpu.memory_space<vmem>>, vector<10x128xbf16>
    %c0_4 = arith.constant 0 : index
    %c0_5 = arith.constant 0 : index
    %5 = vector.load %arg4[%c0_4, %c0_5] : memref<128x32xbf16, #tpu.memory_space<vmem>>, vector<128x32xbf16>
    %cst = arith.constant dense<0.000000e+00> : vector<10x32xf32>
    %6 = tpu.matmul %4, %5, %cst {dimension_numbers = #tpu.dot_dimension_numbers<[1], [0], [0], [1], [0, 0, 1, 1], [], []>} : vector<10x128xbf16>, vector<128x32xbf16>, vector<10x32xf32> -> vector<10x32xf32>
    %7 = arith.addf %3, %6 : vector<10x32xf32>
    %c0_6 = arith.constant 0 : index
    %c0_7 = arith.constant 0 : index
    %8 = vector.load %arg8[%c0_6, %c0_7] : memref<10x32xf32, #tpu.memory_space<vmem>>, vector<10x32xf32>
    tpu.vector_store %arg8[%c0_6, %c0_7], %7 {strides = array<i32>} : memref<10x32xf32, #tpu.memory_space<vmem>>, vector<10x32xf32>,
    %c0_i32_8 = arith.constant 0 : i32
    %9 = arith.cmpi eq, %arg2, %c0_i32_8 : i32
    %10 = arith.extui %9 : i1 to i32
    %c0_i32_9 = arith.constant 0 : i32
    %11 = arith.cmpi ne, %10, %c0_i32_9 : i32
    scf.if %11 {
      %c0_10 = arith.constant 0 : index
      %c0_11 = arith.constant 0 : index
      %12 = vector.load %arg8[%c0_10, %c0_11] : memref<10x32xf32, #tpu.memory_space<vmem>>, vector<10x32xf32>
      %c0_12 = arith.constant 0 : index
      %c0_13 = arith.constant 0 : index
      %13 = vector.load %arg5[%c0_12, %c0_13] : memref<1x32xf32, #tpu.memory_space<vmem>>, vector<1x32xf32>
      %14 = vector.broadcast %13 : vector<1x32xf32> to vector<10x32xf32>
      %15 = arith.addf %12, %14 : vector<10x32xf32>
      %c0_14 = arith.constant 0 : index
      %c0_15 = arith.constant 0 : index
      %16 = vector.load %arg6[%c0_14, %c0_15] : memref<10x32xf32, #tpu.memory_space<vmem>>, vector<10x32xf32>
      %17 = arith.addf %15, %16 : vector<10x32xf32>
      %c0_16 = arith.constant 0 : index
      %c0_17 = arith.constant 0 : index
      %18 = vector.load %arg7[%c0_16, %c0_17] : memref<10x32xf32, #tpu.memory_space<vmem>>, vector<10x32xf32>
      tpu.vector_store %arg7[%c0_16, %c0_17], %17 {strides = array<i32>} : memref<10x32xf32, #tpu.memory_space<vmem>>, vector<10x32xf32>,
    } else {
    }
    return
  }
  func.func @transform_0(%arg0: i32, %arg1: i32, %arg2: i32) -> (i32, i32) {
    %c0_i32 = arith.constant 0 : i32
    return %arg0, %arg2 : i32, i32
  }
  func.func @transform_1(%arg0: i32, %arg1: i32, %arg2: i32) -> (i32, i32) {
    %c0_i32 = arith.constant 0 : i32
    return %arg2, %arg1 : i32, i32
  }
  func.func @transform_2(%arg0: i32, %arg1: i32, %arg2: i32) -> (i32, i32) {
    %c0_i32 = arith.constant 0 : i32
    %c0_i32_0 = arith.constant 0 : i32
    return %c0_i32, %arg1 : i32, i32
  }
  func.func @transform_3(%arg0: i32, %arg1: i32, %arg2: i32) -> (i32, i32) {
    %c0_i32 = arith.constant 0 : i32
    return %arg0, %arg1 : i32, i32
  }
  func.func @transform_4(%arg0: i32, %arg1: i32, %arg2: i32) -> (i32, i32) {
    %c0_i32 = arith.constant 0 : i32
    return %arg0, %arg1 : i32, i32
  }
}

module attributes {stable_mosaic.version = 11 : i64} {
  func.func @_l2norm_kernel(%arg0: i32, %arg1: memref<2x32xf32, #tpu.memory_space<vmem>>, %arg2: memref<2x32xf32, #tpu.memory_space<vmem>>) attributes {dimension_semantics = [#tpu.dimension_semantics<parallel>], iteration_bounds = array<i64: 1>, scalar_prefetch = 0 : i64, scratch_operands = 0 : i64, tpu.core_type = #tpu.core_type<tc>, window_params = [{transform_indices = @transform_0, window_bounds = array<i64: 2, 32>}, {transform_indices = @transform_1, window_bounds = array<i64: 2, 32>}]} {
    %c0 = arith.constant 0 : index
    %c0_0 = arith.constant 0 : index
    %0 = vector.load %arg1[%c0, %c0_0] : memref<2x32xf32, #tpu.memory_space<vmem>>, vector<2x32xf32>
    %1 = arith.mulf %0, %0 : vector<2x32xf32>
    %cst = arith.constant dense<0.000000e+00> : vector<2xf32>
    %2 = vector.multi_reduction <add>, %1, %cst [1] : vector<2x32xf32> to vector<2xf32>
    %3 = vector.shape_cast %2 : vector<2xf32> to vector<2x1xf32>
    %4 = math.sqrt %3 : vector<2x1xf32>
    %cst_1 = arith.constant 9.99999996E-13 : f32
    %5 = vector.broadcast %cst_1 : f32 to vector<2x1xf32>
    %6 = arith.maximumf %4, %5 : vector<2x1xf32>
    %7 = tpu.reciprocal %6 {approx = true} : vector<2x1xf32> -> vector<2x1xf32>
    %8 = vector.broadcast %7 : vector<2x1xf32> to vector<2x32xf32>
    %9 = arith.mulf %0, %8 : vector<2x32xf32>
    %c0_2 = arith.constant 0 : index
    %c0_3 = arith.constant 0 : index
    %10 = vector.load %arg2[%c0_2, %c0_3] : memref<2x32xf32, #tpu.memory_space<vmem>>, vector<2x32xf32>
    tpu.vector_store %arg2[%c0_2, %c0_3], %9 {strides = array<i32>} : memref<2x32xf32, #tpu.memory_space<vmem>>, vector<2x32xf32>,
    return
  }
  func.func @transform_0(%arg0: i32) -> (i32, i32) {
    %c0_i32 = arith.constant 0 : i32
    %c0_i32_0 = arith.constant 0 : i32
    return %arg0, %c0_i32 : i32, i32
  }
  func.func @transform_1(%arg0: i32) -> (i32, i32) {
    %c0_i32 = arith.constant 0 : i32
    %c0_i32_0 = arith.constant 0 : i32
    return %arg0, %c0_i32 : i32, i32
  }
}

module attributes {stable_mosaic.version = 11 : i64} {
  func.func @_linear_kernel(%arg0: i32, %arg1: i32, %arg2: i32, %arg3: memref<16x32xbf16, #tpu.memory_space<vmem>>, %arg4: memref<32x96xbf16, #tpu.memory_space<vmem>>, %arg5: memref<1x96xf32, #tpu.memory_space<vmem>>, %arg6: memref<16x96xbf16, #tpu.memory_space<vmem>>, %arg7: memref<16x96xf32, #tpu.memory_space<vmem>>) attributes {dimension_semantics = [#tpu.dimension_semantics<parallel>, #tpu.dimension_semantics<parallel>, #tpu.dimension_semantics<arbitrary>], iteration_bounds = array<i64: 1, 1, 1>, scalar_prefetch = 0 : i64, scratch_operands = 1 : i64, tpu.core_type = #tpu.core_type<tc>, window_params = [{transform_indices = @transform_0, window_bounds = array<i64: 16, 32>}, {transform_indices = @transform_1, window_bounds = array<i64: 32, 96>}, {transform_indices = @transform_2, window_bounds = array<i64: 1, 96>}, {transform_indices = @transform_3, window_bounds = array<i64: 16, 96>}]} {
    %c0_i32 = arith.constant 0 : i32
    %0 = arith.cmpi eq, %arg2, %c0_i32 : i32
    %1 = arith.extui %0 : i1 to i32
    %c0_i32_0 = arith.constant 0 : i32
    %2 = arith.cmpi ne, %1, %c0_i32_0 : i32
    scf.if %2 {
      %cst_10 = arith.constant 0.000000e+00 : f32
      %12 = vector.broadcast %cst_10 : f32 to vector<16x96xf32>
      %c0_11 = arith.constant 0 : index
      %c0_12 = arith.constant 0 : index
      %13 = vector.load %arg7[%c0_11, %c0_12] : memref<16x96xf32, #tpu.memory_space<vmem>>, vector<16x96xf32>
      tpu.vector_store %arg7[%c0_11, %c0_12], %12 {strides = array<i32>} : memref<16x96xf32, #tpu.memory_space<vmem>>, vector<16x96xf32>,
    } else {
    }
    %c0 = arith.constant 0 : index
    %c0_1 = arith.constant 0 : index
    %3 = vector.load %arg7[%c0, %c0_1] : memref<16x96xf32, #tpu.memory_space<vmem>>, vector<16x96xf32>
    %c0_2 = arith.constant 0 : index
    %c0_3 = arith.constant 0 : index
    %4 = vector.load %arg3[%c0_2, %c0_3] : memref<16x32xbf16, #tpu.memory_space<vmem>>, vector<16x32xbf16>
    %c0_4 = arith.constant 0 : index
    %c0_5 = arith.constant 0 : index
    %5 = vector.load %arg4[%c0_4, %c0_5] : memref<32x96xbf16, #tpu.memory_space<vmem>>, vector<32x96xbf16>
    %cst = arith.constant dense<0.000000e+00> : vector<16x96xf32>
    %6 = tpu.matmul %4, %5, %cst {dimension_numbers = #tpu.dot_dimension_numbers<[1], [0], [0], [1], [0, 0, 1, 1], [], []>} : vector<16x32xbf16>, vector<32x96xbf16>, vector<16x96xf32> -> vector<16x96xf32>
    %7 = arith.addf %3, %6 : vector<16x96xf32>
    %c0_6 = arith.constant 0 : index
    %c0_7 = arith.constant 0 : index
    %8 = vector.load %arg7[%c0_6, %c0_7] : memref<16x96xf32, #tpu.memory_space<vmem>>, vector<16x96xf32>
    tpu.vector_store %arg7[%c0_6, %c0_7], %7 {strides = array<i32>} : memref<16x96xf32, #tpu.memory_space<vmem>>, vector<16x96xf32>,
    %c0_i32_8 = arith.constant 0 : i32
    %9 = arith.cmpi eq, %arg2, %c0_i32_8 : i32
    %10 = arith.extui %9 : i1 to i32
    %c0_i32_9 = arith.constant 0 : i32
    %11 = arith.cmpi ne, %10, %c0_i32_9 : i32
    scf.if %11 {
      %c0_10 = arith.constant 0 : index
      %c0_11 = arith.constant 0 : index
      %12 = vector.load %arg7[%c0_10, %c0_11] : memref<16x96xf32, #tpu.memory_space<vmem>>, vector<16x96xf32>
      %c0_12 = arith.constant 0 : index
      %c0_13 = arith.constant 0 : index
      %13 = vector.load %arg5[%c0_12, %c0_13] : memref<1x96xf32, #tpu.memory_space<vmem>>, vector<1x96xf32>
      %14 = vector.broadcast %13 : vector<1x96xf32> to vector<16x96xf32>
      %15 = arith.addf %12, %14 : vector<16x96xf32>
      %16 = arith.truncf %15 : vector<16x96xf32> to vector<16x96xbf16>
      %c0_14 = arith.constant 0 : index
      %c0_15 = arith.constant 0 : index
      %17 = vector.load %arg6[%c0_14, %c0_15] : memref<16x96xbf16, #tpu.memory_space<vmem>>, vector<16x96xbf16>
      tpu.vector_store %arg6[%c0_14, %c0_15], %16 {strides = array<i32>} : memref<16x96xbf16, #tpu.memory_space<vmem>>, vector<16x96xbf16>,
    } else {
    }
    return
  }
  func.func @transform_0(%arg0: i32, %arg1: i32, %arg2: i32) -> (i32, i32) {
    %c0_i32 = arith.constant 0 : i32
    return %arg0, %arg2 : i32, i32
  }
  func.func @transform_1(%arg0: i32, %arg1: i32, %arg2: i32) -> (i32, i32) {
    %c0_i32 = arith.constant 0 : i32
    return %arg2, %arg1 : i32, i32
  }
  func.func @transform_2(%arg0: i32, %arg1: i32, %arg2: i32) -> (i32, i32) {
    %c0_i32 = arith.constant 0 : i32
    %c0_i32_0 = arith.constant 0 : i32
    return %c0_i32, %arg1 : i32, i32
  }
  func.func @transform_3(%arg0: i32, %arg1: i32, %arg2: i32) -> (i32, i32) {
    %c0_i32 = arith.constant 0 : i32
    return %arg0, %arg1 : i32, i32
  }
}

module attributes {stable_mosaic.version = 11 : i64} {
  func.func @_layernorm_kernel(%arg0: i32, %arg1: memref<16x32xf32, #tpu.memory_space<vmem>>, %arg2: memref<1x32xf32, #tpu.memory_space<vmem>>, %arg3: memref<1x32xf32, #tpu.memory_space<vmem>>, %arg4: memref<16x32xbf16, #tpu.memory_space<vmem>>) attributes {dimension_semantics = [#tpu.dimension_semantics<parallel>], iteration_bounds = array<i64: 1>, scalar_prefetch = 0 : i64, scratch_operands = 0 : i64, tpu.core_type = #tpu.core_type<tc>, window_params = [{transform_indices = @transform_0, window_bounds = array<i64: 16, 32>}, {pipeline_mode = #tpu.pipeline_mode<synchronous>, transform_indices = @transform_1, window_bounds = array<i64: 1, 32>}, {pipeline_mode = #tpu.pipeline_mode<synchronous>, transform_indices = @transform_2, window_bounds = array<i64: 1, 32>}, {transform_indices = @transform_3, window_bounds = array<i64: 16, 32>}]} {
    %c0 = arith.constant 0 : index
    %c0_0 = arith.constant 0 : index
    %0 = vector.load %arg1[%c0, %c0_0] : memref<16x32xf32, #tpu.memory_space<vmem>>, vector<16x32xf32>
    %cst = arith.constant dense<0.000000e+00> : vector<16xf32>
    %1 = vector.multi_reduction <add>, %0, %cst [1] : vector<16x32xf32> to vector<16xf32>
    %2 = vector.shape_cast %1 : vector<16xf32> to vector<16x1xf32>
    %cst_1 = arith.constant 3.200000e+01 : f32
    %3 = vector.broadcast %cst_1 : f32 to vector<16x1xf32>
    %4 = arith.divf %2, %3 : vector<16x1xf32>
    %5 = vector.broadcast %4 : vector<16x1xf32> to vector<16x32xf32>
    %6 = arith.subf %0, %5 : vector<16x32xf32>
    %7 = arith.mulf %6, %6 : vector<16x32xf32>
    %cst_2 = arith.constant dense<0.000000e+00> : vector<16xf32>
    %8 = vector.multi_reduction <add>, %7, %cst_2 [1] : vector<16x32xf32> to vector<16xf32>
    %9 = vector.shape_cast %8 : vector<16xf32> to vector<16x1xf32>
    %cst_3 = arith.constant 3.200000e+01 : f32
    %10 = vector.broadcast %cst_3 : f32 to vector<16x1xf32>
    %11 = arith.divf %9, %10 : vector<16x1xf32>
    %12 = vector.broadcast %4 : vector<16x1xf32> to vector<16x32xf32>
    %13 = arith.subf %0, %12 : vector<16x32xf32>
    %cst_4 = arith.constant 9.99999974E-6 : f32
    %14 = vector.broadcast %cst_4 : f32 to vector<16x1xf32>
    %15 = arith.addf %11, %14 : vector<16x1xf32>
    %16 = math.rsqrt %15 : vector<16x1xf32>
    %17 = vector.broadcast %16 : vector<16x1xf32> to vector<16x32xf32>
    %18 = arith.mulf %13, %17 : vector<16x32xf32>
    %c0_5 = arith.constant 0 : index
    %c0_6 = arith.constant 0 : index
    %19 = vector.load %arg2[%c0_5, %c0_6] : memref<1x32xf32, #tpu.memory_space<vmem>>, vector<1x32xf32>
    %20 = vector.broadcast %19 : vector<1x32xf32> to vector<16x32xf32>
    %21 = arith.mulf %18, %20 : vector<16x32xf32>
    %c0_7 = arith.constant 0 : index
    %c0_8 = arith.constant 0 : index
    %22 = vector.load %arg3[%c0_7, %c0_8] : memref<1x32xf32, #tpu.memory_space<vmem>>, vector<1x32xf32>
    %23 = vector.broadcast %22 : vector<1x32xf32> to vector<16x32xf32>
    %24 = arith.addf %21, %23 : vector<16x32xf32>
    %25 = arith.truncf %24 : vector<16x32xf32> to vector<16x32xbf16>
    %c0_9 = arith.constant 0 : index
    %c0_10 = arith.constant 0 : index
    %26 = vector.load %arg4[%c0_9, %c0_10] : memref<16x32xbf16, #tpu.memory_space<vmem>>, vector<16x32xbf16>
    tpu.vector_store %arg4[%c0_9, %c0_10], %25 {strides = array<i32>} : memref<16x32xbf16, #tpu.memory_space<vmem>>, vector<16x32xbf16>,
    return
  }
  func.func @transform_0(%arg0: i32) -> (i32, i32) {
    %c0_i32 = arith.constant 0 : i32
    %c0_i32_0 = arith.constant 0 : i32
    return %arg0, %c0_i32 : i32, i32
  }
  func.func @transform_1(%arg0: i32) -> (i32, i32) {
    %c0_i32 = arith.constant 0 : i32
    %c0_i32_0 = arith.constant 0 : i32
    %c0_i32_1 = arith.constant 0 : i32
    return %c0_i32, %c0_i32_0 : i32, i32
  }
  func.func @transform_2(%arg0: i32) -> (i32, i32) {
    %c0_i32 = arith.constant 0 : i32
    %c0_i32_0 = arith.constant 0 : i32
    %c0_i32_1 = arith.constant 0 : i32
    return %c0_i32, %c0_i32_0 : i32, i32
  }
  func.func @transform_3(%arg0: i32) -> (i32, i32) {
    %c0_i32 = arith.constant 0 : i32
    %c0_i32_0 = arith.constant 0 : i32
    return %arg0, %c0_i32 : i32, i32
  }
}

module attributes {stable_mosaic.version = 11 : i64} {
  func.func @_linear_kernel(%arg0: i32, %arg1: i32, %arg2: i32, %arg3: memref<2x32xbf16, #tpu.memory_space<vmem>>, %arg4: memref<32x32xbf16, #tpu.memory_space<vmem>>, %arg5: memref<2x32xf32, #tpu.memory_space<vmem>>, %arg6: memref<2x32xf32, #tpu.memory_space<vmem>>) attributes {dimension_semantics = [#tpu.dimension_semantics<parallel>, #tpu.dimension_semantics<parallel>, #tpu.dimension_semantics<arbitrary>], iteration_bounds = array<i64: 1, 1, 1>, scalar_prefetch = 0 : i64, scratch_operands = 1 : i64, tpu.core_type = #tpu.core_type<tc>, window_params = [{transform_indices = @transform_0, window_bounds = array<i64: 2, 32>}, {transform_indices = @transform_1, window_bounds = array<i64: 32, 32>}, {transform_indices = @transform_2, window_bounds = array<i64: 2, 32>}]} {
    %c0_i32 = arith.constant 0 : i32
    %0 = arith.cmpi eq, %arg2, %c0_i32 : i32
    %1 = arith.extui %0 : i1 to i32
    %c0_i32_0 = arith.constant 0 : i32
    %2 = arith.cmpi ne, %1, %c0_i32_0 : i32
    scf.if %2 {
      %cst_10 = arith.constant 0.000000e+00 : f32
      %12 = vector.broadcast %cst_10 : f32 to vector<2x32xf32>
      %c0_11 = arith.constant 0 : index
      %c0_12 = arith.constant 0 : index
      %13 = vector.load %arg6[%c0_11, %c0_12] : memref<2x32xf32, #tpu.memory_space<vmem>>, vector<2x32xf32>
      tpu.vector_store %arg6[%c0_11, %c0_12], %12 {strides = array<i32>} : memref<2x32xf32, #tpu.memory_space<vmem>>, vector<2x32xf32>,
    } else {
    }
    %c0 = arith.constant 0 : index
    %c0_1 = arith.constant 0 : index
    %3 = vector.load %arg6[%c0, %c0_1] : memref<2x32xf32, #tpu.memory_space<vmem>>, vector<2x32xf32>
    %c0_2 = arith.constant 0 : index
    %c0_3 = arith.constant 0 : index
    %4 = vector.load %arg3[%c0_2, %c0_3] : memref<2x32xbf16, #tpu.memory_space<vmem>>, vector<2x32xbf16>
    %c0_4 = arith.constant 0 : index
    %c0_5 = arith.constant 0 : index
    %5 = vector.load %arg4[%c0_4, %c0_5] : memref<32x32xbf16, #tpu.memory_space<vmem>>, vector<32x32xbf16>
    %cst = arith.constant dense<0.000000e+00> : vector<2x32xf32>
    %6 = tpu.matmul %4, %5, %cst {dimension_numbers = #tpu.dot_dimension_numbers<[1], [0], [0], [1], [0, 0, 1, 1], [], []>} : vector<2x32xbf16>, vector<32x32xbf16>, vector<2x32xf32> -> vector<2x32xf32>
    %7 = arith.addf %3, %6 : vector<2x32xf32>
    %c0_6 = arith.constant 0 : index
    %c0_7 = arith.constant 0 : index
    %8 = vector.load %arg6[%c0_6, %c0_7] : memref<2x32xf32, #tpu.memory_space<vmem>>, vector<2x32xf32>
    tpu.vector_store %arg6[%c0_6, %c0_7], %7 {strides = array<i32>} : memref<2x32xf32, #tpu.memory_space<vmem>>, vector<2x32xf32>,
    %c0_i32_8 = arith.constant 0 : i32
    %9 = arith.cmpi eq, %arg2, %c0_i32_8 : i32
    %10 = arith.extui %9 : i1 to i32
    %c0_i32_9 = arith.constant 0 : i32
    %11 = arith.cmpi ne, %10, %c0_i32_9 : i32
    scf.if %11 {
      %c0_10 = arith.constant 0 : index
      %c0_11 = arith.constant 0 : index
      %12 = vector.load %arg6[%c0_10, %c0_11] : memref<2x32xf32, #tpu.memory_space<vmem>>, vector<2x32xf32>
      %c0_12 = arith.constant 0 : index
      %c0_13 = arith.constant 0 : index
      %13 = vector.load %arg5[%c0_12, %c0_13] : memref<2x32xf32, #tpu.memory_space<vmem>>, vector<2x32xf32>
      tpu.vector_store %arg5[%c0_12, %c0_13], %12 {strides = array<i32>} : memref<2x32xf32, #tpu.memory_space<vmem>>, vector<2x32xf32>,
    } else {
    }
    return
  }
  func.func @transform_0(%arg0: i32, %arg1: i32, %arg2: i32) -> (i32, i32) {
    %c0_i32 = arith.constant 0 : i32
    return %arg0, %arg2 : i32, i32
  }
  func.func @transform_1(%arg0: i32, %arg1: i32, %arg2: i32) -> (i32, i32) {
    %c0_i32 = arith.constant 0 : i32
    return %arg2, %arg1 : i32, i32
  }
  func.func @transform_2(%arg0: i32, %arg1: i32, %arg2: i32) -> (i32, i32) {
    %c0_i32 = arith.constant 0 : i32
    return %arg0, %arg1 : i32, i32
  }
}

module attributes {stable_mosaic.version = 11 : i64} {
  func.func @_attention_kernel(%arg0: i32, %arg1: memref<1x8x96xbf16, #tpu.memory_space<vmem>>, %arg2: memref<1x8x32xbf16, #tpu.memory_space<vmem>>) attributes {dimension_semantics = [#tpu.dimension_semantics<parallel>], iteration_bounds = array<i64: 2>, scalar_prefetch = 0 : i64, scratch_operands = 0 : i64, tpu.core_type = #tpu.core_type<tc>, window_params = [{transform_indices = @transform_0, window_bounds = array<i64: 1, 8, 96>}, {transform_indices = @transform_1, window_bounds = array<i64: 1, 8, 32>}]} {
    %0 = tpu.iota {dimensions = array<i32: 0>} : vector<8x8xi32>
    %1 = tpu.iota {dimensions = array<i32: 1>} : vector<8x8xi32>
    %2 = arith.cmpi sge, %0, %1 : vector<8x8xi32>
    %c0 = arith.constant 0 : index
    %c0_0 = arith.constant 0 : index
    %c0_1 = arith.constant 0 : index
    %3 = vector.load %arg1[%c0, %c0_0, %c0_1] : memref<1x8x96xbf16, #tpu.memory_space<vmem>>, vector<1x8x16xbf16>
    %4 = vector.shape_cast %3 : vector<1x8x16xbf16> to vector<8x16xbf16>
    %c0_2 = arith.constant 0 : index
    %c0_3 = arith.constant 0 : index
    %c32 = arith.constant 32 : index
    %5 = vector.load %arg1[%c0_2, %c0_3, %c32] : memref<1x8x96xbf16, #tpu.memory_space<vmem>>, vector<1x8x16xbf16>
    %6 = vector.shape_cast %5 : vector<1x8x16xbf16> to vector<8x16xbf16>
    %c0_4 = arith.constant 0 : index
    %c0_5 = arith.constant 0 : index
    %c64 = arith.constant 64 : index
    %7 = vector.load %arg1[%c0_4, %c0_5, %c64] : memref<1x8x96xbf16, #tpu.memory_space<vmem>>, vector<1x8x16xbf16>
    %8 = vector.shape_cast %7 : vector<1x8x16xbf16> to vector<8x16xbf16>
    %cst = arith.constant dense<0.000000e+00> : vector<8x8xf32>
    %9 = tpu.matmul %4, %6, %cst {dimension_numbers = #tpu.dot_dimension_numbers<[1], [1], [0], [0], [0, 0, 1, 0], [], []>} : vector<8x16xbf16>, vector<8x16xbf16>, vector<8x8xf32> -> vector<8x8xf32>
    %cst_6 = arith.constant 2.500000e-01 : f32
    %10 = vector.broadcast %cst_6 : f32 to vector<8x8xf32>
    %11 = arith.mulf %9, %10 : vector<8x8xf32>
    %cst_7 = arith.constant -1.000000e+30 : f32
    %12 = vector.broadcast %cst_7 : f32 to vector<8x8xf32>
    %13 = arith.select %2, %11, %12 : vector<8x8xi1>, vector<8x8xf32>
    %cst_8 = arith.constant dense<0xFF800000> : vector<8xf32>
    %14 = vector.multi_reduction <maximumf>, %13, %cst_8 [1] : vector<8x8xf32> to vector<8xf32>
    %15 = vector.shape_cast %14 : vector<8xf32> to vector<8x1xf32>
    %16 = vector.broadcast %15 : vector<8x1xf32> to vector<8x8xf32>
    %17 = arith.subf %13, %16 : vector<8x8xf32>
    %18 = math.exp %17 : vector<8x8xf32>
    %cst_9 = arith.constant dense<0.000000e+00> : vector<8xf32>
    %19 = vector.multi_reduction <add>, %18, %cst_9 [1] : vector<8x8xf32> to vector<8xf32>
    %20 = vector.shape_cast %19 : vector<8xf32> to vector<8x1xf32>
    %21 = tpu.reciprocal %20 {approx = true} : vector<8x1xf32> -> vector<8x1xf32>
    %22 = vector.broadcast %21 : vector<8x1xf32> to vector<8x8xf32>
    %23 = arith.mulf %18, %22 : vector<8x8xf32>
    %24 = arith.truncf %23 : vector<8x8xf32> to vector<8x8xbf16>
    %cst_10 = arith.constant dense<0.000000e+00> : vector<8x16xf32>
    %25 = tpu.matmul %24, %8, %cst_10 {dimension_numbers = #tpu.dot_dimension_numbers<[1], [0], [0], [1], [0, 0, 1, 1], [], []>} : vector<8x8xbf16>, vector<8x16xbf16>, vector<8x16xf32> -> vector<8x16xf32>
    %26 = arith.truncf %25 : vector<8x16xf32> to vector<8x16xbf16>
    %c0_11 = arith.constant 0 : index
    %c0_12 = arith.constant 0 : index
    %c0_13 = arith.constant 0 : index
    %27 = vector.load %arg2[%c0_11, %c0_12, %c0_13] : memref<1x8x32xbf16, #tpu.memory_space<vmem>>, vector<1x8x16xbf16>
    %28 = vector.shape_cast %27 : vector<1x8x16xbf16> to vector<8x16xbf16>
    %29 = vector.shape_cast %26 : vector<8x16xbf16> to vector<1x8x16xbf16>
    tpu.vector_store %arg2[%c0_11, %c0_12, %c0_13], %29 {strides = array<i32>} : memref<1x8x32xbf16, #tpu.memory_space<vmem>>, vector<1x8x16xbf16>,
    %c0_14 = arith.constant 0 : index
    %c0_15 = arith.constant 0 : index
    %c16 = arith.constant 16 : index
    %30 = vector.load %arg1[%c0_14, %c0_15, %c16] : memref<1x8x96xbf16, #tpu.memory_space<vmem>>, vector<1x8x16xbf16>
    %31 = vector.shape_cast %30 : vector<1x8x16xbf16> to vector<8x16xbf16>
    %c0_16 = arith.constant 0 : index
    %c0_17 = arith.constant 0 : index
    %c48 = arith.constant 48 : index
    %32 = vector.load %arg1[%c0_16, %c0_17, %c48] : memref<1x8x96xbf16, #tpu.memory_space<vmem>>, vector<1x8x16xbf16>
    %33 = vector.shape_cast %32 : vector<1x8x16xbf16> to vector<8x16xbf16>
    %c0_18 = arith.constant 0 : index
    %c0_19 = arith.constant 0 : index
    %c80 = arith.constant 80 : index
    %34 = vector.load %arg1[%c0_18, %c0_19, %c80] : memref<1x8x96xbf16, #tpu.memory_space<vmem>>, vector<1x8x16xbf16>
    %35 = vector.shape_cast %34 : vector<1x8x16xbf16> to vector<8x16xbf16>
    %cst_20 = arith.constant dense<0.000000e+00> : vector<8x8xf32>
    %36 = tpu.matmul %31, %33, %cst_20 {dimension_numbers = #tpu.dot_dimension_numbers<[1], [1], [0], [0], [0, 0, 1, 0], [], []>} : vector<8x16xbf16>, vector<8x16xbf16>, vector<8x8xf32> -> vector<8x8xf32>
    %cst_21 = arith.constant 2.500000e-01 : f32
    %37 = vector.broadcast %cst_21 : f32 to vector<8x8xf32>
    %38 = arith.mulf %36, %37 : vector<8x8xf32>
    %cst_22 = arith.constant -1.000000e+30 : f32
    %39 = vector.broadcast %cst_22 : f32 to vector<8x8xf32>
    %40 = arith.select %2, %38, %39 : vector<8x8xi1>, vector<8x8xf32>
    %cst_23 = arith.constant dense<0xFF800000> : vector<8xf32>
    %41 = vector.multi_reduction <maximumf>, %40, %cst_23 [1] : vector<8x8xf32> to vector<8xf32>
    %42 = vector.shape_cast %41 : vector<8xf32> to vector<8x1xf32>
    %43 = vector.broadcast %42 : vector<8x1xf32> to vector<8x8xf32>
    %44 = arith.subf %40, %43 : vector<8x8xf32>
    %45 = math.exp %44 : vector<8x8xf32>
    %cst_24 = arith.constant dense<0.000000e+00> : vector<8xf32>
    %46 = vector.multi_reduction <add>, %45, %cst_24 [1] : vector<8x8xf32> to vector<8xf32>
    %47 = vector.shape_cast %46 : vector<8xf32> to vector<8x1xf32>
    %48 = tpu.reciprocal %47 {approx = true} : vector<8x1xf32> -> vector<8x1xf32>
    %49 = vector.broadcast %48 : vector<8x1xf32> to vector<8x8xf32>
    %50 = arith.mulf %45, %49 : vector<8x8xf32>
    %51 = arith.truncf %50 : vector<8x8xf32> to vector<8x8xbf16>
    %cst_25 = arith.constant dense<0.000000e+00> : vector<8x16xf32>
    %52 = tpu.matmul %51, %35, %cst_25 {dimension_numbers = #tpu.dot_dimension_numbers<[1], [0], [0], [1], [0, 0, 1, 1], [], []>} : vector<8x8xbf16>, vector<8x16xbf16>, vector<8x16xf32> -> vector<8x16xf32>
    %53 = arith.truncf %52 : vector<8x16xf32> to vector<8x16xbf16>
    %c0_26 = arith.constant 0 : index
    %c0_27 = arith.constant 0 : index
    %c16_28 = arith.constant 16 : index
    %54 = vector.load %arg2[%c0_26, %c0_27, %c16_28] : memref<1x8x32xbf16, #tpu.memory_space<vmem>>, vector<1x8x16xbf16>
    %55 = vector.shape_cast %54 : vector<1x8x16xbf16> to vector<8x16xbf16>
    %56 = vector.shape_cast %53 : vector<8x16xbf16> to vector<1x8x16xbf16>
    tpu.vector_store %arg2[%c0_26, %c0_27, %c16_28], %56 {strides = array<i32>} : memref<1x8x32xbf16, #tpu.memory_space<vmem>>, vector<1x8x16xbf16>,
    return
  }
  func.func @transform_0(%arg0: i32) -> (i32, i32, i32) {
    %c0_i32 = arith.constant 0 : i32
    %c0_i32_0 = arith.constant 0 : i32
    %c0_i32_1 = arith.constant 0 : i32
    return %arg0, %c0_i32, %c0_i32_0 : i32, i32, i32
  }
  func.func @transform_1(%arg0: i32) -> (i32, i32, i32) {
    %c0_i32 = arith.constant 0 : i32
    %c0_i32_0 = arith.constant 0 : i32
    %c0_i32_1 = arith.constant 0 : i32
    return %arg0, %c0_i32, %c0_i32_0 : i32, i32, i32
  }
}

module attributes {stable_mosaic.version = 11 : i64} {
  func.func @_linear_kernel(%arg0: i32, %arg1: i32, %arg2: i32, %arg3: memref<16x32xbf16, #tpu.memory_space<vmem>>, %arg4: memref<32x32xbf16, #tpu.memory_space<vmem>>, %arg5: memref<1x32xf32, #tpu.memory_space<vmem>>, %arg6: memref<16x32xf32, #tpu.memory_space<vmem>>, %arg7: memref<16x32xf32, #tpu.memory_space<vmem>>, %arg8: memref<16x32xf32, #tpu.memory_space<vmem>>) attributes {dimension_semantics = [#tpu.dimension_semantics<parallel>, #tpu.dimension_semantics<parallel>, #tpu.dimension_semantics<arbitrary>], iteration_bounds = array<i64: 1, 1, 1>, scalar_prefetch = 0 : i64, scratch_operands = 1 : i64, tpu.core_type = #tpu.core_type<tc>, window_params = [{transform_indices = @transform_0, window_bounds = array<i64: 16, 32>}, {transform_indices = @transform_1, window_bounds = array<i64: 32, 32>}, {transform_indices = @transform_2, window_bounds = array<i64: 1, 32>}, {transform_indices = @transform_3, window_bounds = array<i64: 16, 32>}, {transform_indices = @transform_4, window_bounds = array<i64: 16, 32>}]} {
    %c0_i32 = arith.constant 0 : i32
    %0 = arith.cmpi eq, %arg2, %c0_i32 : i32
    %1 = arith.extui %0 : i1 to i32
    %c0_i32_0 = arith.constant 0 : i32
    %2 = arith.cmpi ne, %1, %c0_i32_0 : i32
    scf.if %2 {
      %cst_10 = arith.constant 0.000000e+00 : f32
      %12 = vector.broadcast %cst_10 : f32 to vector<16x32xf32>
      %c0_11 = arith.constant 0 : index
      %c0_12 = arith.constant 0 : index
      %13 = vector.load %arg8[%c0_11, %c0_12] : memref<16x32xf32, #tpu.memory_space<vmem>>, vector<16x32xf32>
      tpu.vector_store %arg8[%c0_11, %c0_12], %12 {strides = array<i32>} : memref<16x32xf32, #tpu.memory_space<vmem>>, vector<16x32xf32>,
    } else {
    }
    %c0 = arith.constant 0 : index
    %c0_1 = arith.constant 0 : index
    %3 = vector.load %arg8[%c0, %c0_1] : memref<16x32xf32, #tpu.memory_space<vmem>>, vector<16x32xf32>
    %c0_2 = arith.constant 0 : index
    %c0_3 = arith.constant 0 : index
    %4 = vector.load %arg3[%c0_2, %c0_3] : memref<16x32xbf16, #tpu.memory_space<vmem>>, vector<16x32xbf16>
    %c0_4 = arith.constant 0 : index
    %c0_5 = arith.constant 0 : index
    %5 = vector.load %arg4[%c0_4, %c0_5] : memref<32x32xbf16, #tpu.memory_space<vmem>>, vector<32x32xbf16>
    %cst = arith.constant dense<0.000000e+00> : vector<16x32xf32>
    %6 = tpu.matmul %4, %5, %cst {dimension_numbers = #tpu.dot_dimension_numbers<[1], [0], [0], [1], [0, 0, 1, 1], [], []>} : vector<16x32xbf16>, vector<32x32xbf16>, vector<16x32xf32> -> vector<16x32xf32>
    %7 = arith.addf %3, %6 : vector<16x32xf32>
    %c0_6 = arith.constant 0 : index
    %c0_7 = arith.constant 0 : index
    %8 = vector.load %arg8[%c0_6, %c0_7] : memref<16x32xf32, #tpu.memory_space<vmem>>, vector<16x32xf32>
    tpu.vector_store %arg8[%c0_6, %c0_7], %7 {strides = array<i32>} : memref<16x32xf32, #tpu.memory_space<vmem>>, vector<16x32xf32>,
    %c0_i32_8 = arith.constant 0 : i32
    %9 = arith.cmpi eq, %arg2, %c0_i32_8 : i32
    %10 = arith.extui %9 : i1 to i32
    %c0_i32_9 = arith.constant 0 : i32
    %11 = arith.cmpi ne, %10, %c0_i32_9 : i32
    scf.if %11 {
      %c0_10 = arith.constant 0 : index
      %c0_11 = arith.constant 0 : index
      %12 = vector.load %arg8[%c0_10, %c0_11] : memref<16x32xf32, #tpu.memory_space<vmem>>, vector<16x32xf32>
      %c0_12 = arith.constant 0 : index
      %c0_13 = arith.constant 0 : index
      %13 = vector.load %arg5[%c0_12, %c0_13] : memref<1x32xf32, #tpu.memory_space<vmem>>, vector<1x32xf32>
      %14 = vector.broadcast %13 : vector<1x32xf32> to vector<16x32xf32>
      %15 = arith.addf %12, %14 : vector<16x32xf32>
      %c0_14 = arith.constant 0 : index
      %c0_15 = arith.constant 0 : index
      %16 = vector.load %arg6[%c0_14, %c0_15] : memref<16x32xf32, #tpu.memory_space<vmem>>, vector<16x32xf32>
      %17 = arith.addf %15, %16 : vector<16x32xf32>
      %c0_16 = arith.constant 0 : index
      %c0_17 = arith.constant 0 : index
      %18 = vector.load %arg7[%c0_16, %c0_17] : memref<16x32xf32, #tpu.memory_space<vmem>>, vector<16x32xf32>
      tpu.vector_store %arg7[%c0_16, %c0_17], %17 {strides = array<i32>} : memref<16x32xf32, #tpu.memory_space<vmem>>, vector<16x32xf32>,
    } else {
    }
    return
  }
  func.func @transform_0(%arg0: i32, %arg1: i32, %arg2: i32) -> (i32, i32) {
    %c0_i32 = arith.constant 0 : i32
    return %arg0, %arg2 : i32, i32
  }
  func.func @transform_1(%arg0: i32, %arg1: i32, %arg2: i32) -> (i32, i32) {
    %c0_i32 = arith.constant 0 : i32
    return %arg2, %arg1 : i32, i32
  }
  func.func @transform_2(%arg0: i32, %arg1: i32, %arg2: i32) -> (i32, i32) {
    %c0_i32 = arith.constant 0 : i32
    %c0_i32_0 = arith.constant 0 : i32
    return %c0_i32, %arg1 : i32, i32
  }
  func.func @transform_3(%arg0: i32, %arg1: i32, %arg2: i32) -> (i32, i32) {
    %c0_i32 = arith.constant 0 : i32
    return %arg0, %arg1 : i32, i32
  }
  func.func @transform_4(%arg0: i32, %arg1: i32, %arg2: i32) -> (i32, i32) {
    %c0_i32 = arith.constant 0 : i32
    return %arg0, %arg1 : i32, i32
  }
}

module attributes {stable_mosaic.version = 11 : i64} {
  func.func @_linear_kernel(%arg0: i32, %arg1: i32, %arg2: i32, %arg3: memref<16x32xbf16, #tpu.memory_space<vmem>>, %arg4: memref<32x128xbf16, #tpu.memory_space<vmem>>, %arg5: memref<1x128xf32, #tpu.memory_space<vmem>>, %arg6: memref<16x128xbf16, #tpu.memory_space<vmem>>, %arg7: memref<16x128xf32, #tpu.memory_space<vmem>>) attributes {dimension_semantics = [#tpu.dimension_semantics<parallel>, #tpu.dimension_semantics<parallel>, #tpu.dimension_semantics<arbitrary>], iteration_bounds = array<i64: 1, 1, 1>, scalar_prefetch = 0 : i64, scratch_operands = 1 : i64, tpu.core_type = #tpu.core_type<tc>, window_params = [{transform_indices = @transform_0, window_bounds = array<i64: 16, 32>}, {transform_indices = @transform_1, window_bounds = array<i64: 32, 128>}, {transform_indices = @transform_2, window_bounds = array<i64: 1, 128>}, {transform_indices = @transform_3, window_bounds = array<i64: 16, 128>}]} {
    %c0_i32 = arith.constant 0 : i32
    %0 = arith.cmpi eq, %arg2, %c0_i32 : i32
    %1 = arith.extui %0 : i1 to i32
    %c0_i32_0 = arith.constant 0 : i32
    %2 = arith.cmpi ne, %1, %c0_i32_0 : i32
    scf.if %2 {
      %cst_10 = arith.constant 0.000000e+00 : f32
      %12 = vector.broadcast %cst_10 : f32 to vector<16x128xf32>
      %c0_11 = arith.constant 0 : index
      %c0_12 = arith.constant 0 : index
      %13 = vector.load %arg7[%c0_11, %c0_12] : memref<16x128xf32, #tpu.memory_space<vmem>>, vector<16x128xf32>
      tpu.vector_store %arg7[%c0_11, %c0_12], %12 {strides = array<i32>} : memref<16x128xf32, #tpu.memory_space<vmem>>, vector<16x128xf32>,
    } else {
    }
    %c0 = arith.constant 0 : index
    %c0_1 = arith.constant 0 : index
    %3 = vector.load %arg7[%c0, %c0_1] : memref<16x128xf32, #tpu.memory_space<vmem>>, vector<16x128xf32>
    %c0_2 = arith.constant 0 : index
    %c0_3 = arith.constant 0 : index
    %4 = vector.load %arg3[%c0_2, %c0_3] : memref<16x32xbf16, #tpu.memory_space<vmem>>, vector<16x32xbf16>
    %c0_4 = arith.constant 0 : index
    %c0_5 = arith.constant 0 : index
    %5 = vector.load %arg4[%c0_4, %c0_5] : memref<32x128xbf16, #tpu.memory_space<vmem>>, vector<32x128xbf16>
    %cst = arith.constant dense<0.000000e+00> : vector<16x128xf32>
    %6 = tpu.matmul %4, %5, %cst {dimension_numbers = #tpu.dot_dimension_numbers<[1], [0], [0], [1], [0, 0, 1, 1], [], []>} : vector<16x32xbf16>, vector<32x128xbf16>, vector<16x128xf32> -> vector<16x128xf32>
    %7 = arith.addf %3, %6 : vector<16x128xf32>
    %c0_6 = arith.constant 0 : index
    %c0_7 = arith.constant 0 : index
    %8 = vector.load %arg7[%c0_6, %c0_7] : memref<16x128xf32, #tpu.memory_space<vmem>>, vector<16x128xf32>
    tpu.vector_store %arg7[%c0_6, %c0_7], %7 {strides = array<i32>} : memref<16x128xf32, #tpu.memory_space<vmem>>, vector<16x128xf32>,
    %c0_i32_8 = arith.constant 0 : i32
    %9 = arith.cmpi eq, %arg2, %c0_i32_8 : i32
    %10 = arith.extui %9 : i1 to i32
    %c0_i32_9 = arith.constant 0 : i32
    %11 = arith.cmpi ne, %10, %c0_i32_9 : i32
    scf.if %11 {
      %c0_10 = arith.constant 0 : index
      %c0_11 = arith.constant 0 : index
      %12 = vector.load %arg7[%c0_10, %c0_11] : memref<16x128xf32, #tpu.memory_space<vmem>>, vector<16x128xf32>
      %c0_12 = arith.constant 0 : index
      %c0_13 = arith.constant 0 : index
      %13 = vector.load %arg5[%c0_12, %c0_13] : memref<1x128xf32, #tpu.memory_space<vmem>>, vector<1x128xf32>
      %14 = vector.broadcast %13 : vector<1x128xf32> to vector<16x128xf32>
      %15 = arith.addf %12, %14 : vector<16x128xf32>
      %cst_14 = arith.constant 5.000000e-01 : f32
      %16 = vector.broadcast %cst_14 : f32 to vector<16x128xf32>
      %17 = arith.mulf %16, %15 : vector<16x128xf32>
      %cst_15 = arith.constant 0.707106769 : f32
      %18 = vector.broadcast %cst_15 : f32 to vector<16x128xf32>
      %19 = arith.mulf %15, %18 : vector<16x128xf32>
      %20 = math.erf %19 : vector<16x128xf32>
      %cst_16 = arith.constant 1.000000e+00 : f32
      %21 = vector.broadcast %cst_16 : f32 to vector<16x128xf32>
      %22 = arith.addf %21, %20 : vector<16x128xf32>
      %23 = arith.mulf %17, %22 : vector<16x128xf32>
      %24 = arith.truncf %23 : vector<16x128xf32> to vector<16x128xbf16>
      %c0_17 = arith.constant 0 : index
      %c0_18 = arith.constant 0 : index
      %25 = vector.load %arg6[%c0_17, %c0_18] : memref<16x128xbf16, #tpu.memory_space<vmem>>, vector<16x128xbf16>
      tpu.vector_store %arg6[%c0_17, %c0_18], %24 {strides = array<i32>} : memref<16x128xbf16, #tpu.memory_space<vmem>>, vector<16x128xbf16>,
    } else {
    }
    return
  }
  func.func @transform_0(%arg0: i32, %arg1: i32, %arg2: i32) -> (i32, i32) {
    %c0_i32 = arith.constant 0 : i32
    return %arg0, %arg2 : i32, i32
  }
  func.func @transform_1(%arg0: i32, %arg1: i32, %arg2: i32) -> (i32, i32) {
    %c0_i32 = arith.constant 0 : i32
    return %arg2, %arg1 : i32, i32
  }
  func.func @transform_2(%arg0: i32, %arg1: i32, %arg2: i32) -> (i32, i32) {
    %c0_i32 = arith.constant 0 : i32
    %c0_i32_0 = arith.constant 0 : i32
    return %c0_i32, %arg1 : i32, i32
  }
  func.func @transform_3(%arg0: i32, %arg1: i32, %arg2: i32) -> (i32, i32) {
    %c0_i32 = arith.constant 0 : i32
    return %arg0, %arg1 : i32, i32
  }
}

module attributes {stable_mosaic.version = 11 : i64} {
  func.func @_linear_kernel(%arg0: i32, %arg1: i32, %arg2: i32, %arg3: memref<16x128xbf16, #tpu.memory_space<vmem>>, %arg4: memref<128x32xbf16, #tpu.memory_space<vmem>>, %arg5: memref<1x32xf32, #tpu.memory_space<vmem>>, %arg6: memref<16x32xf32, #tpu.memory_space<vmem>>, %arg7: memref<16x32xf32, #tpu.memory_space<vmem>>, %arg8: memref<16x32xf32, #tpu.memory_space<vmem>>) attributes {dimension_semantics = [#tpu.dimension_semantics<parallel>, #tpu.dimension_semantics<parallel>, #tpu.dimension_semantics<arbitrary>], iteration_bounds = array<i64: 1, 1, 1>, scalar_prefetch = 0 : i64, scratch_operands = 1 : i64, tpu.core_type = #tpu.core_type<tc>, window_params = [{transform_indices = @transform_0, window_bounds = array<i64: 16, 128>}, {transform_indices = @transform_1, window_bounds = array<i64: 128, 32>}, {transform_indices = @transform_2, window_bounds = array<i64: 1, 32>}, {transform_indices = @transform_3, window_bounds = array<i64: 16, 32>}, {transform_indices = @transform_4, window_bounds = array<i64: 16, 32>}]} {
    %c0_i32 = arith.constant 0 : i32
    %0 = arith.cmpi eq, %arg2, %c0_i32 : i32
    %1 = arith.extui %0 : i1 to i32
    %c0_i32_0 = arith.constant 0 : i32
    %2 = arith.cmpi ne, %1, %c0_i32_0 : i32
    scf.if %2 {
      %cst_10 = arith.constant 0.000000e+00 : f32
      %12 = vector.broadcast %cst_10 : f32 to vector<16x32xf32>
      %c0_11 = arith.constant 0 : index
      %c0_12 = arith.constant 0 : index
      %13 = vector.load %arg8[%c0_11, %c0_12] : memref<16x32xf32, #tpu.memory_space<vmem>>, vector<16x32xf32>
      tpu.vector_store %arg8[%c0_11, %c0_12], %12 {strides = array<i32>} : memref<16x32xf32, #tpu.memory_space<vmem>>, vector<16x32xf32>,
    } else {
    }
    %c0 = arith.constant 0 : index
    %c0_1 = arith.constant 0 : index
    %3 = vector.load %arg8[%c0, %c0_1] : memref<16x32xf32, #tpu.memory_space<vmem>>, vector<16x32xf32>
    %c0_2 = arith.constant 0 : index
    %c0_3 = arith.constant 0 : index
    %4 = vector.load %arg3[%c0_2, %c0_3] : memref<16x128xbf16, #tpu.memory_space<vmem>>, vector<16x128xbf16>
    %c0_4 = arith.constant 0 : index
    %c0_5 = arith.constant 0 : index
    %5 = vector.load %arg4[%c0_4, %c0_5] : memref<128x32xbf16, #tpu.memory_space<vmem>>, vector<128x32xbf16>
    %cst = arith.constant dense<0.000000e+00> : vector<16x32xf32>
    %6 = tpu.matmul %4, %5, %cst {dimension_numbers = #tpu.dot_dimension_numbers<[1], [0], [0], [1], [0, 0, 1, 1], [], []>} : vector<16x128xbf16>, vector<128x32xbf16>, vector<16x32xf32> -> vector<16x32xf32>
    %7 = arith.addf %3, %6 : vector<16x32xf32>
    %c0_6 = arith.constant 0 : index
    %c0_7 = arith.constant 0 : index
    %8 = vector.load %arg8[%c0_6, %c0_7] : memref<16x32xf32, #tpu.memory_space<vmem>>, vector<16x32xf32>
    tpu.vector_store %arg8[%c0_6, %c0_7], %7 {strides = array<i32>} : memref<16x32xf32, #tpu.memory_space<vmem>>, vector<16x32xf32>,
    %c0_i32_8 = arith.constant 0 : i32
    %9 = arith.cmpi eq, %arg2, %c0_i32_8 : i32
    %10 = arith.extui %9 : i1 to i32
    %c0_i32_9 = arith.constant 0 : i32
    %11 = arith.cmpi ne, %10, %c0_i32_9 : i32
    scf.if %11 {
      %c0_10 = arith.constant 0 : index
      %c0_11 = arith.constant 0 : index
      %12 = vector.load %arg8[%c0_10, %c0_11] : memref<16x32xf32, #tpu.memory_space<vmem>>, vector<16x32xf32>
      %c0_12 = arith.constant 0 : index
      %c0_13 = arith.constant 0 : index
      %13 = vector.load %arg5[%c0_12, %c0_13] : memref<1x32xf32, #tpu.memory_space<vmem>>, vector<1x32xf32>
      %14 = vector.broadcast %13 : vector<1x32xf32> to vector<16x32xf32>
      %15 = arith.addf %12, %14 : vector<16x32xf32>
      %c0_14 = arith.constant 0 : index
      %c0_15 = arith.constant 0 : index
      %16 = vector.load %arg6[%c0_14, %c0_15] : memref<16x32xf32, #tpu.memory_space<vmem>>, vector<16x32xf32>
      %17 = arith.addf %15, %16 : vector<16x32xf32>
      %c0_16 = arith.constant 0 : index
      %c0_17 = arith.constant 0 : index
      %18 = vector.load %arg7[%c0_16, %c0_17] : memref<16x32xf32, #tpu.memory_space<vmem>>, vector<16x32xf32>
      tpu.vector_store %arg7[%c0_16, %c0_17], %17 {strides = array<i32>} : memref<16x32xf32, #tpu.memory_space<vmem>>, vector<16x32xf32>,
    } else {
    }
    return
  }
  func.func @transform_0(%arg0: i32, %arg1: i32, %arg2: i32) -> (i32, i32) {
    %c0_i32 = arith.constant 0 : i32
    return %arg0, %arg2 : i32, i32
  }
  func.func @transform_1(%arg0: i32, %arg1: i32, %arg2: i32) -> (i32, i32) {
    %c0_i32 = arith.constant 0 : i32
    return %arg2, %arg1 : i32, i32
  }
  func.func @transform_2(%arg0: i32, %arg1: i32, %arg2: i32) -> (i32, i32) {
    %c0_i32 = arith.constant 0 : i32
    %c0_i32_0 = arith.constant 0 : i32
    return %c0_i32, %arg1 : i32, i32
  }
  func.func @transform_3(%arg0: i32, %arg1: i32, %arg2: i32) -> (i32, i32) {
    %c0_i32 = arith.constant 0 : i32
    return %arg0, %arg1 : i32, i32
  }
  func.func @transform_4(%arg0: i32, %arg1: i32, %arg2: i32) -> (i32, i32) {
    %c0_i32 = arith.constant 0 : i32
    return %arg0, %arg1 : i32, i32
  }
}

module attributes {stable_mosaic.version = 11 : i64} {
  func.func @_layernorm_kernel(%arg0: i32, %arg1: memref<16x32xf32, #tpu.memory_space<vmem>>, %arg2: memref<1x32xf32, #tpu.memory_space<vmem>>, %arg3: memref<1x32xf32, #tpu.memory_space<vmem>>, %arg4: memref<16x32xf32, #tpu.memory_space<vmem>>) attributes {dimension_semantics = [#tpu.dimension_semantics<parallel>], iteration_bounds = array<i64: 1>, scalar_prefetch = 0 : i64, scratch_operands = 0 : i64, tpu.core_type = #tpu.core_type<tc>, window_params = [{transform_indices = @transform_0, window_bounds = array<i64: 16, 32>}, {pipeline_mode = #tpu.pipeline_mode<synchronous>, transform_indices = @transform_1, window_bounds = array<i64: 1, 32>}, {pipeline_mode = #tpu.pipeline_mode<synchronous>, transform_indices = @transform_2, window_bounds = array<i64: 1, 32>}, {transform_indices = @transform_3, window_bounds = array<i64: 16, 32>}]} {
    %c0 = arith.constant 0 : index
    %c0_0 = arith.constant 0 : index
    %0 = vector.load %arg1[%c0, %c0_0] : memref<16x32xf32, #tpu.memory_space<vmem>>, vector<16x32xf32>
    %cst = arith.constant dense<0.000000e+00> : vector<16xf32>
    %1 = vector.multi_reduction <add>, %0, %cst [1] : vector<16x32xf32> to vector<16xf32>
    %2 = vector.shape_cast %1 : vector<16xf32> to vector<16x1xf32>
    %cst_1 = arith.constant 3.200000e+01 : f32
    %3 = vector.broadcast %cst_1 : f32 to vector<16x1xf32>
    %4 = arith.divf %2, %3 : vector<16x1xf32>
    %5 = vector.broadcast %4 : vector<16x1xf32> to vector<16x32xf32>
    %6 = arith.subf %0, %5 : vector<16x32xf32>
    %7 = arith.mulf %6, %6 : vector<16x32xf32>
    %cst_2 = arith.constant dense<0.000000e+00> : vector<16xf32>
    %8 = vector.multi_reduction <add>, %7, %cst_2 [1] : vector<16x32xf32> to vector<16xf32>
    %9 = vector.shape_cast %8 : vector<16xf32> to vector<16x1xf32>
    %cst_3 = arith.constant 3.200000e+01 : f32
    %10 = vector.broadcast %cst_3 : f32 to vector<16x1xf32>
    %11 = arith.divf %9, %10 : vector<16x1xf32>
    %12 = vector.broadcast %4 : vector<16x1xf32> to vector<16x32xf32>
    %13 = arith.subf %0, %12 : vector<16x32xf32>
    %cst_4 = arith.constant 9.99999974E-6 : f32
    %14 = vector.broadcast %cst_4 : f32 to vector<16x1xf32>
    %15 = arith.addf %11, %14 : vector<16x1xf32>
    %16 = math.rsqrt %15 : vector<16x1xf32>
    %17 = vector.broadcast %16 : vector<16x1xf32> to vector<16x32xf32>
    %18 = arith.mulf %13, %17 : vector<16x32xf32>
    %c0_5 = arith.constant 0 : index
    %c0_6 = arith.constant 0 : index
    %19 = vector.load %arg2[%c0_5, %c0_6] : memref<1x32xf32, #tpu.memory_space<vmem>>, vector<1x32xf32>
    %20 = vector.broadcast %19 : vector<1x32xf32> to vector<16x32xf32>
    %21 = arith.mulf %18, %20 : vector<16x32xf32>
    %c0_7 = arith.constant 0 : index
    %c0_8 = arith.constant 0 : index
    %22 = vector.load %arg3[%c0_7, %c0_8] : memref<1x32xf32, #tpu.memory_space<vmem>>, vector<1x32xf32>
    %23 = vector.broadcast %22 : vector<1x32xf32> to vector<16x32xf32>
    %24 = arith.addf %21, %23 : vector<16x32xf32>
    %c0_9 = arith.constant 0 : index
    %c0_10 = arith.constant 0 : index
    %25 = vector.load %arg4[%c0_9, %c0_10] : memref<16x32xf32, #tpu.memory_space<vmem>>, vector<16x32xf32>
    tpu.vector_store %arg4[%c0_9, %c0_10], %24 {strides = array<i32>} : memref<16x32xf32, #tpu.memory_space<vmem>>, vector<16x32xf32>,
    return
  }
  func.func @transform_0(%arg0: i32) -> (i32, i32) {
    %c0_i32 = arith.constant 0 : i32
    %c0_i32_0 = arith.constant 0 : i32
    return %arg0, %c0_i32 : i32, i32
  }
  func.func @transform_1(%arg0: i32) -> (i32, i32) {
    %c0_i32 = arith.constant 0 : i32
    %c0_i32_0 = arith.constant 0 : i32
    %c0_i32_1 = arith.constant 0 : i32
    return %c0_i32, %c0_i32_0 : i32, i32
  }
  func.func @transform_2(%arg0: i32) -> (i32, i32) {
    %c0_i32 = arith.constant 0 : i32
    %c0_i32_0 = arith.constant 0 : i32
    %c0_i32_1 = arith.constant 0 : i32
    return %c0_i32, %c0_i32_0 : i32, i32
  }
  func.func @transform_3(%arg0: i32) -> (i32, i32) {
    %c0_i32 = arith.constant 0 : i32
    %c0_i32_0 = arith.constant 0 : i32
    return %arg0, %c0_i32 : i32, i32
  }
}

</mosaic_0001>

<llo_original>
// kernel: clip_forward.39
$region0: #{clip_forward.39}
  #allocation0 [shape = 'u32[]', space=smem, size = 0x4, offset = 0x4, fixed_abs, tag = 'smem constant byte address 0x4 - core index']
  #allocation1 [shape = 'u32[72,128]{1,0:T(1,128)}', space=vmem, size = 0x9000, scoped, tag = 'internal scratch']
  #allocation2 [shape = 'f32[10,96]{1,0:T(8,128)}', space=vmem, size = 0x2000, scoped, tag = 'scratch operand']
  %s0 = inlined_call_operand.vmem [shape: bf16[10,32], index: 0, kind: input, shape index: {}]
  %s1 = inlined_call_operand.vmem [shape: bf16[32,96], index: 1, kind: input, shape index: {}]
  %s2 = inlined_call_operand.vmem [shape: f32[1,96], index: 2, kind: input, shape index: {}]
  %s3 = inlined_call_operand.vmem [shape: bf16[10,96], index: 3, kind: output, shape index: {}]
  %s4 = sld [smem:[#allocation0]]
  $region30: #{clip_forward.39} parent=0
    _
  %s6 = ssub.s32 1, %s4
  %s7 = scalar_select 0, %s6, %s4
  // Predicated region
  $region2: #{clip_forward.39} parent=0 // pred_check
    _
  $region3: #{clip_forward.39} parent=0 // pred_check_branch
    %9 = sbr.rel (0) target = $region5
  $region4: #{clip_forward.39} parent=0 // pred_region
    _
  $region5: #{clip_forward.39} parent=0 // pred_fallthru
    _
  // Predicated region
  $region6: #{clip_forward.39} parent=0 // pred_check
    _
  $region7: #{clip_forward.39} parent=0 // pred_check_branch
    %11 = sbr.rel (0) target = $region9
  $region8: #{clip_forward.39} parent=0 // pred_region
    _
  $region9: #{clip_forward.39} parent=0 // pred_fallthru
    _
  // Predicated region
  $region10: #{clip_forward.39} parent=0 // pred_check
    _
  $region11: #{clip_forward.39} parent=0 // pred_check_branch
    %13 = sbr.rel (0) target = $region13
  $region12: #{clip_forward.39} parent=0 // pred_region
    _
  $region13: #{clip_forward.39} parent=0 // pred_fallthru
    _
  %p15 = scmp.eq.s32.totalorder 0, 0
  // Predicated region
  $region14: #{clip_forward.39} parent=0 // pred_check
    %p16 = pneg %p15
  $region15: #{clip_forward.39} parent=0 // pred_check_branch
    %18 = sbr.rel (%p16) target = $region17
  $region16: #{clip_forward.39} parent=0 // pred_region
    %vm19 = vcmask 785408
    %20 = vst.msk [vmem:[#allocation2] sm:$0xff] %vm19, 0.0
    %vm21 = vcmask 779264
    %22 = vst.msk [vmem:[#allocation2 + $0x8] sm:$0x3] %vm21, 0.0
  $region17: #{clip_forward.39} parent=0 // pred_fallthru
    _
  %v23 = vld [vmem:[#allocation2] sm:$0xff]
  %v24 = vld [vmem:[#allocation2 + $0x8] sm:$0x3]
  %v25 = vld [vmem:[%s0] sm:$0xf]
  %v26 = vld [vmem:[%s0 + $0x4] sm:$0x1]
  %v27 = vld [vmem:[%s1] sm:$0xf]
  %v28 = vld [vmem:[%s1 + $0x4] sm:$0xf]
  %v29 = vld [vmem:[%s1 + $0x8] sm:$0xf]
  %v30 = vld [vmem:[%s1 + $0xc] sm:$0xf]
  %v33 = vunpack.c.l.b16 %v25
  %v34 = vunpack.c.l.b16 %v26
  %v35 = vpack.c.b16 %v34, %v33
  %v40 = vunpack.c.l.b16 %v27
  %v41 = vunpack.c.l.b16 %v28
  %v42 = vunpack.c.l.b16 %v29
  %v43 = vunpack.c.l.b16 %v30
  %v44 = vpack.c.b16 %v41, %v40
  %v45 = vpack.c.b16 %v43, %v42
  %vm48 = vcmask 261120
  %v50 = vsel %vm48, %v35, 0
  %52 = vmatpush.bf16.msra.mxu0 0
  %53 = vmatpush.bf16.msra.mxu0 0
  %54 = vmatpush.bf16.msra.mxu0 0
  %55 = vmatpush.bf16.msra.mxu0 0
  %56 = vmatpush.bf16.msra.mxu0 0
  %57 = vmatpush.bf16.msra.mxu0 0
  %58 = vmatpush.bf16.msra.mxu0 %v45
  %59 = vmatpush.bf16.msra.mxu0 %v44
  %60 = vmatmul.bf16.gmra.mxu0 %v50
  %v61 = vpop.f32.mrf.mxu0
  %v62 = vadd.f32 0.0, %v61
  %v63 = vpop.f32.mrf.mxu0
  %v64 = vadd.f32 0.0, %v63
  %65 = vdwg.mxu0
  %v66 = vadd.f32 %v23, %v62
  %v67 = vadd.f32 %v24, %v64
  %vm68 = vcmask 785408
  %69 = vst.msk [vmem:[#allocation2] sm:$0xff] %vm68, %v66
  %vm70 = vcmask 779264
  %71 = vst.msk [vmem:[#allocation2 + $0x8] sm:$0x3] %vm70, %v67
  // Predicated region
  $region18: #{clip_forward.39} parent=0 // pred_check
    %p72 = pneg %p15
  $region19: #{clip_forward.39} parent=0 // pred_check_branch
    %74 = sbr.rel (%p72) target = $region21
  $region20: #{clip_forward.39} parent=0 // pred_region
    %v75 = vld [vmem:[#allocation2] sm:$0xff]
    %v76 = vld [vmem:[#allocation2 + $0x8] sm:$0x3]
    %v77 = vld [vmem:[%s2] sm:$0x1]
    %v79 = vperm.slane %v77, 0
    %v81 = vadd.f32 %v75, %v79
    %v82 = vadd.f32 %v76, %v79
    %v83 = vpack.c.bf16 %v81, %v81
    %v84 = vpack.c.bf16 %v82, %v82
    %vm85 = vcmask 781312
    %86 = vst.msk [vmem:[%s3] sm:$0xf] %vm85, %v83
    %vm87 = vcmask 778240
    %88 = vst.msk [vmem:[%s3 + $0x4] sm:$0x1] %vm87, %v84
  $region21: #{clip_forward.39} parent=0 // pred_fallthru
    _
  // Predicated region
  $region22: #{clip_forward.39} parent=0 // pred_check
    _
  $region23: #{clip_forward.39} parent=0 // pred_check_branch
    %90 = sbr.rel (0) target = $region25
  $region24: #{clip_forward.39} parent=0 // pred_region
    _
  $region25: #{clip_forward.39} parent=0 // pred_fallthru
    _
  // Predicated region
  $region26: #{clip_forward.39} parent=0 // pred_check
    _
  $region27: #{clip_forward.39} parent=0 // pred_check_branch
    %92 = sbr.rel (0) target = $region29
  $region28: #{clip_forward.39} parent=0 // pred_region
    _
  $region29: #{clip_forward.39} parent=0 // pred_fallthru
    _

// kernel: clip_forward.38
$region0: #{clip_forward.38}
  #allocation0 [shape = 'u32[]', space=smem, size = 0x4, offset = 0x4, fixed_abs, tag = 'smem constant byte address 0x4 - core index']
  #allocation1 [shape = 'u32[72,128]{1,0:T(1,128)}', space=vmem, size = 0x9000, scoped, tag = 'internal scratch']
  %s0 = inlined_call_operand.vmem [shape: f32[10,32], index: 0, kind: input, shape index: {}]
  %s1 = inlined_call_operand.vmem [shape: f32[1,32], index: 1, kind: input, shape index: {}]
  %s2 = inlined_call_operand.vmem [shape: f32[1,32], index: 2, kind: input, shape index: {}]
  %s3 = inlined_call_operand.vmem [shape: bf16[10,32], index: 3, kind: output, shape index: {}]
  %s4 = sld [smem:[#allocation0]]
  $region22: #{clip_forward.38} parent=0
    _
  %s6 = ssub.s32 1, %s4
  %s7 = scalar_select 0, %s6, %s4
  // Predicated region
  $region2: #{clip_forward.38} parent=0 // pred_check
    _
  $region3: #{clip_forward.38} parent=0 // pred_check_branch
    %9 = sbr.rel (0) target = $region5
  $region4: #{clip_forward.38} parent=0 // pred_region
    _
  $region5: #{clip_forward.38} parent=0 // pred_fallthru
    _
  // Predicated region
  $region6: #{clip_forward.38} parent=0 // pred_check
    _
  $region7: #{clip_forward.38} parent=0 // pred_check_branch
    %11 = sbr.rel (0) target = $region9
  $region8: #{clip_forward.38} parent=0 // pred_region
    _
  $region9: #{clip_forward.38} parent=0 // pred_fallthru
    _
  // Predicated region
  $region10: #{clip_forward.38} parent=0 // pred_check
    _
  $region11: #{clip_forward.38} parent=0 // pred_check_branch
    %13 = sbr.rel (0) target = $region13
  $region12: #{clip_forward.38} parent=0 // pred_region
    _
  $region13: #{clip_forward.38} parent=0 // pred_fallthru
    _
  %v14 = vld [vmem:[%s0] sm:$0xff]
  %v15 = vld [vmem:[%s0 + $0x8] sm:$0x3]
  %vm16 = vcmask 261120
  %v17 = vsel %vm16, %v14, 0.0
  %18 = vadd.xlane.f32.xlu0 %v17
  %v19 = vpop.xlane.xlu0 %18
  %vm20 = vcmask 254976
  %v21 = vsel %vm20, %v15, 0.0
  %22 = vadd.xlane.f32.xlu0 %v21
  %v23 = vpop.xlane.xlu0 %22
  %v24 = vrcp.pop 32.0
  %v25 = vmul.f32 32.0, %v24
  %v26 = vsub.f32 1.0, %v25
  %v27 = vmul.f32 %v24, %v26
  %v28 = vadd.f32 %v24, %v27
  %vm29 = vweird.f32 %v24
  %v30 = vsel %vm29, %v24, %v28
  %v31 = vmul.f32 %v19, %v30
  %v32 = vmul.f32 %v23, %v30
  %v33 = vsub.f32 %v14, %v31
  %v34 = vsub.f32 %v15, %v32
  %v35 = vmul.f32 %v33, %v33
  %v36 = vmul.f32 %v34, %v34
  %v37 = vsel %vm16, %v35, 0.0
  %38 = vadd.xlane.f32.xlu0 %v37
  %v39 = vpop.xlane.xlu0 %38
  %v40 = vsel %vm20, %v36, 0.0
  %41 = vadd.xlane.f32.xlu0 %v40
  %v42 = vpop.xlane.xlu0 %41
  %v43 = vmul.f32 %v39, %v30
  %v44 = vmul.f32 %v42, %v30
  %v45 = vadd.f32 %v43, 1e-05
  %v46 = vadd.f32 %v44, 1e-05
  %v47 = vrsqrt.pop %v45
  %v48 = vmul.f32 %v47, %v45
  %v49 = vmul.f32 %v48, %v47
  %v50 = vmul.f32 0.5, %v49
  %v51 = vsub.f32 1.5, %v50
  %v52 = vmul.f32 %v47, %v51
  %vm53 = vweird.f32 %v45
  %vm54 = vweird.f32 %v47
  %vm55 = vmor %vm53, %vm54
  %v56 = vsel %vm55, %v47, %v52
  %v57 = vrsqrt.pop %v46
  %v58 = vmul.f32 %v57, %v46
  %v59 = vmul.f32 %v58, %v57
  %v60 = vmul.f32 0.5, %v59
  %v61 = vsub.f32 1.5, %v60
  %v62 = vmul.f32 %v57, %v61
  %vm63 = vweird.f32 %v46
  %vm64 = vweird.f32 %v57
  %vm65 = vmor %vm63, %vm64
  %v66 = vsel %vm65, %v57, %v62
  %v67 = vmul.f32 %v33, %v56
  %v68 = vmul.f32 %v34, %v66
  %v69 = vld [vmem:[%s1] sm:$0x1]
  %v71 = vperm.slane %v69, 0
  %v73 = vmul.f32 %v67, %v71
  %v74 = vmul.f32 %v68, %v71
  %v75 = vld [vmem:[%s2] sm:$0x1]
  %v77 = vperm.slane %v75, 0
  %v79 = vadd.f32 %v73, %v77
  %v80 = vadd.f32 %v74, %v77
  %v81 = vpack.c.bf16 %v79, %v79
  %v82 = vpack.c.bf16 %v80, %v80
  %vm83 = vcmask 257024
  %84 = vst.msk [vmem:[%s3] sm:$0xf] %vm83, %v81
  %vm85 = vcmask 253952
  %86 = vst.msk [vmem:[%s3 + $0x4] sm:$0x1] %vm85, %v82
  // Predicated region
  $region14: #{clip_forward.38} parent=0 // pred_check
    _
  $region15: #{clip_forward.38} parent=0 // pred_check_branch
    %88 = sbr.rel (0) target = $region17
  $region16: #{clip_forward.38} parent=0 // pred_region
    _
  $region17: #{clip_forward.38} parent=0 // pred_fallthru
    _
  // Predicated region
  $region18: #{clip_forward.38} parent=0 // pred_check
    _
  $region19: #{clip_forward.38} parent=0 // pred_check_branch
    %90 = sbr.rel (0) target = $region21
  $region20: #{clip_forward.38} parent=0 // pred_region
    _
  $region21: #{clip_forward.38} parent=0 // pred_fallthru
    _

// kernel: clip_forward.37
$region0: #{clip_forward.37}
  #allocation0 [shape = 'u32[]', space=smem, size = 0x4, offset = 0x4, fixed_abs, tag = 'smem constant byte address 0x4 - core index']
  #allocation1 [shape = 'u32[72,128]{1,0:T(1,128)}', space=vmem, size = 0x9000, scoped, tag = 'internal scratch']
  %s0 = inlined_call_operand.vmem [shape: f32[10,32], index: 0, kind: input, shape index: {}]
  %s1 = inlined_call_operand.vmem [shape: f32[1,32], index: 1, kind: input, shape index: {}]
  %s2 = inlined_call_operand.vmem [shape: f32[1,32], index: 2, kind: input, shape index: {}]
  %s3 = inlined_call_operand.vmem [shape: f32[10,32], index: 3, kind: output, shape index: {}]
  %s4 = sld [smem:[#allocation0]]
  $region22: #{clip_forward.37} parent=0
    _
  %s6 = ssub.s32 1, %s4
  %s7 = scalar_select 0, %s6, %s4
  // Predicated region
  $region2: #{clip_forward.37} parent=0 // pred_check
    _
  $region3: #{clip_forward.37} parent=0 // pred_check_branch
    %9 = sbr.rel (0) target = $region5
  $region4: #{clip_forward.37} parent=0 // pred_region
    _
  $region5: #{clip_forward.37} parent=0 // pred_fallthru
    _
  // Predicated region
  $region6: #{clip_forward.37} parent=0 // pred_check
    _
  $region7: #{clip_forward.37} parent=0 // pred_check_branch
    %11 = sbr.rel (0) target = $region9
  $region8: #{clip_forward.37} parent=0 // pred_region
    _
  $region9: #{clip_forward.37} parent=0 // pred_fallthru
    _
  // Predicated region
  $region10: #{clip_forward.37} parent=0 // pred_check
    _
  $region11: #{clip_forward.37} parent=0 // pred_check_branch
    %13 = sbr.rel (0) target = $region13
  $region12: #{clip_forward.37} parent=0 // pred_region
    _
  $region13: #{clip_forward.37} parent=0 // pred_fallthru
    _
  %v14 = vld [vmem:[%s0] sm:$0xff]
  %v15 = vld [vmem:[%s0 + $0x8] sm:$0x3]
  %vm16 = vcmask 261120
  %v17 = vsel %vm16, %v14, 0.0
  %18 = vadd.xlane.f32.xlu0 %v17
  %v19 = vpop.xlane.xlu0 %18
  %vm20 = vcmask 254976
  %v21 = vsel %vm20, %v15, 0.0
  %22 = vadd.xlane.f32.xlu0 %v21
  %v23 = vpop.xlane.xlu0 %22
  %v24 = vrcp.pop 32.0
  %v25 = vmul.f32 32.0, %v24
  %v26 = vsub.f32 1.0, %v25
  %v27 = vmul.f32 %v24, %v26
  %v28 = vadd.f32 %v24, %v27
  %vm29 = vweird.f32 %v24
  %v30 = vsel %vm29, %v24, %v28
  %v31 = vmul.f32 %v19, %v30
  %v32 = vmul.f32 %v23, %v30
  %v33 = vsub.f32 %v14, %v31
  %v34 = vsub.f32 %v15, %v32
  %v35 = vmul.f32 %v33, %v33
  %v36 = vmul.f32 %v34, %v34
  %v37 = vsel %vm16, %v35, 0.0
  %38 = vadd.xlane.f32.xlu0 %v37
  %v39 = vpop.xlane.xlu0 %38
  %v40 = vsel %vm20, %v36, 0.0
  %41 = vadd.xlane.f32.xlu0 %v40
  %v42 = vpop.xlane.xlu0 %41
  %v43 = vmul.f32 %v39, %v30
  %v44 = vmul.f32 %v42, %v30
  %v45 = vadd.f32 %v43, 1e-05
  %v46 = vadd.f32 %v44, 1e-05
  %v47 = vrsqrt.pop %v45
  %v48 = vmul.f32 %v47, %v45
  %v49 = vmul.f32 %v48, %v47
  %v50 = vmul.f32 0.5, %v49
  %v51 = vsub.f32 1.5, %v50
  %v52 = vmul.f32 %v47, %v51
  %vm53 = vweird.f32 %v45
  %vm54 = vweird.f32 %v47
  %vm55 = vmor %vm53, %vm54
  %v56 = vsel %vm55, %v47, %v52
  %v57 = vrsqrt.pop %v46
  %v58 = vmul.f32 %v57, %v46
  %v59 = vmul.f32 %v58, %v57
  %v60 = vmul.f32 0.5, %v59
  %v61 = vsub.f32 1.5, %v60
  %v62 = vmul.f32 %v57, %v61
  %vm63 = vweird.f32 %v46
  %vm64 = vweird.f32 %v57
  %vm65 = vmor %vm63, %vm64
  %v66 = vsel %vm65, %v57, %v62
  %v67 = vmul.f32 %v33, %v56
  %v68 = vmul.f32 %v34, %v66
  %v69 = vld [vmem:[%s1] sm:$0x1]
  %v71 = vperm.slane %v69, 0
  %v73 = vmul.f32 %v67, %v71
  %v74 = vmul.f32 %v68, %v71
  %v75 = vld [vmem:[%s2] sm:$0x1]
  %v77 = vperm.slane %v75, 0
  %v79 = vadd.f32 %v73, %v77
  %v80 = vadd.f32 %v74, %v77
  %81 = vst.msk [vmem:[%s3] sm:$0xff] %vm16, %v79
  %82 = vst.msk [vmem:[%s3 + $0x8] sm:$0x3] %vm20, %v80
  // Predicated region
  $region14: #{clip_forward.37} parent=0 // pred_check
    _
  $region15: #{clip_forward.37} parent=0 // pred_check_branch
    %84 = sbr.rel (0) target = $region17
  $region16: #{clip_forward.37} parent=0 // pred_region
    _
  $region17: #{clip_forward.37} parent=0 // pred_fallthru
    _
  // Predicated region
  $region18: #{clip_forward.37} parent=0 // pred_check
    _
  $region19: #{clip_forward.37} parent=0 // pred_check_branch
    %86 = sbr.rel (0) target = $region21
  $region20: #{clip_forward.37} parent=0 // pred_region
    _
  $region21: #{clip_forward.37} parent=0 // pred_fallthru
    _

// kernel: clip_forward.36
$region0: #{clip_forward.36}
  #allocation0 [shape = 'u32[]', space=smem, size = 0x4, offset = 0x4, fixed_abs, tag = 'smem constant byte address 0x4 - core index']
  #allocation1 [shape = 'u32[72,128]{1,0:T(1,128)}', space=vmem, size = 0x9000, scoped, tag = 'internal scratch']
  #allocation2 [shape = 'f32[8,32]{1,0:T(8,128)}', space=vmem, size = 0x1000, scoped, tag = 'scratch operand']
  %s0 = inlined_call_operand.vmem [shape: bf16[8,192], index: 0, kind: input, shape index: {}]
  %s1 = inlined_call_operand.vmem [shape: bf16[192,32], index: 1, kind: input, shape index: {}]
  %s2 = inlined_call_operand.vmem [shape: bf16[8,32], index: 2, kind: output, shape index: {}]
  %s3 = sld [smem:[#allocation0]]
  $region26: #{clip_forward.36} parent=0
    _
  %s5 = ssub.s32 1, %s3
  %s6 = scalar_select 0, %s5, %s3
  // Predicated region
  $region2: #{clip_forward.36} parent=0 // pred_check
    _
  $region3: #{clip_forward.36} parent=0 // pred_check_branch
    %8 = sbr.rel (0) target = $region5
  $region4: #{clip_forward.36} parent=0 // pred_region
    _
  $region5: #{clip_forward.36} parent=0 // pred_fallthru
    _
  // Predicated region
  $region6: #{clip_forward.36} parent=0 // pred_check
    _
  $region7: #{clip_forward.36} parent=0 // pred_check_branch
    %10 = sbr.rel (0) target = $region9
  $region8: #{clip_forward.36} parent=0 // pred_region
    _
  $region9: #{clip_forward.36} parent=0 // pred_fallthru
    _
  %p12 = scmp.eq.s32.totalorder 0, 0
  // Predicated region
  $region10: #{clip_forward.36} parent=0 // pred_check
    %p13 = pneg %p12
  $region11: #{clip_forward.36} parent=0 // pred_check_branch
    %15 = sbr.rel (%p13) target = $region13
  $region12: #{clip_forward.36} parent=0 // pred_region
    %vm16 = vcmask 261120
    %17 = vst.msk [vmem:[#allocation2] sm:$0xff] %vm16, 0.0
  $region13: #{clip_forward.36} parent=0 // pred_fallthru
    _
  %v18 = vld [vmem:[#allocation2] sm:$0xff]
  %v19 = vld [vmem:[%s0] sm:$0xff]
  %v20 = vld [vmem:[%s1] sm:$0xf]
  %v21 = vld [vmem:[%s1 + $0x4] sm:$0xf]
  %v22 = vld [vmem:[%s1 + $0x8] sm:$0xf]
  %v23 = vld [vmem:[%s1 + $0xc] sm:$0xf]
  %v24 = vld [vmem:[%s1 + $0x10] sm:$0xf]
  %v25 = vld [vmem:[%s1 + $0x14] sm:$0xf]
  %v26 = vld [vmem:[%s1 + $0x18] sm:$0xf]
  %v27 = vld [vmem:[%s1 + $0x1c] sm:$0xf]
  %v28 = vld [vmem:[%s1 + $0x20] sm:$0xf]
  %v29 = vld [vmem:[%s1 + $0x24] sm:$0xf]
  %v30 = vld [vmem:[%s1 + $0x28] sm:$0xf]
  %v31 = vld [vmem:[%s1 + $0x2c] sm:$0xf]
  %v32 = vld [vmem:[%s1 + $0x30] sm:$0xf]
  %v33 = vld [vmem:[%s1 + $0x34] sm:$0xf]
  %v34 = vld [vmem:[%s1 + $0x38] sm:$0xf]
  %v35 = vld [vmem:[%s1 + $0x3c] sm:$0xf]
  %v36 = vld [vmem:[%s1 + $0x40] sm:$0xf]
  %v37 = vld [vmem:[%s1 + $0x44] sm:$0xf]
  %v38 = vld [vmem:[%s1 + $0x48] sm:$0xf]
  %v39 = vld [vmem:[%s1 + $0x4c] sm:$0xf]
  %v40 = vld [vmem:[%s1 + $0x50] sm:$0xf]
  %v41 = vld [vmem:[%s1 + $0x54] sm:$0xf]
  %v42 = vld [vmem:[%s1 + $0x58] sm:$0xf]
  %v43 = vld [vmem:[%s1 + $0x5c] sm:$0xf]
  %v45 = vunpack.c.l.b16 %v19
  %v46 = vunpack.c.h.b16 %v19
  %v47 = vpack.c.b16 %v45, %v45
  %v48 = vpack.c.b16 %v46, %v46
  %v74 = vunpack.c.l.b16 %v20
  %v75 = vunpack.c.l.b16 %v21
  %v76 = vunpack.c.l.b16 %v22
  %v77 = vunpack.c.l.b16 %v23
  %v78 = vunpack.c.l.b16 %v24
  %v79 = vunpack.c.l.b16 %v25
  %v80 = vunpack.c.l.b16 %v26
  %v81 = vunpack.c.l.b16 %v27
  %v82 = vunpack.c.l.b16 %v28
  %v83 = vunpack.c.l.b16 %v29
  %v84 = vunpack.c.l.b16 %v30
  %v85 = vunpack.c.l.b16 %v31
  %v86 = vunpack.c.l.b16 %v32
  %v87 = vunpack.c.l.b16 %v33
  %v88 = vunpack.c.l.b16 %v34
  %v89 = vunpack.c.l.b16 %v35
  %v90 = vunpack.c.l.b16 %v36
  %v91 = vunpack.c.l.b16 %v37
  %v92 = vunpack.c.l.b16 %v38
  %v93 = vunpack.c.l.b16 %v39
  %v94 = vunpack.c.l.b16 %v40
  %v95 = vunpack.c.l.b16 %v41
  %v96 = vunpack.c.l.b16 %v42
  %v97 = vunpack.c.l.b16 %v43
  %v98 = vpack.c.b16 %v75, %v74
  %v99 = vpack.c.b16 %v77, %v76
  %v100 = vpack.c.b16 %v79, %v78
  %v101 = vpack.c.b16 %v81, %v80
  %v102 = vpack.c.b16 %v83, %v82
  %v103 = vpack.c.b16 %v85, %v84
  %v104 = vpack.c.b16 %v87, %v86
  %v105 = vpack.c.b16 %v89, %v88
  %v106 = vpack.c.b16 %v91, %v90
  %v107 = vpack.c.b16 %v93, %v92
  %v108 = vpack.c.b16 %v95, %v94
  %v109 = vpack.c.b16 %v97, %v96
  %vm122 = vcmask 523264
  %v124 = vsel %vm122, %v48, 0
  %126 = vmatpush.bf16.msra.mxu0 %v105
  %127 = vmatpush.bf16.msra.mxu0 %v104
  %128 = vmatpush.bf16.msra.mxu0 %v103
  %129 = vmatpush.bf16.msra.mxu0 %v102
  %130 = vmatpush.bf16.msra.mxu0 %v101
  %131 = vmatpush.bf16.msra.mxu0 %v100
  %132 = vmatpush.bf16.msra.mxu0 %v99
  %133 = vmatpush.bf16.msra.mxu0 %v98
  %134 = vmatmul.bf16.gmra.mxu0 %v47
  %v135 = vpop.f32.mrf.mxu0
  %v136 = vadd.f32 0.0, %v135
  %v137 = vpop.f32.mrf.mxu0
  %138 = vdwg.mxu0
  %139 = vmatpush.bf16.msra.mxu0 0
  %140 = vmatpush.bf16.msra.mxu0 0
  %141 = vmatpush.bf16.msra.mxu0 0
  %142 = vmatpush.bf16.msra.mxu0 0
  %143 = vmatpush.bf16.msra.mxu0 %v109
  %144 = vmatpush.bf16.msra.mxu0 %v108
  %145 = vmatpush.bf16.msra.mxu0 %v107
  %146 = vmatpush.bf16.msra.mxu0 %v106
  %147 = vmatmul.bf16.gmra.mxu0 %v124
  %v148 = vpop.f32.mrf.mxu0
  %v149 = vadd.f32 %v136, %v148
  %v150 = vpop.f32.mrf.mxu0
  %151 = vdwg.mxu0
  %v152 = vadd.f32 %v18, %v149
  %vm153 = vcmask 261120
  %154 = vst.msk [vmem:[#allocation2] sm:$0xff] %vm153, %v152
  // Predicated region
  $region14: #{clip_forward.36} parent=0 // pred_check
    %p155 = pneg %p12
  $region15: #{clip_forward.36} parent=0 // pred_check_branch
    %157 = sbr.rel (%p155) target = $region17
  $region16: #{clip_forward.36} parent=0 // pred_region
    %v158 = vld [vmem:[#allocation2] sm:$0xff]
    %v159 = vpack.c.bf16 %v158, %v158
    %vm160 = vcmask 257024
    %161 = vst.msk [vmem:[%s2] sm:$0xf] %vm160, %v159
  $region17: #{clip_forward.36} parent=0 // pred_fallthru
    _
  // Predicated region
  $region18: #{clip_forward.36} parent=0 // pred_check
    _
  $region19: #{clip_forward.36} parent=0 // pred_check_branch
    %163 = sbr.rel (0) target = $region21
  $region20: #{clip_forward.36} parent=0 // pred_region
    _
  $region21: #{clip_forward.36} parent=0 // pred_fallthru
    _
  // Predicated region
  $region22: #{clip_forward.36} parent=0 // pred_check
    _
  $region23: #{clip_forward.36} parent=0 // pred_check_branch
    %165 = sbr.rel (0) target = $region25
  $region24: #{clip_forward.36} parent=0 // pred_region
    _
  $region25: #{clip_forward.36} parent=0 // pred_fallthru
    _

// kernel: clip_forward.41
$region0: #{clip_forward.41}
  #allocation0 [shape = 'u32[]', space=smem, size = 0x4, offset = 0x4, fixed_abs, tag = 'smem constant byte address 0x4 - core index']
  #allocation1 [shape = 'u32[72,128]{1,0:T(1,128)}', space=vmem, size = 0x9000, scoped, tag = 'internal scratch']
  #allocation2 [shape = 'f32[10,32]{1,0:T(8,128)}', space=vmem, size = 0x2000, scoped, tag = 'scratch operand']
  %s0 = inlined_call_operand.vmem [shape: bf16[10,32], index: 0, kind: input, shape index: {}]
  %s1 = inlined_call_operand.vmem [shape: bf16[32,32], index: 1, kind: input, shape index: {}]
  %s2 = inlined_call_operand.vmem [shape: f32[1,32], index: 2, kind: input, shape index: {}]
  %s3 = inlined_call_operand.vmem [shape: f32[10,32], index: 3, kind: input, shape index: {}]
  %s4 = inlined_call_operand.vmem [shape: f32[10,32], index: 4, kind: output, shape index: {}]
  %s5 = sld [smem:[#allocation0]]
  $region34: #{clip_forward.41} parent=0
    _
  %s7 = ssub.s32 1, %s5
  %s8 = scalar_select 0, %s7, %s5
  // Predicated region
  $region2: #{clip_forward.41} parent=0 // pred_check
    _
  $region3: #{clip_forward.41} parent=0 // pred_check_branch
    %10 = sbr.rel (0) target = $region5
  $region4: #{clip_forward.41} parent=0 // pred_region
    _
  $region5: #{clip_forward.41} parent=0 // pred_fallthru
    _
  // Predicated region
  $region6: #{clip_forward.41} parent=0 // pred_check
    _
  $region7: #{clip_forward.41} parent=0 // pred_check_branch
    %12 = sbr.rel (0) target = $region9
  $region8: #{clip_forward.41} parent=0 // pred_region
    _
  $region9: #{clip_forward.41} parent=0 // pred_fallthru
    _
  // Predicated region
  $region10: #{clip_forward.41} parent=0 // pred_check
    _
  $region11: #{clip_forward.41} parent=0 // pred_check_branch
    %14 = sbr.rel (0) target = $region13
  $region12: #{clip_forward.41} parent=0 // pred_region
    _
  $region13: #{clip_forward.41} parent=0 // pred_fallthru
    _
  // Predicated region
  $region14: #{clip_forward.41} parent=0 // pred_check
    _
  $region15: #{clip_forward.41} parent=0 // pred_check_branch
    %16 = sbr.rel (0) target = $region17
  $region16: #{clip_forward.41} parent=0 // pred_region
    _
  $region17: #{clip_forward.41} parent=0 // pred_fallthru
    _
  %p18 = scmp.eq.s32.totalorder 0, 0
  // Predicated region
  $region18: #{clip_forward.41} parent=0 // pred_check
    %p19 = pneg %p18
  $region19: #{clip_forward.41} parent=0 // pred_check_branch
    %21 = sbr.rel (%p19) target = $region21
  $region20: #{clip_forward.41} parent=0 // pred_region
    %vm22 = vcmask 261120
    %23 = vst.msk [vmem:[#allocation2] sm:$0xff] %vm22, 0.0
    %vm24 = vcmask 254976
    %25 = vst.msk [vmem:[#allocation2 + $0x8] sm:$0x3] %vm24, 0.0
  $region21: #{clip_forward.41} parent=0 // pred_fallthru
    _
  %v26 = vld [vmem:[#allocation2] sm:$0xff]
  %v27 = vld [vmem:[#allocation2 + $0x8] sm:$0x3]
  %v28 = vld [vmem:[%s0] sm:$0xf]
  %v29 = vld [vmem:[%s0 + $0x4] sm:$0x1]
  %v30 = vld [vmem:[%s1] sm:$0xf]
  %v31 = vld [vmem:[%s1 + $0x4] sm:$0xf]
  %v32 = vld [vmem:[%s1 + $0x8] sm:$0xf]
  %v33 = vld [vmem:[%s1 + $0xc] sm:$0xf]
  %v36 = vunpack.c.l.b16 %v28
  %v37 = vunpack.c.l.b16 %v29
  %v38 = vpack.c.b16 %v37, %v36
  %v43 = vunpack.c.l.b16 %v30
  %v44 = vunpack.c.l.b16 %v31
  %v45 = vunpack.c.l.b16 %v32
  %v46 = vunpack.c.l.b16 %v33
  %v47 = vpack.c.b16 %v44, %v43
  %v48 = vpack.c.b16 %v46, %v45
  %vm51 = vcmask 261120
  %v53 = vsel %vm51, %v38, 0
  %55 = vmatpush.bf16.msra.mxu0 0
  %56 = vmatpush.bf16.msra.mxu0 0
  %57 = vmatpush.bf16.msra.mxu0 0
  %58 = vmatpush.bf16.msra.mxu0 0
  %59 = vmatpush.bf16.msra.mxu0 0
  %60 = vmatpush.bf16.msra.mxu0 0
  %61 = vmatpush.bf16.msra.mxu0 %v48
  %62 = vmatpush.bf16.msra.mxu0 %v47
  %63 = vmatmul.bf16.gmra.mxu0 %v53
  %v64 = vpop.f32.mrf.mxu0
  %v65 = vadd.f32 0.0, %v64
  %v66 = vpop.f32.mrf.mxu0
  %v67 = vadd.f32 0.0, %v66
  %68 = vdwg.mxu0
  %v69 = vadd.f32 %v26, %v65
  %v70 = vadd.f32 %v27, %v67
  %71 = vst.msk [vmem:[#allocation2] sm:$0xff] %vm51, %v69
  %vm72 = vcmask 254976
  %73 = vst.msk [vmem:[#allocation2 + $0x8] sm:$0x3] %vm72, %v70
  // Predicated region
  $region22: #{clip_forward.41} parent=0 // pred_check
    %p74 = pneg %p18
  $region23: #{clip_forward.41} parent=0 // pred_check_branch
    %76 = sbr.rel (%p74) target = $region25
  $region24: #{clip_forward.41} parent=0 // pred_region
    %v77 = vld [vmem:[#allocation2] sm:$0xff]
    %v78 = vld [vmem:[#allocation2 + $0x8] sm:$0x3]
    %v79 = vld [vmem:[%s2] sm:$0x1]
    %v81 = vperm.slane %v79, 0
    %v83 = vadd.f32 %v77, %v81
    %v84 = vadd.f32 %v78, %v81
    %v85 = vld [vmem:[%s3] sm:$0xff]
    %v86 = vld [vmem:[%s3 + $0x8] sm:$0x3]
    %v87 = vadd.f32 %v83, %v85
    %v88 = vadd.f32 %v84, %v86
    %89 = vst.msk [vmem:[%s4] sm:$0xff] %vm51, %v87
    %90 = vst.msk [vmem:[%s4 + $0x8] sm:$0x3] %vm72, %v88
  $region25: #{clip_forward.41} parent=0 // pred_fallthru
    _
  // Predicated region
  $region26: #{clip_forward.41} parent=0 // pred_check
    _
  $region27: #{clip_forward.41} parent=0 // pred_check_branch
    %92 = sbr.rel (0) target = $region29
  $region28: #{clip_forward.41} parent=0 // pred_region
    _
  $region29: #{clip_forward.41} parent=0 // pred_fallthru
    _
  // Predicated region
  $region30: #{clip_forward.41} parent=0 // pred_check
    _
  $region31: #{clip_forward.41} parent=0 // pred_check_branch
    %94 = sbr.rel (0) target = $region33
  $region32: #{clip_forward.41} parent=0 // pred_region
    _
  $region33: #{clip_forward.41} parent=0 // pred_fallthru
    _

// kernel: clip_forward.40
$region0: #{clip_forward.40}
  #allocation0 [shape = 'u32[]', space=smem, size = 0x4, offset = 0x4, fixed_abs, tag = 'smem constant byte address 0x4 - core index']
  #allocation1 [shape = 'u32[72,128]{1,0:T(1,128)}', space=vmem, size = 0x9000, scoped, tag = 'internal scratch']
  %s0 = inlined_call_operand.vmem [shape: bf16[2,5,96], index: 0, kind: input, shape index: {}]
  %s1 = inlined_call_operand.vmem [shape: bf16[2,5,32], index: 1, kind: output, shape index: {}]
  %s2 = sld [smem:[#allocation0]]
  $region37: #{clip_forward.40} parent=0
    _
  %s4 = ssub.s32 1, %s2
  %s5 = scalar_select 0, %s4, %s2
  loop: start=0, step=1, limit=4
  $region2: #{clip_forward.40} parent=0 // loop_pre_header
    _
  $region3: #{clip_forward.40} parent=0 // loop_header
    %s7 = sphi 0, %s11
    %p8 = scmp.ge.s32.totalorder %s7, 4
    %s17 = sphi 0, %s19
    %s20 = sphi 0, %s17
    %s21 = sphi 0, %s20
    %s37 = sphi 0, %s21
    %s43 = sphi 0, %s45
    %s46 = sphi 0, %s43
    %s47 = sphi 0, %s46
    %s63 = sphi 0, %s47
  $region4: #{clip_forward.40} parent=0 // loop_header_branch
    %10 = sbr.rel (%p8) target = $region8
  $region5: #{clip_forward.40} parent=0 // loop_body
    %s12 = ssub.s32 %s7, 1
    %s13 = ssub.s32 %s7, 2
    %s14 = sadd.s32 %s7, 1
    %s15 = ssub.s32 %s7, %s14
    %p16 = scmp.eq.s32.totalorder %s15, 0
    %s18 = sadd.s32 %s17, 1
    %s19 = scalar_select %p16, %s17, %s18
    %p22 = pneg %p16
    %p23 = scmp.eq.s32.totalorder %s7, 1
    %p24 = por %p22, %p23
    %p25 = scmp.ne.s32.totalorder %s17, %s20
    %p26 = scmp.eq.s32.totalorder %s7, 0
    %p27 = por %p25, %p26
    %p28 = scmp.ne.s32.totalorder %s17, %s20
    %p29 = scmp.eq.s32.totalorder %s12, 1
    %p30 = por %p28, %p29
    %p31 = scmp.ne.s32.totalorder %s20, %s21
    %p32 = scmp.eq.s32.totalorder %s12, 0
    %p33 = por %p31, %p32
    %p34 = scmp.ne.s32.totalorder %s20, %s21
    %p35 = scmp.eq.s32.totalorder %s13, 1
    %p36 = por %p34, %p35
    %p38 = scmp.ne.s32.totalorder %s21, %s37
    %p39 = scmp.eq.s32.totalorder %s13, 0
    %p40 = por %p38, %p39
    %s41 = ssub.s32 %s7, %s14
    %p42 = scmp.eq.s32.totalorder %s41, 0
    %s44 = sadd.s32 %s43, 1
    %s45 = scalar_select %p42, %s43, %s44
    %p48 = pneg %p42
    %p49 = scmp.eq.s32.totalorder %s7, 1
    %p50 = por %p48, %p49
    %p51 = scmp.ne.s32.totalorder %s43, %s46
    %p52 = scmp.eq.s32.totalorder %s7, 0
    %p53 = por %p51, %p52
    %p54 = scmp.ne.s32.totalorder %s43, %s46
    %p55 = scmp.eq.s32.totalorder %s12, 1
    %p56 = por %p54, %p55
    %p57 = scmp.ne.s32.totalorder %s46, %s47
    %p58 = scmp.eq.s32.totalorder %s12, 0
    %p59 = por %p57, %p58
    %p60 = scmp.ne.s32.totalorder %s46, %s47
    %p61 = scmp.eq.s32.totalorder %s13, 1
    %p62 = por %p60, %p61
    %p64 = scmp.ne.s32.totalorder %s47, %s63
    %p65 = scmp.eq.s32.totalorder %s13, 0
    %p66 = por %p64, %p65
    %p67 = scmp.le.s32.totalorder 1, %s7
    %p68 = scmp.lt.s32.totalorder %s7, 3
    %p69 = pnand %p67, %p68
    %p70 = pneg %p69
    // Predicated region
    $region9: #{clip_forward.40} parent=5 // pred_check
      _
    $region10: #{clip_forward.40} parent=5 // pred_check_branch
      %72 = sbr.rel (%p69) target = $region12
    $region11: #{clip_forward.40} parent=5 // pred_region
      %s73 = ssub.s32 %s7, 1
    $region12: #{clip_forward.40} parent=5 // pred_fallthru
      _
    %p74 = scmp.lt.s32.totalorder %s7, 2
    // Predicated region
    $region13: #{clip_forward.40} parent=5 // pred_check
      %p75 = pneg %p74
    $region14: #{clip_forward.40} parent=5 // pred_check_branch
      %77 = sbr.rel (%p75) target = $region16
    $region15: #{clip_forward.40} parent=5 // pred_region
      // Predicated region
      $region17: #{clip_forward.40} parent=15 // pred_check
        %p78 = pneg %p27
      $region18: #{clip_forward.40} parent=15 // pred_check_branch
        %80 = sbr.rel (%p78) target = $region20
      $region19: #{clip_forward.40} parent=15 // pred_region
        %p81 = scmp.lt.s32.totalorder %s7, 1
        %s82 = scalar_select %p81, %s7, 1
        %s83 = smul.addr %s82, 4
        %s84 = scalar_lea.vmem %s0, %s83
      $region20: #{clip_forward.40} parent=15 // pred_fallthru
        _
    $region16: #{clip_forward.40} parent=5 // pred_fallthru
      _
    %p85 = scmp.le.s32.totalorder 1, %s7
    %p86 = scmp.lt.s32.totalorder %s7, 3
    %p87 = pnand %p85, %p86
    %p88 = pneg %p87
    // Predicated region
    $region21: #{clip_forward.40} parent=5 // pred_check
      _
    $region22: #{clip_forward.40} parent=5 // pred_check_branch
      %90 = sbr.rel (%p87) target = $region24
    $region23: #{clip_forward.40} parent=5 // pred_region
      %s91 = ssub.s32 %s7, 1
      %p92 = scmp.lt.s32.totalorder %s12, 1
      %s93 = scalar_select %p92, %s12, 1
      %s94 = smul.addr %s93, 4
      %s95 = scalar_lea.vmem %s0, %s94
      %p96 = pneg %p33
      %p97 = pneg %p30
      %p98 = pneg %p59
      %p99 = pneg %p56
      %p100 = scmp.lt.s32.totalorder %s12, 1
      %s101 = scalar_select %p100, %s12, 1
      %s102 = smul.addr %s101, 4
      %s103 = scalar_lea.vmem %s1, %s102
      %p104 = scmp.lt.s32.totalorder %s12, 1
      %s105 = scalar_select %p104, %s12, 1
      %s106 = smul.addr %s105, 4
      %s107 = scalar_lea.vmem %s0, %s106
      %p108 = scmp.lt.s32.totalorder %s12, 1
      %s109 = scalar_select %p108, %s12, 1
      %s110 = smul.addr %s109, 4
      %s111 = scalar_lea.vmem %s1, %s110
      %v113 = vld [vmem:[%s107] sm:$0x7]
      %v115 = vunpack.c.l.b16 %v113
      %v116 = vpack.c.b16 %v115, %v115
      %117 = vrot.lane.b32.xlu0 %v116, 96
      %v118 = vpop.permute.xlu0 %117
      %vm119 = vcmask 130048
      %v121 = vsel %vm119, %v113, 0
      %v124 = vsel %vm119, %v118, 0
      %126 = vmatpush.bf16.xpose.msra.mxu0 0
      %127 = vmatpush.bf16.xpose.msra.mxu0 0
      %128 = vmatpush.bf16.xpose.msra.mxu0 0
      %129 = vmatpush.bf16.xpose.msra.mxu0 0
      %130 = vmatpush.bf16.xpose.msra.mxu0 0
      %131 = vmatpush.bf16.xpose.msra.mxu0 0
      %132 = vmatpush.bf16.xpose.msra.mxu0 0
      %133 = vmatpush.bf16.xpose.msra.mxu0 %v124
      %134 = vmatmul.bf16.gmra.mxu0 %v121
      %v135 = vpop.f32.mrf.mxu0
      %v136 = vadd.f32 0.0, %v135
      %v137 = vpop.f32.mrf.mxu0
      %138 = vdwg.mxu0
      %v139 = vmul.f32 %v136, 0.25
      %vm140 = vcmask 36864
      %v141 = vsel %vm140, %v139, -inf
      %142 = vmax.xlane.f32.xlu0 %v141
      %v143 = vpop.xlane.xlu0 %142
      %v144 = vsub.f32 %v139, %v143
      %v145 = vmul.f32 %v144, 1.442695
      %v146 = vpow.pop %v145
      %v147 = vsel %vm140, %v146, 0.0
      %148 = vadd.xlane.f32.xlu0 %v147
      %v149 = vpop.xlane.xlu0 %148
      %v150 = vrcp.pop %v149
      %v151 = vmul.f32 %v146, %v150
      %v152 = vpack.c.bf16 %v151, %v151
      %153 = vrot.lane.b32.xlu0 %v116, 64
      %v154 = vpop.permute.xlu0 %153
      %vm155 = vcmask 39936
      %v157 = vsel %vm155, %v152, 0
      %vm159 = vcmask 1041408
      %vm160 = vcmask 1042432
      %v161 = vsel %vm159, 4294967295, 65535
      %v162 = vsel %vm160, %v161, 0
      %v164 = vand.u32 %v154, %v162
      %166 = vmatpush.bf16.msra.mxu0 0
      %167 = vmatpush.bf16.msra.mxu0 0
      %168 = vmatpush.bf16.msra.mxu0 0
      %169 = vmatpush.bf16.msra.mxu0 0
      %170 = vmatpush.bf16.msra.mxu0 0
      %171 = vmatpush.bf16.msra.mxu0 0
      %172 = vmatpush.bf16.msra.mxu0 0
      %173 = vmatpush.bf16.msra.mxu0 %v164
      %174 = vmatmul.bf16.gmra.mxu0 %v157
      %v175 = vpop.f32.mrf.mxu0
      %v176 = vadd.f32 0.0, %v175
      %v177 = vpop.f32.mrf.mxu0
      %178 = vdwg.mxu0
      %v179 = vpack.c.bf16 %v176, %v176
      %vm180 = vcmask 124928
      %vm181 = vsmask.f32 2304
      %vm182 = vmand %vm180, %vm181
      %v183 = vld [vmem:[%s111] sm:$0x7]
      %v184 = vsel %vm182, %v179, %v183
      %185 = vst [vmem:[%s111] sm:$0x7] %v184
      %v186 = vld [vmem:[%s107] sm:$0x7]
      %v188 = vunpack.c.l.b16 %v186
      %v189 = vpack.c.b16 %v188, %v188
      %190 = vrot.lane.b32.xlu0 %v189, 112
      %v191 = vpop.permute.xlu0 %190
      %192 = vrot.lane.b32.xlu0 %v189, 80
      %v193 = vpop.permute.xlu0 %192
      %v195 = vsel %vm119, %v191, 0
      %v198 = vsel %vm119, %v193, 0
      %200 = vmatpush.bf16.xpose.msra.mxu0 0
      %201 = vmatpush.bf16.xpose.msra.mxu0 0
      %202 = vmatpush.bf16.xpose.msra.mxu0 0
      %203 = vmatpush.bf16.xpose.msra.mxu0 0
      %204 = vmatpush.bf16.xpose.msra.mxu0 0
      %205 = vmatpush.bf16.xpose.msra.mxu0 0
      %206 = vmatpush.bf16.xpose.msra.mxu0 0
      %207 = vmatpush.bf16.xpose.msra.mxu0 %v198
      %208 = vmatmul.bf16.gmra.mxu0 %v195
      %v209 = vpop.f32.mrf.mxu0
      %v210 = vadd.f32 0.0, %v209
      %v211 = vpop.f32.mrf.mxu0
      %212 = vdwg.mxu0
      %v213 = vmul.f32 %v210, 0.25
      %v214 = vsel %vm140, %v213, -inf
      %215 = vmax.xlane.f32.xlu0 %v214
      %v216 = vpop.xlane.xlu0 %215
      %v217 = vsub.f32 %v213, %v216
      %v218 = vmul.f32 %v217, 1.442695
      %v219 = vpow.pop %v218
      %v220 = vsel %vm140, %v219, 0.0
      %221 = vadd.xlane.f32.xlu0 %v220
      %v222 = vpop.xlane.xlu0 %221
      %v223 = vrcp.pop %v222
      %v224 = vmul.f32 %v219, %v223
      %v225 = vpack.c.bf16 %v224, %v224
      %226 = vrot.lane.b32.xlu0 %v189, 48
      %v227 = vpop.permute.xlu0 %226
      %v229 = vsel %vm155, %v225, 0
      %v232 = vand.u32 %v227, %v162
      %234 = vmatpush.bf16.msra.mxu0 0
      %235 = vmatpush.bf16.msra.mxu0 0
      %236 = vmatpush.bf16.msra.mxu0 0
      %237 = vmatpush.bf16.msra.mxu0 0
      %238 = vmatpush.bf16.msra.mxu0 0
      %239 = vmatpush.bf16.msra.mxu0 0
      %240 = vmatpush.bf16.msra.mxu0 0
      %241 = vmatpush.bf16.msra.mxu0 %v232
      %242 = vmatmul.bf16.gmra.mxu0 %v229
      %v243 = vpop.f32.mrf.mxu0
      %v244 = vadd.f32 0.0, %v243
      %v245 = vpop.f32.mrf.mxu0
      %246 = vdwg.mxu0
      %v247 = vpack.c.bf16 %v244, %v244
      %249 = vrot.lane.b32.xlu0 %v247, 16
      %v250 = vpop.permute.xlu0 %249
      %vm252 = vcmask 256128
      %vm253 = vmand %vm252, %vm181
      %v254 = vld [vmem:[%s111] sm:$0x7]
      %v255 = vsel %vm253, %v250, %v254
      %256 = vst [vmem:[%s111] sm:$0x7] %v255
      %p257 = scmp.lt.s32.totalorder %s12, 1
      %s258 = scalar_select %p257, %s12, 1
      %s259 = smul.addr %s258, 4
      %s260 = scalar_lea.vmem %s1, %s259
      // Predicated region
      $region25: #{clip_forward.40} parent=23 // pred_check
        %p261 = pneg %p56
      $region26: #{clip_forward.40} parent=23 // pred_check_branch
        %263 = sbr.rel (%p261) target = $region28
      $region27: #{clip_forward.40} parent=23 // pred_region
        _
      $region28: #{clip_forward.40} parent=23 // pred_fallthru
        _
    $region24: #{clip_forward.40} parent=5 // pred_fallthru
      _
    %p264 = scmp.le.s32.totalorder 2, %s7
    // Predicated region
    $region29: #{clip_forward.40} parent=5 // pred_check
      %p265 = pneg %p264
    $region30: #{clip_forward.40} parent=5 // pred_check_branch
      %267 = sbr.rel (%p265) target = $region32
    $region31: #{clip_forward.40} parent=5 // pred_region
      %s268 = ssub.s32 %s7, 2
      // Predicated region
      $region33: #{clip_forward.40} parent=31 // pred_check
        %p269 = pneg %p62
      $region34: #{clip_forward.40} parent=31 // pred_check_branch
        %271 = sbr.rel (%p269) target = $region36
      $region35: #{clip_forward.40} parent=31 // pred_region
        %p272 = scmp.lt.s32.totalorder %s13, 1
        %s273 = scalar_select %p272, %s13, 1
        %s274 = smul.addr %s273, 4
        %s275 = scalar_lea.vmem %s1, %s274
      $region36: #{clip_forward.40} parent=31 // pred_fallthru
        _
    $region32: #{clip_forward.40} parent=5 // pred_fallthru
      _
  $region6: #{clip_forward.40} parent=0 // loop_footer
    %s11 = sadd.s32 1, %s7
  $region7: #{clip_forward.40} parent=0 // loop_footer_branch
    %6 = sbr.rel target = $region3
  $region8: #{clip_forward.40} parent=0 // loop_exit
    _

// kernel: clip_forward.43
$region0: #{clip_forward.43}
  #allocation0 [shape = 'u32[]', space=smem, size = 0x4, offset = 0x4, fixed_abs, tag = 'smem constant byte address 0x4 - core index']
  #allocation1 [shape = 'u32[72,128]{1,0:T(1,128)}', space=vmem, size = 0x9000, scoped, tag = 'internal scratch']
  #allocation2 [shape = 'f32[10,128]{1,0:T(8,128)}', space=vmem, size = 0x2000, scoped, tag = 'scratch operand']
  %s0 = inlined_call_operand.vmem [shape: bf16[10,32], index: 0, kind: input, shape index: {}]
  %s1 = inlined_call_operand.vmem [shape: bf16[32,128], index: 1, kind: input, shape index: {}]
  %s2 = inlined_call_operand.vmem [shape: f32[1,128], index: 2, kind: input, shape index: {}]
  %s3 = inlined_call_operand.vmem [shape: bf16[10,128], index: 3, kind: output, shape index: {}]
  %s4 = sld [smem:[#allocation0]]
  $region30: #{clip_forward.43} parent=0
    _
  %s6 = ssub.s32 1, %s4
  %s7 = scalar_select 0, %s6, %s4
  // Predicated region
  $region2: #{clip_forward.43} parent=0 // pred_check
    _
  $region3: #{clip_forward.43} parent=0 // pred_check_branch
    %9 = sbr.rel (0) target = $region5
  $region4: #{clip_forward.43} parent=0 // pred_region
    _
  $region5: #{clip_forward.43} parent=0 // pred_fallthru
    _
  // Predicated region
  $region6: #{clip_forward.43} parent=0 // pred_check
    _
  $region7: #{clip_forward.43} parent=0 // pred_check_branch
    %11 = sbr.rel (0) target = $region9
  $region8: #{clip_forward.43} parent=0 // pred_region
    _
  $region9: #{clip_forward.43} parent=0 // pred_fallthru
    _
  // Predicated region
  $region10: #{clip_forward.43} parent=0 // pred_check
    _
  $region11: #{clip_forward.43} parent=0 // pred_check_branch
    %13 = sbr.rel (0) target = $region13
  $region12: #{clip_forward.43} parent=0 // pred_region
    _
  $region13: #{clip_forward.43} parent=0 // pred_fallthru
    _
  %p15 = scmp.eq.s32.totalorder 0, 0
  // Predicated region
  $region14: #{clip_forward.43} parent=0 // pred_check
    %p16 = pneg %p15
  $region15: #{clip_forward.43} parent=0 // pred_check_branch
    %18 = sbr.rel (%p16) target = $region17
  $region16: #{clip_forward.43} parent=0 // pred_region
    %19 = vst [vmem:[#allocation2] sm:$0xff] 0.0
    %20 = vst [vmem:[#allocation2 + $0x8] sm:$0x3] 0.0
  $region17: #{clip_forward.43} parent=0 // pred_fallthru
    _
  %v21 = vld [vmem:[#allocation2] sm:$0xff]
  %v22 = vld [vmem:[#allocation2 + $0x8] sm:$0x3]
  %v23 = vld [vmem:[%s0] sm:$0xf]
  %v24 = vld [vmem:[%s0 + $0x4] sm:$0x1]
  %v25 = vld [vmem:[%s1] sm:$0xf]
  %v26 = vld [vmem:[%s1 + $0x4] sm:$0xf]
  %v27 = vld [vmem:[%s1 + $0x8] sm:$0xf]
  %v28 = vld [vmem:[%s1 + $0xc] sm:$0xf]
  %v31 = vunpack.c.l.b16 %v23
  %v32 = vunpack.c.l.b16 %v24
  %v33 = vpack.c.b16 %v32, %v31
  %v38 = vunpack.c.l.b16 %v25
  %v39 = vunpack.c.l.b16 %v26
  %v40 = vunpack.c.l.b16 %v27
  %v41 = vunpack.c.l.b16 %v28
  %v42 = vpack.c.b16 %v39, %v38
  %v43 = vpack.c.b16 %v41, %v40
  %vm46 = vcmask 261120
  %v48 = vsel %vm46, %v33, 0
  %50 = vmatpush.bf16.msra.mxu0 0
  %51 = vmatpush.bf16.msra.mxu0 0
  %52 = vmatpush.bf16.msra.mxu0 0
  %53 = vmatpush.bf16.msra.mxu0 0
  %54 = vmatpush.bf16.msra.mxu0 0
  %55 = vmatpush.bf16.msra.mxu0 0
  %56 = vmatpush.bf16.msra.mxu0 %v43
  %57 = vmatpush.bf16.msra.mxu0 %v42
  %58 = vmatmul.bf16.gmra.mxu0 %v48
  %v59 = vpop.f32.mrf.mxu0
  %v60 = vadd.f32 0.0, %v59
  %v61 = vpop.f32.mrf.mxu0
  %v62 = vadd.f32 0.0, %v61
  %63 = vdwg.mxu0
  %v64 = vadd.f32 %v21, %v60
  %v65 = vadd.f32 %v22, %v62
  %66 = vst [vmem:[#allocation2] sm:$0xff] %v64
  %67 = vst [vmem:[#allocation2 + $0x8] sm:$0x3] %v65
  // Predicated region
  $region18: #{clip_forward.43} parent=0 // pred_check
    %p68 = pneg %p15
  $region19: #{clip_forward.43} parent=0 // pred_check_branch
    %70 = sbr.rel (%p68) target = $region21
  $region20: #{clip_forward.43} parent=0 // pred_region
    %v71 = vld [vmem:[#allocation2] sm:$0xff]
    %v72 = vld [vmem:[#allocation2 + $0x8] sm:$0x3]
    %v73 = vld [vmem:[%s2] sm:$0x1]
    %v75 = vperm.slane %v73, 0
    %v77 = vadd.f32 %v71, %v75
    %v78 = vadd.f32 %v72, %v75
    %v79 = vmul.f32 %v77, 0.5
    %v80 = vmul.f32 %v78, 0.5
    %v81 = vmul.f32 %v77, 0.70710677
    %v82 = vmul.f32 %v78, 0.70710677
    %v83 = vmul.f32 %v81, %v81
    %v84 = vmin.f32 16.0, %v83
    %v85 = vmul.f32 %v84, 2.1237322e-06
    %v86 = vadd.f32 %v85, 0.00028619796
    %v87 = vmul.f32 %v84, %v86
    %v88 = vadd.f32 %v87, 0.0036580483
    %v89 = vmul.f32 %v84, %v88
    %v90 = vadd.f32 %v89, 0.05243302
    %v91 = vmul.f32 %v84, %v90
    %v92 = vadd.f32 %v91, 0.18741608
    %v93 = vmul.f32 %v84, %v92
    %v94 = vadd.f32 %v93, 1.1283791
    %v95 = vmul.f32 %v81, %v94
    %v96 = vmul.f32 %v84, 3.8918573e-05
    %v97 = vadd.f32 %v96, 0.001143296
    %v98 = vmul.f32 %v84, %v97
    %v99 = vadd.f32 %v98, 0.014752088
    %v100 = vmul.f32 %v84, %v99
    %v101 = vadd.f32 %v100, 0.112945676
    %v102 = vmul.f32 %v84, %v101
    %v103 = vadd.f32 %v102, 0.4994258
    %v104 = vmul.f32 %v84, %v103
    %v105 = vadd.f32 %v104, 1.0
    %v106 = vrcp.pop %v105
    %v107 = vmul.f32 %v105, %v106
    %v108 = vsub.f32 1.0, %v107
    %v109 = vmul.f32 %v106, %v108
    %v110 = vadd.f32 %v106, %v109
    %vm111 = vweird.f32 %v105
    %vm112 = vweird.f32 %v106
    %vm113 = vmor %vm111, %vm112
    %v114 = vsel %vm113, %v106, %v110
    %v115 = vand.u32 2147483647, %v105
    %vm116 = vcmp.eq.f32.partialorder %v115, 8.507059e+37
    %v117 = vand.u32 %v105, 2147483648
    %v118 = vor.u32 1.1754944e-38, %v117
    %v119 = vsel %vm116, %v118, %v114
    %v120 = vmul.f32 %v95, %v119
    %v121 = vmin.f32 %v120, 1.0
    %v122 = vmax.f32 %v121, -1.0
    %v123 = vmul.f32 %v82, %v82
    %v124 = vmin.f32 16.0, %v123
    %v125 = vmul.f32 %v124, 2.1237322e-06
    %v126 = vadd.f32 %v125, 0.00028619796
    %v127 = vmul.f32 %v124, %v126
    %v128 = vadd.f32 %v127, 0.0036580483
    %v129 = vmul.f32 %v124, %v128
    %v130 = vadd.f32 %v129, 0.05243302
    %v131 = vmul.f32 %v124, %v130
    %v132 = vadd.f32 %v131, 0.18741608
    %v133 = vmul.f32 %v124, %v132
    %v134 = vadd.f32 %v133, 1.1283791
    %v135 = vmul.f32 %v82, %v134
    %v136 = vmul.f32 %v124, 3.8918573e-05
    %v137 = vadd.f32 %v136, 0.001143296
    %v138 = vmul.f32 %v124, %v137
    %v139 = vadd.f32 %v138, 0.014752088
    %v140 = vmul.f32 %v124, %v139
    %v141 = vadd.f32 %v140, 0.112945676
    %v142 = vmul.f32 %v124, %v141
    %v143 = vadd.f32 %v142, 0.4994258
    %v144 = vmul.f32 %v124, %v143
    %v145 = vadd.f32 %v144, 1.0
    %v146 = vrcp.pop %v145
    %v147 = vmul.f32 %v145, %v146
    %v148 = vsub.f32 1.0, %v147
    %v149 = vmul.f32 %v146, %v148
    %v150 = vadd.f32 %v146, %v149
    %vm151 = vweird.f32 %v145
    %vm152 = vweird.f32 %v146
    %vm153 = vmor %vm151, %vm152
    %v154 = vsel %vm153, %v146, %v150
    %v155 = vand.u32 2147483647, %v145
    %vm156 = vcmp.eq.f32.partialorder %v155, 8.507059e+37
    %v157 = vand.u32 %v145, 2147483648
    %v158 = vor.u32 1.1754944e-38, %v157
    %v159 = vsel %vm156, %v158, %v154
    %v160 = vmul.f32 %v135, %v159
    %v161 = vmin.f32 %v160, 1.0
    %v162 = vmax.f32 %v161, -1.0
    %v163 = vadd.f32 %v122, 1.0
    %v164 = vadd.f32 %v162, 1.0
    %v165 = vmul.f32 %v79, %v163
    %v166 = vmul.f32 %v80, %v164
    %v167 = vpack.c.bf16 %v165, %v165
    %v168 = vpack.c.bf16 %v166, %v166
    %169 = vst [vmem:[%s3] sm:$0xf] %v167
    %170 = vst [vmem:[%s3 + $0x4] sm:$0x1] %v168
  $region21: #{clip_forward.43} parent=0 // pred_fallthru
    _
  // Predicated region
  $region22: #{clip_forward.43} parent=0 // pred_check
    _
  $region23: #{clip_forward.43} parent=0 // pred_check_branch
    %172 = sbr.rel (0) target = $region25
  $region24: #{clip_forward.43} parent=0 // pred_region
    _
  $region25: #{clip_forward.43} parent=0 // pred_fallthru
    _
  // Predicated region
  $region26: #{clip_forward.43} parent=0 // pred_check
    _
  $region27: #{clip_forward.43} parent=0 // pred_check_branch
    %174 = sbr.rel (0) target = $region29
  $region28: #{clip_forward.43} parent=0 // pred_region
    _
  $region29: #{clip_forward.43} parent=0 // pred_fallthru
    _

// kernel: clip_forward.44
$region0: #{clip_forward.44}
  #allocation0 [shape = 'u32[]', space=smem, size = 0x4, offset = 0x4, fixed_abs, tag = 'smem constant byte address 0x4 - core index']
  #allocation1 [shape = 'u32[72,128]{1,0:T(1,128)}', space=vmem, size = 0x9000, scoped, tag = 'internal scratch']
  #allocation2 [shape = 'f32[10,32]{1,0:T(8,128)}', space=vmem, size = 0x2000, scoped, tag = 'scratch operand']
  %s0 = inlined_call_operand.vmem [shape: bf16[10,128], index: 0, kind: input, shape index: {}]
  %s1 = inlined_call_operand.vmem [shape: bf16[128,32], index: 1, kind: input, shape index: {}]
  %s2 = inlined_call_operand.vmem [shape: f32[1,32], index: 2, kind: input, shape index: {}]
  %s3 = inlined_call_operand.vmem [shape: f32[10,32], index: 3, kind: input, shape index: {}]
  %s4 = inlined_call_operand.vmem [shape: f32[10,32], index: 4, kind: output, shape index: {}]
  %s5 = sld [smem:[#allocation0]]
  $region34: #{clip_forward.44} parent=0
    _
  %s7 = ssub.s32 1, %s5
  %s8 = scalar_select 0, %s7, %s5
  // Predicated region
  $region2: #{clip_forward.44} parent=0 // pred_check
    _
  $region3: #{clip_forward.44} parent=0 // pred_check_branch
    %10 = sbr.rel (0) target = $region5
  $region4: #{clip_forward.44} parent=0 // pred_region
    _
  $region5: #{clip_forward.44} parent=0 // pred_fallthru
    _
  // Predicated region
  $region6: #{clip_forward.44} parent=0 // pred_check
    _
  $region7: #{clip_forward.44} parent=0 // pred_check_branch
    %12 = sbr.rel (0) target = $region9
  $region8: #{clip_forward.44} parent=0 // pred_region
    _
  $region9: #{clip_forward.44} parent=0 // pred_fallthru
    _
  // Predicated region
  $region10: #{clip_forward.44} parent=0 // pred_check
    _
  $region11: #{clip_forward.44} parent=0 // pred_check_branch
    %14 = sbr.rel (0) target = $region13
  $region12: #{clip_forward.44} parent=0 // pred_region
    _
  $region13: #{clip_forward.44} parent=0 // pred_fallthru
    _
  // Predicated region
  $region14: #{clip_forward.44} parent=0 // pred_check
    _
  $region15: #{clip_forward.44} parent=0 // pred_check_branch
    %16 = sbr.rel (0) target = $region17
  $region16: #{clip_forward.44} parent=0 // pred_region
    _
  $region17: #{clip_forward.44} parent=0 // pred_fallthru
    _
  %p17 = scmp.eq.s32.totalorder 0, 0
  // Predicated region
  $region18: #{clip_forward.44} parent=0 // pred_check
    %p18 = pneg %p17
  $region19: #{clip_forward.44} parent=0 // pred_check_branch
    %20 = sbr.rel (%p18) target = $region21
  $region20: #{clip_forward.44} parent=0 // pred_region
    %vm21 = vcmask 261120
    %22 = vst.msk [vmem:[#allocation2] sm:$0xff] %vm21, 0.0
    %vm23 = vcmask 254976
    %24 = vst.msk [vmem:[#allocation2 + $0x8] sm:$0x3] %vm23, 0.0
  $region21: #{clip_forward.44} parent=0 // pred_fallthru
    _
  %v25 = vld [vmem:[#allocation2] sm:$0xff]
  %v26 = vld [vmem:[#allocation2 + $0x8] sm:$0x3]
  %v27 = vld [vmem:[%s0] sm:$0xf]
  %v28 = vld [vmem:[%s0 + $0x4] sm:$0x1]
  %v29 = vld [vmem:[%s1] sm:$0xf]
  %v30 = vld [vmem:[%s1 + $0x4] sm:$0xf]
  %v31 = vld [vmem:[%s1 + $0x8] sm:$0xf]
  %v32 = vld [vmem:[%s1 + $0xc] sm:$0xf]
  %v33 = vld [vmem:[%s1 + $0x10] sm:$0xf]
  %v34 = vld [vmem:[%s1 + $0x14] sm:$0xf]
  %v35 = vld [vmem:[%s1 + $0x18] sm:$0xf]
  %v36 = vld [vmem:[%s1 + $0x1c] sm:$0xf]
  %v37 = vld [vmem:[%s1 + $0x20] sm:$0xf]
  %v38 = vld [vmem:[%s1 + $0x24] sm:$0xf]
  %v39 = vld [vmem:[%s1 + $0x28] sm:$0xf]
  %v40 = vld [vmem:[%s1 + $0x2c] sm:$0xf]
  %v41 = vld [vmem:[%s1 + $0x30] sm:$0xf]
  %v42 = vld [vmem:[%s1 + $0x34] sm:$0xf]
  %v43 = vld [vmem:[%s1 + $0x38] sm:$0xf]
  %v44 = vld [vmem:[%s1 + $0x3c] sm:$0xf]
  %v47 = vunpack.c.l.b16 %v27
  %v48 = vunpack.c.l.b16 %v28
  %v49 = vpack.c.b16 %v48, %v47
  %v67 = vunpack.c.l.b16 %v29
  %v68 = vunpack.c.l.b16 %v30
  %v69 = vunpack.c.l.b16 %v31
  %v70 = vunpack.c.l.b16 %v32
  %v71 = vunpack.c.l.b16 %v33
  %v72 = vunpack.c.l.b16 %v34
  %v73 = vunpack.c.l.b16 %v35
  %v74 = vunpack.c.l.b16 %v36
  %v75 = vunpack.c.l.b16 %v37
  %v76 = vunpack.c.l.b16 %v38
  %v77 = vunpack.c.l.b16 %v39
  %v78 = vunpack.c.l.b16 %v40
  %v79 = vunpack.c.l.b16 %v41
  %v80 = vunpack.c.l.b16 %v42
  %v81 = vunpack.c.l.b16 %v43
  %v82 = vunpack.c.l.b16 %v44
  %v83 = vpack.c.b16 %v68, %v67
  %v84 = vpack.c.b16 %v70, %v69
  %v85 = vpack.c.b16 %v72, %v71
  %v86 = vpack.c.b16 %v74, %v73
  %v87 = vpack.c.b16 %v76, %v75
  %v88 = vpack.c.b16 %v78, %v77
  %v89 = vpack.c.b16 %v80, %v79
  %v90 = vpack.c.b16 %v82, %v81
  %99 = vmatpush.bf16.msra.mxu0 %v90
  %100 = vmatpush.bf16.msra.mxu0 %v89
  %101 = vmatpush.bf16.msra.mxu0 %v88
  %102 = vmatpush.bf16.msra.mxu0 %v87
  %103 = vmatpush.bf16.msra.mxu0 %v86
  %104 = vmatpush.bf16.msra.mxu0 %v85
  %105 = vmatpush.bf16.msra.mxu0 %v84
  %106 = vmatpush.bf16.msra.mxu0 %v83
  %107 = vmatmul.bf16.gmra.mxu0 %v49
  %v108 = vpop.f32.mrf.mxu0
  %v109 = vadd.f32 0.0, %v108
  %v110 = vpop.f32.mrf.mxu0
  %v111 = vadd.f32 0.0, %v110
  %112 = vdwg.mxu0
  %v113 = vadd.f32 %v25, %v109
  %v114 = vadd.f32 %v26, %v111
  %vm115 = vcmask 261120
  %116 = vst.msk [vmem:[#allocation2] sm:$0xff] %vm115, %v113
  %vm117 = vcmask 254976
  %118 = vst.msk [vmem:[#allocation2 + $0x8] sm:$0x3] %vm117, %v114
  // Predicated region
  $region22: #{clip_forward.44} parent=0 // pred_check
    %p119 = pneg %p17
  $region23: #{clip_forward.44} parent=0 // pred_check_branch
    %121 = sbr.rel (%p119) target = $region25
  $region24: #{clip_forward.44} parent=0 // pred_region
    %v122 = vld [vmem:[#allocation2] sm:$0xff]
    %v123 = vld [vmem:[#allocation2 + $0x8] sm:$0x3]
    %v124 = vld [vmem:[%s2] sm:$0x1]
    %v126 = vperm.slane %v124, 0
    %v128 = vadd.f32 %v122, %v126
    %v129 = vadd.f32 %v123, %v126
    %v130 = vld [vmem:[%s3] sm:$0xff]
    %v131 = vld [vmem:[%s3 + $0x8] sm:$0x3]
    %v132 = vadd.f32 %v128, %v130
    %v133 = vadd.f32 %v129, %v131
    %134 = vst.msk [vmem:[%s4] sm:$0xff] %vm115, %v132
    %135 = vst.msk [vmem:[%s4 + $0x8] sm:$0x3] %vm117, %v133
  $region25: #{clip_forward.44} parent=0 // pred_fallthru
    _
  // Predicated region
  $region26: #{clip_forward.44} parent=0 // pred_check
    _
  $region27: #{clip_forward.44} parent=0 // pred_check_branch
    %137 = sbr.rel (0) target = $region29
  $region28: #{clip_forward.44} parent=0 // pred_region
    _
  $region29: #{clip_forward.44} parent=0 // pred_fallthru
    _
  // Predicated region
  $region30: #{clip_forward.44} parent=0 // pred_check
    _
  $region31: #{clip_forward.44} parent=0 // pred_check_branch
    %139 = sbr.rel (0) target = $region33
  $region32: #{clip_forward.44} parent=0 // pred_region
    _
  $region33: #{clip_forward.44} parent=0 // pred_fallthru
    _

// kernel: clip_forward.54
$region0: #{clip_forward.54}
  #allocation0 [shape = 'u32[]', space=smem, size = 0x4, offset = 0x4, fixed_abs, tag = 'smem constant byte address 0x4 - core index']
  #allocation1 [shape = 'u32[72,128]{1,0:T(1,128)}', space=vmem, size = 0x9000, scoped, tag = 'internal scratch']
  %s0 = inlined_call_operand.vmem [shape: f32[2,32], index: 0, kind: input, shape index: {}]
  %s1 = inlined_call_operand.hbm [shape: f32[2,32], index: 1, kind: output, shape index: {}]
  %s2 = sld [smem:[#allocation0]]
  $region14: #{clip_forward.54} parent=0
    _
  %s4 = ssub.s32 1, %s2
  %s5 = scalar_select 0, %s4, %s2
  $region1: #{clip_forward.54} parent=0
    #allocation2 [shape = 'u8[1024]{0}', space=vmem, size = 0x400, scoped, tag = 'output window, operand 0, single buffered']
    #allocation3 [shape = 's32[1]{0}', space=sflag, size = 0x4, scoped, tag = 'scoped memory for clip_forward.54']
    %6 = vsyncpa [#allocation3], 0
    // Predicated region
    $region2: #{clip_forward.54} parent=1 // pred_check
      _
    $region3: #{clip_forward.54} parent=1 // pred_check_branch
      %8 = sbr.rel (0) target = $region5
    $region4: #{clip_forward.54} parent=1 // pred_region
      _
    $region5: #{clip_forward.54} parent=1 // pred_fallthru
      _
    %v9 = vld [vmem:[%s0] sm:$0x3]
    %v10 = vmul.f32 %v9, %v9
    %vm11 = vcmask 254976
    %v12 = vsel %vm11, %v10, 0.0
    %13 = vadd.xlane.f32.xlu0 %v12
    %v14 = vpop.xlane.xlu0 %13
    %v15 = vrsqrt.pop %v14
    %v16 = vmul.f32 %v15, %v14
    %v17 = vmul.f32 %v16, %v15
    %v18 = vmul.f32 0.5, %v17
    %v19 = vsub.f32 1.5, %v18
    %v20 = vmul.f32 %v15, %v19
    %v21 = vmul.f32 %v14, %v20
    %vm22 = vcmp.eq.f32.partialorder %v14, inf
    %v23 = vsel %vm22, %v14, %v21
    %vm24 = vcmp.eq.f32.partialorder %v14, 0.0
    %v25 = vand.u32 %v14, 2147483648
    %v26 = vsel %vm24, %v25, %v23
    %v27 = vmax.f32 %v26, 1e-12
    %v28 = vrcp.pop %v27
    %v29 = vmul.f32 %v9, %v28
    %30 = vst.msk [vmem:[#allocation2] sm:$0x3] %vm11, %v29
    // Predicated region
    $region6: #{clip_forward.54} parent=1 // pred_check
      _
    $region7: #{clip_forward.54} parent=1 // pred_check_branch
      %32 = sbr.rel (0) target = $region9
    $region8: #{clip_forward.54} parent=1 // pred_region
      %34 = vsyncadd [#allocation3], 0
      %s36 = sshll.u32 [#allocation2], 4
      %s37 = int_to_ptr.vmem [resolvable:$true] %s36
      %s38 = sshll.u32 %s1, 4
      %s39 = int_to_ptr.hbm [resolvable:$true] %s38
      %41 = dma.vmem_to_hbm [thread:$0]  %s37, 32, %s39, [#allocation3]
    $region9: #{clip_forward.54} parent=1 // pred_fallthru
      _
    // Predicated region
    $region10: #{clip_forward.54} parent=1 // pred_check
      _
    $region11: #{clip_forward.54} parent=1 // pred_check_branch
      %43 = sbr.rel (0) target = $region13
    $region12: #{clip_forward.54} parent=1 // pred_region
      %45 = dma.done [#allocation3], 32
    $region13: #{clip_forward.54} parent=1 // pred_fallthru
      _
    %46 = vsyncpa [#allocation3], 1

// kernel: clip_forward.56
$region0: #{clip_forward.56}
  #allocation0 [shape = 'u32[]', space=smem, size = 0x4, offset = 0x4, fixed_abs, tag = 'smem constant byte address 0x4 - core index']
  #allocation1 [shape = 'u32[72,128]{1,0:T(1,128)}', space=vmem, size = 0x9000, scoped, tag = 'internal scratch']
  #allocation2 [shape = 'f32[16,96]{1,0:T(8,128)}', space=vmem, size = 0x2000, scoped, tag = 'scratch operand']
  %s0 = inlined_call_operand.vmem [shape: bf16[16,32], index: 0, kind: input, shape index: {}]
  %s1 = inlined_call_operand.vmem [shape: bf16[32,96], index: 1, kind: input, shape index: {}]
  %s2 = inlined_call_operand.vmem [shape: f32[1,96], index: 2, kind: input, shape index: {}]
  %s3 = inlined_call_operand.vmem [shape: bf16[16,96], index: 3, kind: output, shape index: {}]
  %s4 = sld [smem:[#allocation0]]
  $region30: #{clip_forward.56} parent=0
    _
  %s6 = ssub.s32 1, %s4
  %s7 = scalar_select 0, %s6, %s4
  // Predicated region
  $region2: #{clip_forward.56} parent=0 // pred_check
    _
  $region3: #{clip_forward.56} parent=0 // pred_check_branch
    %9 = sbr.rel (0) target = $region5
  $region4: #{clip_forward.56} parent=0 // pred_region
    _
  $region5: #{clip_forward.56} parent=0 // pred_fallthru
    _
  // Predicated region
  $region6: #{clip_forward.56} parent=0 // pred_check
    _
  $region7: #{clip_forward.56} parent=0 // pred_check_branch
    %11 = sbr.rel (0) target = $region9
  $region8: #{clip_forward.56} parent=0 // pred_region
    _
  $region9: #{clip_forward.56} parent=0 // pred_fallthru
    _
  // Predicated region
  $region10: #{clip_forward.56} parent=0 // pred_check
    _
  $region11: #{clip_forward.56} parent=0 // pred_check_branch
    %13 = sbr.rel (0) target = $region13
  $region12: #{clip_forward.56} parent=0 // pred_region
    _
  $region13: #{clip_forward.56} parent=0 // pred_fallthru
    _
  %p15 = scmp.eq.s32.totalorder 0, 0
  // Predicated region
  $region14: #{clip_forward.56} parent=0 // pred_check
    %p16 = pneg %p15
  $region15: #{clip_forward.56} parent=0 // pred_check_branch
    %18 = sbr.rel (%p16) target = $region17
  $region16: #{clip_forward.56} parent=0 // pred_region
    %vm19 = vcmask 785408
    %20 = vst.msk [vmem:[#allocation2] sm:$0xff] %vm19, 0.0
    %21 = vst.msk [vmem:[#allocation2 + $0x8] sm:$0xff] %vm19, 0.0
  $region17: #{clip_forward.56} parent=0 // pred_fallthru
    _
  %v22 = vld [vmem:[#allocation2] sm:$0xff]
  %v23 = vld [vmem:[#allocation2 + $0x8] sm:$0xff]
  %v24 = vld [vmem:[%s0] sm:$0xf]
  %v25 = vld [vmem:[%s0 + $0x4] sm:$0xf]
  %v26 = vld [vmem:[%s1] sm:$0xf]
  %v27 = vld [vmem:[%s1 + $0x4] sm:$0xf]
  %v28 = vld [vmem:[%s1 + $0x8] sm:$0xf]
  %v29 = vld [vmem:[%s1 + $0xc] sm:$0xf]
  %v32 = vunpack.c.l.b16 %v24
  %v33 = vunpack.c.l.b16 %v25
  %v34 = vpack.c.b16 %v33, %v32
  %v39 = vunpack.c.l.b16 %v26
  %v40 = vunpack.c.l.b16 %v27
  %v41 = vunpack.c.l.b16 %v28
  %v42 = vunpack.c.l.b16 %v29
  %v43 = vpack.c.b16 %v40, %v39
  %v44 = vpack.c.b16 %v42, %v41
  %vm47 = vcmask 261120
  %v49 = vsel %vm47, %v34, 0
  %51 = vmatpush.bf16.msra.mxu0 0
  %52 = vmatpush.bf16.msra.mxu0 0
  %53 = vmatpush.bf16.msra.mxu0 0
  %54 = vmatpush.bf16.msra.mxu0 0
  %55 = vmatpush.bf16.msra.mxu0 0
  %56 = vmatpush.bf16.msra.mxu0 0
  %57 = vmatpush.bf16.msra.mxu0 %v44
  %58 = vmatpush.bf16.msra.mxu0 %v43
  %59 = vmatmul.bf16.gmra.mxu0 %v49
  %v60 = vpop.f32.mrf.mxu0
  %v61 = vadd.f32 0.0, %v60
  %v62 = vpop.f32.mrf.mxu0
  %v63 = vadd.f32 0.0, %v62
  %64 = vdwg.mxu0
  %v65 = vadd.f32 %v22, %v61
  %v66 = vadd.f32 %v23, %v63
  %vm67 = vcmask 785408
  %68 = vst.msk [vmem:[#allocation2] sm:$0xff] %vm67, %v65
  %69 = vst.msk [vmem:[#allocation2 + $0x8] sm:$0xff] %vm67, %v66
  // Predicated region
  $region18: #{clip_forward.56} parent=0 // pred_check
    %p70 = pneg %p15
  $region19: #{clip_forward.56} parent=0 // pred_check_branch
    %72 = sbr.rel (%p70) target = $region21
  $region20: #{clip_forward.56} parent=0 // pred_region
    %v73 = vld [vmem:[#allocation2] sm:$0xff]
    %v74 = vld [vmem:[#allocation2 + $0x8] sm:$0xff]
    %v75 = vld [vmem:[%s2] sm:$0x1]
    %v77 = vperm.slane %v75, 0
    %v79 = vadd.f32 %v73, %v77
    %v80 = vadd.f32 %v74, %v77
    %v81 = vpack.c.bf16 %v79, %v79
    %v82 = vpack.c.bf16 %v80, %v80
    %vm83 = vcmask 781312
    %84 = vst.msk [vmem:[%s3] sm:$0xf] %vm83, %v81
    %85 = vst.msk [vmem:[%s3 + $0x4] sm:$0xf] %vm83, %v82
  $region21: #{clip_forward.56} parent=0 // pred_fallthru
    _
  // Predicated region
  $region22: #{clip_forward.56} parent=0 // pred_check
    _
  $region23: #{clip_forward.56} parent=0 // pred_check_branch
    %87 = sbr.rel (0) target = $region25
  $region24: #{clip_forward.56} parent=0 // pred_region
    _
  $region25: #{clip_forward.56} parent=0 // pred_fallthru
    _
  // Predicated region
  $region26: #{clip_forward.56} parent=0 // pred_check
    _
  $region27: #{clip_forward.56} parent=0 // pred_check_branch
    %89 = sbr.rel (0) target = $region29
  $region28: #{clip_forward.56} parent=0 // pred_region
    _
  $region29: #{clip_forward.56} parent=0 // pred_fallthru
    _

// kernel: clip_forward.53
$region0: #{clip_forward.53}
  #allocation0 [shape = 'u32[]', space=smem, size = 0x4, offset = 0x4, fixed_abs, tag = 'smem constant byte address 0x4 - core index']
  #allocation1 [shape = 'u32[72,128]{1,0:T(1,128)}', space=vmem, size = 0x9000, scoped, tag = 'internal scratch']
  #allocation2 [shape = 'f32[2,32]{1,0:T(2,128)}', space=vmem, size = 0x400, scoped, tag = 'scratch operand']
  %s0 = inlined_call_operand.vmem [shape: bf16[2,32], index: 0, kind: input, shape index: {}]
  %s1 = inlined_call_operand.vmem [shape: bf16[32,32], index: 1, kind: input, shape index: {}]
  %s2 = inlined_call_operand.vmem [shape: f32[2,32], index: 2, kind: output, shape index: {}]
  %s3 = sld [smem:[#allocation0]]
  $region26: #{clip_forward.53} parent=0
    _
  %s5 = ssub.s32 1, %s3
  %s6 = scalar_select 0, %s5, %s3
  // Predicated region
  $region2: #{clip_forward.53} parent=0 // pred_check
    _
  $region3: #{clip_forward.53} parent=0 // pred_check_branch
    %8 = sbr.rel (0) target = $region5
  $region4: #{clip_forward.53} parent=0 // pred_region
    _
  $region5: #{clip_forward.53} parent=0 // pred_fallthru
    _
  // Predicated region
  $region6: #{clip_forward.53} parent=0 // pred_check
    _
  $region7: #{clip_forward.53} parent=0 // pred_check_branch
    %10 = sbr.rel (0) target = $region9
  $region8: #{clip_forward.53} parent=0 // pred_region
    _
  $region9: #{clip_forward.53} parent=0 // pred_fallthru
    _
  %p12 = scmp.eq.s32.totalorder 0, 0
  // Predicated region
  $region10: #{clip_forward.53} parent=0 // pred_check
    %p13 = pneg %p12
  $region11: #{clip_forward.53} parent=0 // pred_check_branch
    %15 = sbr.rel (%p13) target = $region13
  $region12: #{clip_forward.53} parent=0 // pred_region
    %vm16 = vcmask 254976
    %17 = vst.msk [vmem:[#allocation2] sm:$0x3] %vm16, 0.0
  $region13: #{clip_forward.53} parent=0 // pred_fallthru
    _
  %v18 = vld [vmem:[#allocation2] sm:$0x3]
  %v19 = vld [vmem:[%s0] sm:$0x1]
  %v20 = vld [vmem:[%s1] sm:$0xf]
  %v21 = vld [vmem:[%s1 + $0x4] sm:$0xf]
  %v22 = vld [vmem:[%s1 + $0x8] sm:$0xf]
  %v23 = vld [vmem:[%s1 + $0xc] sm:$0xf]
  %v28 = vunpack.c.l.b16 %v20
  %v29 = vunpack.c.l.b16 %v21
  %v30 = vunpack.c.l.b16 %v22
  %v31 = vunpack.c.l.b16 %v23
  %v32 = vpack.c.b16 %v29, %v28
  %v33 = vpack.c.b16 %v31, %v30
  %vm36 = vcmask 261120
  %v38 = vsel %vm36, %v19, 0
  %40 = vmatpush.bf16.msra.mxu0 0
  %41 = vmatpush.bf16.msra.mxu0 0
  %42 = vmatpush.bf16.msra.mxu0 0
  %43 = vmatpush.bf16.msra.mxu0 0
  %44 = vmatpush.bf16.msra.mxu0 0
  %45 = vmatpush.bf16.msra.mxu0 0
  %46 = vmatpush.bf16.msra.mxu0 %v33
  %47 = vmatpush.bf16.msra.mxu0 %v32
  %48 = vmatmul.bf16.gmra.mxu0 %v38
  %v49 = vpop.f32.mrf.mxu0
  %v50 = vadd.f32 0.0, %v49
  %v51 = vpop.f32.mrf.mxu0
  %52 = vdwg.mxu0
  %v53 = vadd.f32 %v18, %v50
  %vm54 = vcmask 254976
  %55 = vst.msk [vmem:[#allocation2] sm:$0x3] %vm54, %v53
  // Predicated region
  $region14: #{clip_forward.53} parent=0 // pred_check
    %p56 = pneg %p12
  $region15: #{clip_forward.53} parent=0 // pred_check_branch
    %58 = sbr.rel (%p56) target = $region17
  $region16: #{clip_forward.53} parent=0 // pred_region
    %v59 = vld [vmem:[#allocation2] sm:$0x3]
    %60 = vst.msk [vmem:[%s2] sm:$0x3] %vm54, %v59
  $region17: #{clip_forward.53} parent=0 // pred_fallthru
    _
  // Predicated region
  $region18: #{clip_forward.53} parent=0 // pred_check
    _
  $region19: #{clip_forward.53} parent=0 // pred_check_branch
    %62 = sbr.rel (0) target = $region21
  $region20: #{clip_forward.53} parent=0 // pred_region
    _
  $region21: #{clip_forward.53} parent=0 // pred_fallthru
    _
  // Predicated region
  $region22: #{clip_forward.53} parent=0 // pred_check
    _
  $region23: #{clip_forward.53} parent=0 // pred_check_branch
    %64 = sbr.rel (0) target = $region25
  $region24: #{clip_forward.53} parent=0 // pred_region
    _
  $region25: #{clip_forward.53} parent=0 // pred_fallthru
    _

// kernel: clip_forward.55
$region0: #{clip_forward.55}
  #allocation0 [shape = 'u32[]', space=smem, size = 0x4, offset = 0x4, fixed_abs, tag = 'smem constant byte address 0x4 - core index']
  #allocation1 [shape = 'u32[72,128]{1,0:T(1,128)}', space=vmem, size = 0x9000, scoped, tag = 'internal scratch']
  %s0 = inlined_call_operand.vmem [shape: f32[16,32], index: 0, kind: input, shape index: {}]
  %s1 = inlined_call_operand.vmem [shape: f32[1,32], index: 1, kind: input, shape index: {}]
  %s2 = inlined_call_operand.vmem [shape: f32[1,32], index: 2, kind: input, shape index: {}]
  %s3 = inlined_call_operand.vmem [shape: bf16[16,32], index: 3, kind: output, shape index: {}]
  %s4 = sld [smem:[#allocation0]]
  $region22: #{clip_forward.55} parent=0
    _
  %s6 = ssub.s32 1, %s4
  %s7 = scalar_select 0, %s6, %s4
  // Predicated region
  $region2: #{clip_forward.55} parent=0 // pred_check
    _
  $region3: #{clip_forward.55} parent=0 // pred_check_branch
    %9 = sbr.rel (0) target = $region5
  $region4: #{clip_forward.55} parent=0 // pred_region
    _
  $region5: #{clip_forward.55} parent=0 // pred_fallthru
    _
  // Predicated region
  $region6: #{clip_forward.55} parent=0 // pred_check
    _
  $region7: #{clip_forward.55} parent=0 // pred_check_branch
    %11 = sbr.rel (0) target = $region9
  $region8: #{clip_forward.55} parent=0 // pred_region
    _
  $region9: #{clip_forward.55} parent=0 // pred_fallthru
    _
  // Predicated region
  $region10: #{clip_forward.55} parent=0 // pred_check
    _
  $region11: #{clip_forward.55} parent=0 // pred_check_branch
    %13 = sbr.rel (0) target = $region13
  $region12: #{clip_forward.55} parent=0 // pred_region
    _
  $region13: #{clip_forward.55} parent=0 // pred_fallthru
    _
  %v14 = vld [vmem:[%s0] sm:$0xff]
  %v15 = vld [vmem:[%s0 + $0x8] sm:$0xff]
  %vm16 = vcmask 261120
  %v17 = vsel %vm16, %v14, 0.0
  %18 = vadd.xlane.f32.xlu0 %v17
  %v19 = vpop.xlane.xlu0 %18
  %v20 = vsel %vm16, %v15, 0.0
  %21 = vadd.xlane.f32.xlu0 %v20
  %v22 = vpop.xlane.xlu0 %21
  %v23 = vrcp.pop 32.0
  %v24 = vmul.f32 32.0, %v23
  %v25 = vsub.f32 1.0, %v24
  %v26 = vmul.f32 %v23, %v25
  %v27 = vadd.f32 %v23, %v26
  %vm28 = vweird.f32 %v23
  %v29 = vsel %vm28, %v23, %v27
  %v30 = vmul.f32 %v19, %v29
  %v31 = vmul.f32 %v22, %v29
  %v32 = vsub.f32 %v14, %v30
  %v33 = vsub.f32 %v15, %v31
  %v34 = vmul.f32 %v32, %v32
  %v35 = vmul.f32 %v33, %v33
  %v36 = vsel %vm16, %v34, 0.0
  %37 = vadd.xlane.f32.xlu0 %v36
  %v38 = vpop.xlane.xlu0 %37
  %v39 = vsel %vm16, %v35, 0.0
  %40 = vadd.xlane.f32.xlu0 %v39
  %v41 = vpop.xlane.xlu0 %40
  %v42 = vmul.f32 %v38, %v29
  %v43 = vmul.f32 %v41, %v29
  %v44 = vadd.f32 %v42, 1e-05
  %v45 = vadd.f32 %v43, 1e-05
  %v46 = vrsqrt.pop %v44
  %v47 = vmul.f32 %v46, %v44
  %v48 = vmul.f32 %v47, %v46
  %v49 = vmul.f32 0.5, %v48
  %v50 = vsub.f32 1.5, %v49
  %v51 = vmul.f32 %v46, %v50
  %vm52 = vweird.f32 %v44
  %vm53 = vweird.f32 %v46
  %vm54 = vmor %vm52, %vm53
  %v55 = vsel %vm54, %v46, %v51
  %v56 = vrsqrt.pop %v45
  %v57 = vmul.f32 %v56, %v45
  %v58 = vmul.f32 %v57, %v56
  %v59 = vmul.f32 0.5, %v58
  %v60 = vsub.f32 1.5, %v59
  %v61 = vmul.f32 %v56, %v60
  %vm62 = vweird.f32 %v45
  %vm63 = vweird.f32 %v56
  %vm64 = vmor %vm62, %vm63
  %v65 = vsel %vm64, %v56, %v61
  %v66 = vmul.f32 %v32, %v55
  %v67 = vmul.f32 %v33, %v65
  %v68 = vld [vmem:[%s1] sm:$0x1]
  %v70 = vperm.slane %v68, 0
  %v72 = vmul.f32 %v66, %v70
  %v73 = vmul.f32 %v67, %v70
  %v74 = vld [vmem:[%s2] sm:$0x1]
  %v76 = vperm.slane %v74, 0
  %v78 = vadd.f32 %v72, %v76
  %v79 = vadd.f32 %v73, %v76
  %v80 = vpack.c.bf16 %v78, %v78
  %v81 = vpack.c.bf16 %v79, %v79
  %vm82 = vcmask 257024
  %83 = vst.msk [vmem:[%s3] sm:$0xf] %vm82, %v80
  %84 = vst.msk [vmem:[%s3 + $0x4] sm:$0xf] %vm82, %v81
  // Predicated region
  $region14: #{clip_forward.55} parent=0 // pred_check
    _
  $region15: #{clip_forward.55} parent=0 // pred_check_branch
    %86 = sbr.rel (0) target = $region17
  $region16: #{clip_forward.55} parent=0 // pred_region
    _
  $region17: #{clip_forward.55} parent=0 // pred_fallthru
    _
  // Predicated region
  $region18: #{clip_forward.55} parent=0 // pred_check
    _
  $region19: #{clip_forward.55} parent=0 // pred_check_branch
    %88 = sbr.rel (0) target = $region21
  $region20: #{clip_forward.55} parent=0 // pred_region
    _
  $region21: #{clip_forward.55} parent=0 // pred_fallthru
    _

// kernel: clip_forward.58
$region0: #{clip_forward.58}
  #allocation0 [shape = 'u32[]', space=smem, size = 0x4, offset = 0x4, fixed_abs, tag = 'smem constant byte address 0x4 - core index']
  #allocation1 [shape = 'u32[72,128]{1,0:T(1,128)}', space=vmem, size = 0x9000, scoped, tag = 'internal scratch']
  #allocation2 [shape = 'f32[16,32]{1,0:T(8,128)}', space=vmem, size = 0x2000, scoped, tag = 'scratch operand']
  %s0 = inlined_call_operand.vmem [shape: bf16[16,32], index: 0, kind: input, shape index: {}]
  %s1 = inlined_call_operand.vmem [shape: bf16[32,32], index: 1, kind: input, shape index: {}]
  %s2 = inlined_call_operand.vmem [shape: f32[1,32], index: 2, kind: input, shape index: {}]
  %s3 = inlined_call_operand.vmem [shape: f32[16,32], index: 3, kind: input, shape index: {}]
  %s4 = inlined_call_operand.vmem [shape: f32[16,32], index: 4, kind: output, shape index: {}]
  %s5 = sld [smem:[#allocation0]]
  $region34: #{clip_forward.58} parent=0
    _
  %s7 = ssub.s32 1, %s5
  %s8 = scalar_select 0, %s7, %s5
  // Predicated region
  $region2: #{clip_forward.58} parent=0 // pred_check
    _
  $region3: #{clip_forward.58} parent=0 // pred_check_branch
    %10 = sbr.rel (0) target = $region5
  $region4: #{clip_forward.58} parent=0 // pred_region
    _
  $region5: #{clip_forward.58} parent=0 // pred_fallthru
    _
  // Predicated region
  $region6: #{clip_forward.58} parent=0 // pred_check
    _
  $region7: #{clip_forward.58} parent=0 // pred_check_branch
    %12 = sbr.rel (0) target = $region9
  $region8: #{clip_forward.58} parent=0 // pred_region
    _
  $region9: #{clip_forward.58} parent=0 // pred_fallthru
    _
  // Predicated region
  $region10: #{clip_forward.58} parent=0 // pred_check
    _
  $region11: #{clip_forward.58} parent=0 // pred_check_branch
    %14 = sbr.rel (0) target = $region13
  $region12: #{clip_forward.58} parent=0 // pred_region
    _
  $region13: #{clip_forward.58} parent=0 // pred_fallthru
    _
  // Predicated region
  $region14: #{clip_forward.58} parent=0 // pred_check
    _
  $region15: #{clip_forward.58} parent=0 // pred_check_branch
    %16 = sbr.rel (0) target = $region17
  $region16: #{clip_forward.58} parent=0 // pred_region
    _
  $region17: #{clip_forward.58} parent=0 // pred_fallthru
    _
  %p18 = scmp.eq.s32.totalorder 0, 0
  // Predicated region
  $region18: #{clip_forward.58} parent=0 // pred_check
    %p19 = pneg %p18
  $region19: #{clip_forward.58} parent=0 // pred_check_branch
    %21 = sbr.rel (%p19) target = $region21
  $region20: #{clip_forward.58} parent=0 // pred_region
    %vm22 = vcmask 261120
    %23 = vst.msk [vmem:[#allocation2] sm:$0xff] %vm22, 0.0
    %24 = vst.msk [vmem:[#allocation2 + $0x8] sm:$0xff] %vm22, 0.0
  $region21: #{clip_forward.58} parent=0 // pred_fallthru
    _
  %v25 = vld [vmem:[#allocation2] sm:$0xff]
  %v26 = vld [vmem:[#allocation2 + $0x8] sm:$0xff]
  %v27 = vld [vmem:[%s0] sm:$0xf]
  %v28 = vld [vmem:[%s0 + $0x4] sm:$0xf]
  %v29 = vld [vmem:[%s1] sm:$0xf]
  %v30 = vld [vmem:[%s1 + $0x4] sm:$0xf]
  %v31 = vld [vmem:[%s1 + $0x8] sm:$0xf]
  %v32 = vld [vmem:[%s1 + $0xc] sm:$0xf]
  %v35 = vunpack.c.l.b16 %v27
  %v36 = vunpack.c.l.b16 %v28
  %v37 = vpack.c.b16 %v36, %v35
  %v42 = vunpack.c.l.b16 %v29
  %v43 = vunpack.c.l.b16 %v30
  %v44 = vunpack.c.l.b16 %v31
  %v45 = vunpack.c.l.b16 %v32
  %v46 = vpack.c.b16 %v43, %v42
  %v47 = vpack.c.b16 %v45, %v44
  %vm50 = vcmask 261120
  %v52 = vsel %vm50, %v37, 0
  %54 = vmatpush.bf16.msra.mxu0 0
  %55 = vmatpush.bf16.msra.mxu0 0
  %56 = vmatpush.bf16.msra.mxu0 0
  %57 = vmatpush.bf16.msra.mxu0 0
  %58 = vmatpush.bf16.msra.mxu0 0
  %59 = vmatpush.bf16.msra.mxu0 0
  %60 = vmatpush.bf16.msra.mxu0 %v47
  %61 = vmatpush.bf16.msra.mxu0 %v46
  %62 = vmatmul.bf16.gmra.mxu0 %v52
  %v63 = vpop.f32.mrf.mxu0
  %v64 = vadd.f32 0.0, %v63
  %v65 = vpop.f32.mrf.mxu0
  %v66 = vadd.f32 0.0, %v65
  %67 = vdwg.mxu0
  %v68 = vadd.f32 %v25, %v64
  %v69 = vadd.f32 %v26, %v66
  %70 = vst.msk [vmem:[#allocation2] sm:$0xff] %vm50, %v68
  %71 = vst.msk [vmem:[#allocation2 + $0x8] sm:$0xff] %vm50, %v69
  // Predicated region
  $region22: #{clip_forward.58} parent=0 // pred_check
    %p72 = pneg %p18
  $region23: #{clip_forward.58} parent=0 // pred_check_branch
    %74 = sbr.rel (%p72) target = $region25
  $region24: #{clip_forward.58} parent=0 // pred_region
    %v75 = vld [vmem:[#allocation2] sm:$0xff]
    %v76 = vld [vmem:[#allocation2 + $0x8] sm:$0xff]
    %v77 = vld [vmem:[%s2] sm:$0x1]
    %v79 = vperm.slane %v77, 0
    %v81 = vadd.f32 %v75, %v79
    %v82 = vadd.f32 %v76, %v79
    %v83 = vld [vmem:[%s3] sm:$0xff]
    %v84 = vld [vmem:[%s3 + $0x8] sm:$0xff]
    %v85 = vadd.f32 %v81, %v83
    %v86 = vadd.f32 %v82, %v84
    %87 = vst.msk [vmem:[%s4] sm:$0xff] %vm50, %v85
    %88 = vst.msk [vmem:[%s4 + $0x8] sm:$0xff] %vm50, %v86
  $region25: #{clip_forward.58} parent=0 // pred_fallthru
    _
  // Predicated region
  $region26: #{clip_forward.58} parent=0 // pred_check
    _
  $region27: #{clip_forward.58} parent=0 // pred_check_branch
    %90 = sbr.rel (0) target = $region29
  $region28: #{clip_forward.58} parent=0 // pred_region
    _
  $region29: #{clip_forward.58} parent=0 // pred_fallthru
    _
  // Predicated region
  $region30: #{clip_forward.58} parent=0 // pred_check
    _
  $region31: #{clip_forward.58} parent=0 // pred_check_branch
    %92 = sbr.rel (0) target = $region33
  $region32: #{clip_forward.58} parent=0 // pred_region
    _
  $region33: #{clip_forward.58} parent=0 // pred_fallthru
    _

// kernel: clip_forward.57
$region0: #{clip_forward.57}
  #allocation0 [shape = 'u32[]', space=smem, size = 0x4, offset = 0x4, fixed_abs, tag = 'smem constant byte address 0x4 - core index']
  #allocation1 [shape = 'u32[72,128]{1,0:T(1,128)}', space=vmem, size = 0x9000, scoped, tag = 'internal scratch']
  %s0 = inlined_call_operand.vmem [shape: bf16[2,8,96], index: 0, kind: input, shape index: {}]
  %s1 = inlined_call_operand.vmem [shape: bf16[2,8,32], index: 1, kind: output, shape index: {}]
  %s2 = sld [smem:[#allocation0]]
  $region37: #{clip_forward.57} parent=0
    _
  %s4 = ssub.s32 1, %s2
  %s5 = scalar_select 0, %s4, %s2
  loop: start=0, step=1, limit=4
  $region2: #{clip_forward.57} parent=0 // loop_pre_header
    _
  $region3: #{clip_forward.57} parent=0 // loop_header
    %s7 = sphi 0, %s11
    %p8 = scmp.ge.s32.totalorder %s7, 4
    %s17 = sphi 0, %s19
    %s20 = sphi 0, %s17
    %s21 = sphi 0, %s20
    %s37 = sphi 0, %s21
    %s43 = sphi 0, %s45
    %s46 = sphi 0, %s43
    %s47 = sphi 0, %s46
    %s63 = sphi 0, %s47
  $region4: #{clip_forward.57} parent=0 // loop_header_branch
    %10 = sbr.rel (%p8) target = $region8
  $region5: #{clip_forward.57} parent=0 // loop_body
    %s12 = ssub.s32 %s7, 1
    %s13 = ssub.s32 %s7, 2
    %s14 = sadd.s32 %s7, 1
    %s15 = ssub.s32 %s7, %s14
    %p16 = scmp.eq.s32.totalorder %s15, 0
    %s18 = sadd.s32 %s17, 1
    %s19 = scalar_select %p16, %s17, %s18
    %p22 = pneg %p16
    %p23 = scmp.eq.s32.totalorder %s7, 1
    %p24 = por %p22, %p23
    %p25 = scmp.ne.s32.totalorder %s17, %s20
    %p26 = scmp.eq.s32.totalorder %s7, 0
    %p27 = por %p25, %p26
    %p28 = scmp.ne.s32.totalorder %s17, %s20
    %p29 = scmp.eq.s32.totalorder %s12, 1
    %p30 = por %p28, %p29
    %p31 = scmp.ne.s32.totalorder %s20, %s21
    %p32 = scmp.eq.s32.totalorder %s12, 0
    %p33 = por %p31, %p32
    %p34 = scmp.ne.s32.totalorder %s20, %s21
    %p35 = scmp.eq.s32.totalorder %s13, 1
    %p36 = por %p34, %p35
    %p38 = scmp.ne.s32.totalorder %s21, %s37
    %p39 = scmp.eq.s32.totalorder %s13, 0
    %p40 = por %p38, %p39
    %s41 = ssub.s32 %s7, %s14
    %p42 = scmp.eq.s32.totalorder %s41, 0
    %s44 = sadd.s32 %s43, 1
    %s45 = scalar_select %p42, %s43, %s44
    %p48 = pneg %p42
    %p49 = scmp.eq.s32.totalorder %s7, 1
    %p50 = por %p48, %p49
    %p51 = scmp.ne.s32.totalorder %s43, %s46
    %p52 = scmp.eq.s32.totalorder %s7, 0
    %p53 = por %p51, %p52
    %p54 = scmp.ne.s32.totalorder %s43, %s46
    %p55 = scmp.eq.s32.totalorder %s12, 1
    %p56 = por %p54, %p55
    %p57 = scmp.ne.s32.totalorder %s46, %s47
    %p58 = scmp.eq.s32.totalorder %s12, 0
    %p59 = por %p57, %p58
    %p60 = scmp.ne.s32.totalorder %s46, %s47
    %p61 = scmp.eq.s32.totalorder %s13, 1
    %p62 = por %p60, %p61
    %p64 = scmp.ne.s32.totalorder %s47, %s63
    %p65 = scmp.eq.s32.totalorder %s13, 0
    %p66 = por %p64, %p65
    %p67 = scmp.le.s32.totalorder 1, %s7
    %p68 = scmp.lt.s32.totalorder %s7, 3
    %p69 = pnand %p67, %p68
    %p70 = pneg %p69
    // Predicated region
    $region9: #{clip_forward.57} parent=5 // pred_check
      _
    $region10: #{clip_forward.57} parent=5 // pred_check_branch
      %72 = sbr.rel (%p69) target = $region12
    $region11: #{clip_forward.57} parent=5 // pred_region
      %s73 = ssub.s32 %s7, 1
    $region12: #{clip_forward.57} parent=5 // pred_fallthru
      _
    %p74 = scmp.lt.s32.totalorder %s7, 2
    // Predicated region
    $region13: #{clip_forward.57} parent=5 // pred_check
      %p75 = pneg %p74
    $region14: #{clip_forward.57} parent=5 // pred_check_branch
      %77 = sbr.rel (%p75) target = $region16
    $region15: #{clip_forward.57} parent=5 // pred_region
      // Predicated region
      $region17: #{clip_forward.57} parent=15 // pred_check
        %p78 = pneg %p27
      $region18: #{clip_forward.57} parent=15 // pred_check_branch
        %80 = sbr.rel (%p78) target = $region20
      $region19: #{clip_forward.57} parent=15 // pred_region
        %p81 = scmp.lt.s32.totalorder %s7, 1
        %s82 = scalar_select %p81, %s7, 1
        %s83 = smul.addr %s82, 4
        %s84 = scalar_lea.vmem %s0, %s83
      $region20: #{clip_forward.57} parent=15 // pred_fallthru
        _
    $region16: #{clip_forward.57} parent=5 // pred_fallthru
      _
    %p85 = scmp.le.s32.totalorder 1, %s7
    %p86 = scmp.lt.s32.totalorder %s7, 3
    %p87 = pnand %p85, %p86
    %p88 = pneg %p87
    // Predicated region
    $region21: #{clip_forward.57} parent=5 // pred_check
      _
    $region22: #{clip_forward.57} parent=5 // pred_check_branch
      %90 = sbr.rel (%p87) target = $region24
    $region23: #{clip_forward.57} parent=5 // pred_region
      %s91 = ssub.s32 %s7, 1
      %p92 = scmp.lt.s32.totalorder %s12, 1
      %s93 = scalar_select %p92, %s12, 1
      %s94 = smul.addr %s93, 4
      %s95 = scalar_lea.vmem %s0, %s94
      %p96 = pneg %p33
      %p97 = pneg %p30
      %p98 = pneg %p59
      %p99 = pneg %p56
      %p100 = scmp.lt.s32.totalorder %s12, 1
      %s101 = scalar_select %p100, %s12, 1
      %s102 = smul.addr %s101, 4
      %s103 = scalar_lea.vmem %s1, %s102
      %p104 = scmp.lt.s32.totalorder %s12, 1
      %s105 = scalar_select %p104, %s12, 1
      %s106 = smul.addr %s105, 4
      %s107 = scalar_lea.vmem %s0, %s106
      %p108 = scmp.lt.s32.totalorder %s12, 1
      %s109 = scalar_select %p108, %s12, 1
      %s110 = smul.addr %s109, 4
      %s111 = scalar_lea.vmem %s1, %s110
      %v113 = vlaneseq
      %v114 = vshrl.u32 %v113, 7
      %v115 = vlaneseq
      %v116 = vand.u32 %v115, 127
      %vm117 = vcmp.ge.s32.totalorder %v114, %v116
      %v118 = vld [vmem:[%s107] sm:$0xf]
      %v120 = vunpack.c.l.b16 %v118
      %v121 = vpack.c.b16 %v120, %v120
      %122 = vrot.lane.b32.xlu0 %v121, 96
      %v123 = vpop.permute.xlu0 %122
      %vm124 = vcmask 130048
      %v126 = vsel %vm124, %v118, 0
      %v129 = vsel %vm124, %v123, 0
      %131 = vmatpush.bf16.xpose.msra.mxu0 0
      %132 = vmatpush.bf16.xpose.msra.mxu0 0
      %133 = vmatpush.bf16.xpose.msra.mxu0 0
      %134 = vmatpush.bf16.xpose.msra.mxu0 0
      %135 = vmatpush.bf16.xpose.msra.mxu0 0
      %136 = vmatpush.bf16.xpose.msra.mxu0 0
      %137 = vmatpush.bf16.xpose.msra.mxu0 0
      %138 = vmatpush.bf16.xpose.msra.mxu0 %v129
      %139 = vmatmul.bf16.gmra.mxu0 %v126
      %v140 = vpop.f32.mrf.mxu0
      %v141 = vadd.f32 0.0, %v140
      %v142 = vpop.f32.mrf.mxu0
      %143 = vdwg.mxu0
      %v144 = vmul.f32 %v141, 0.25
      %v145 = vsel %vm117, %v144, -1e+30
      %vm146 = vcmask 64512
      %v147 = vsel %vm146, %v145, -inf
      %148 = vmax.xlane.f32.xlu0 %v147
      %v149 = vpop.xlane.xlu0 %148
      %v150 = vsub.f32 %v145, %v149
      %v151 = vmul.f32 %v150, 1.442695
      %v152 = vpow.pop %v151
      %v153 = vsel %vm146, %v152, 0.0
      %154 = vadd.xlane.f32.xlu0 %v153
      %v155 = vpop.xlane.xlu0 %154
      %v156 = vrcp.pop %v155
      %v157 = vmul.f32 %v152, %v156
      %v158 = vpack.c.bf16 %v157, %v157
      %159 = vrot.lane.b32.xlu0 %v121, 64
      %v160 = vpop.permute.xlu0 %159
      %v162 = vsel %vm146, %v158, 0
      %vm164 = vcmask 1043456
      %v166 = vsel %vm164, %v160, 0
      %168 = vmatpush.bf16.msra.mxu0 0
      %169 = vmatpush.bf16.msra.mxu0 0
      %170 = vmatpush.bf16.msra.mxu0 0
      %171 = vmatpush.bf16.msra.mxu0 0
      %172 = vmatpush.bf16.msra.mxu0 0
      %173 = vmatpush.bf16.msra.mxu0 0
      %174 = vmatpush.bf16.msra.mxu0 0
      %175 = vmatpush.bf16.msra.mxu0 %v166
      %176 = vmatmul.bf16.gmra.mxu0 %v162
      %v177 = vpop.f32.mrf.mxu0
      %v178 = vadd.f32 0.0, %v177
      %v179 = vpop.f32.mrf.mxu0
      %180 = vdwg.mxu0
      %v181 = vpack.c.bf16 %v178, %v178
      %vm182 = vcmask 125952
      %183 = vst.msk [vmem:[%s111] sm:$0xf] %vm182, %v181
      %v184 = vld [vmem:[%s107] sm:$0xf]
      %v186 = vunpack.c.l.b16 %v184
      %v187 = vpack.c.b16 %v186, %v186
      %188 = vrot.lane.b32.xlu0 %v187, 112
      %v189 = vpop.permute.xlu0 %188
      %190 = vrot.lane.b32.xlu0 %v187, 80
      %v191 = vpop.permute.xlu0 %190
      %v193 = vsel %vm124, %v189, 0
      %v196 = vsel %vm124, %v191, 0
      %198 = vmatpush.bf16.xpose.msra.mxu0 0
      %199 = vmatpush.bf16.xpose.msra.mxu0 0
      %200 = vmatpush.bf16.xpose.msra.mxu0 0
      %201 = vmatpush.bf16.xpose.msra.mxu0 0
      %202 = vmatpush.bf16.xpose.msra.mxu0 0
      %203 = vmatpush.bf16.xpose.msra.mxu0 0
      %204 = vmatpush.bf16.xpose.msra.mxu0 0
      %205 = vmatpush.bf16.xpose.msra.mxu0 %v196
      %206 = vmatmul.bf16.gmra.mxu0 %v193
      %v207 = vpop.f32.mrf.mxu0
      %v208 = vadd.f32 0.0, %v207
      %v209 = vpop.f32.mrf.mxu0
      %210 = vdwg.mxu0
      %v211 = vmul.f32 %v208, 0.25
      %v212 = vsel %vm117, %v211, -1e+30
      %v213 = vsel %vm146, %v212, -inf
      %214 = vmax.xlane.f32.xlu0 %v213
      %v215 = vpop.xlane.xlu0 %214
      %v216 = vsub.f32 %v212, %v215
      %v217 = vmul.f32 %v216, 1.442695
      %v218 = vpow.pop %v217
      %v219 = vsel %vm146, %v218, 0.0
      %220 = vadd.xlane.f32.xlu0 %v219
      %v221 = vpop.xlane.xlu0 %220
      %v222 = vrcp.pop %v221
      %v223 = vmul.f32 %v218, %v222
      %v224 = vpack.c.bf16 %v223, %v223
      %225 = vrot.lane.b32.xlu0 %v187, 48
      %v226 = vpop.permute.xlu0 %225
      %v228 = vsel %vm146, %v224, 0
      %v231 = vsel %vm164, %v226, 0
      %233 = vmatpush.bf16.msra.mxu0 0
      %234 = vmatpush.bf16.msra.mxu0 0
      %235 = vmatpush.bf16.msra.mxu0 0
      %236 = vmatpush.bf16.msra.mxu0 0
      %237 = vmatpush.bf16.msra.mxu0 0
      %238 = vmatpush.bf16.msra.mxu0 0
      %239 = vmatpush.bf16.msra.mxu0 0
      %240 = vmatpush.bf16.msra.mxu0 %v231
      %241 = vmatmul.bf16.gmra.mxu0 %v228
      %v242 = vpop.f32.mrf.mxu0
      %v243 = vadd.f32 0.0, %v242
      %v244 = vpop.f32.mrf.mxu0
      %245 = vdwg.mxu0
      %v246 = vpack.c.bf16 %v243, %v243
      %248 = vrot.lane.b32.xlu0 %v246, 16
      %v249 = vpop.permute.xlu0 %248
      %vm251 = vcmask 257152
      %252 = vst.msk [vmem:[%s111] sm:$0xf] %vm251, %v249
      %p253 = scmp.lt.s32.totalorder %s12, 1
      %s254 = scalar_select %p253, %s12, 1
      %s255 = smul.addr %s254, 4
      %s256 = scalar_lea.vmem %s1, %s255
      // Predicated region
      $region25: #{clip_forward.57} parent=23 // pred_check
        %p257 = pneg %p56
      $region26: #{clip_forward.57} parent=23 // pred_check_branch
        %259 = sbr.rel (%p257) target = $region28
      $region27: #{clip_forward.57} parent=23 // pred_region
        _
      $region28: #{clip_forward.57} parent=23 // pred_fallthru
        _
    $region24: #{clip_forward.57} parent=5 // pred_fallthru
      _
    %p260 = scmp.le.s32.totalorder 2, %s7
    // Predicated region
    $region29: #{clip_forward.57} parent=5 // pred_check
      %p261 = pneg %p260
    $region30: #{clip_forward.57} parent=5 // pred_check_branch
      %263 = sbr.rel (%p261) target = $region32
    $region31: #{clip_forward.57} parent=5 // pred_region
      %s264 = ssub.s32 %s7, 2
      // Predicated region
      $region33: #{clip_forward.57} parent=31 // pred_check
        %p265 = pneg %p62
      $region34: #{clip_forward.57} parent=31 // pred_check_branch
        %267 = sbr.rel (%p265) target = $region36
      $region35: #{clip_forward.57} parent=31 // pred_region
        %p268 = scmp.lt.s32.totalorder %s13, 1
        %s269 = scalar_select %p268, %s13, 1
        %s270 = smul.addr %s269, 4
        %s271 = scalar_lea.vmem %s1, %s270
      $region36: #{clip_forward.57} parent=31 // pred_fallthru
        _
    $region32: #{clip_forward.57} parent=5 // pred_fallthru
      _
  $region6: #{clip_forward.57} parent=0 // loop_footer
    %s11 = sadd.s32 1, %s7
  $region7: #{clip_forward.57} parent=0 // loop_footer_branch
    %6 = sbr.rel target = $region3
  $region8: #{clip_forward.57} parent=0 // loop_exit
    _

// kernel: clip_forward.60
$region0: #{clip_forward.60}
  #allocation0 [shape = 'u32[]', space=smem, size = 0x4, offset = 0x4, fixed_abs, tag = 'smem constant byte address 0x4 - core index']
  #allocation1 [shape = 'u32[72,128]{1,0:T(1,128)}', space=vmem, size = 0x9000, scoped, tag = 'internal scratch']
  #allocation2 [shape = 'f32[16,128]{1,0:T(8,128)}', space=vmem, size = 0x2000, scoped, tag = 'scratch operand']
  %s0 = inlined_call_operand.vmem [shape: bf16[16,32], index: 0, kind: input, shape index: {}]
  %s1 = inlined_call_operand.vmem [shape: bf16[32,128], index: 1, kind: input, shape index: {}]
  %s2 = inlined_call_operand.vmem [shape: f32[1,128], index: 2, kind: input, shape index: {}]
  %s3 = inlined_call_operand.vmem [shape: bf16[16,128], index: 3, kind: output, shape index: {}]
  %s4 = sld [smem:[#allocation0]]
  $region30: #{clip_forward.60} parent=0
    _
  %s6 = ssub.s32 1, %s4
  %s7 = scalar_select 0, %s6, %s4
  // Predicated region
  $region2: #{clip_forward.60} parent=0 // pred_check
    _
  $region3: #{clip_forward.60} parent=0 // pred_check_branch
    %9 = sbr.rel (0) target = $region5
  $region4: #{clip_forward.60} parent=0 // pred_region
    _
  $region5: #{clip_forward.60} parent=0 // pred_fallthru
    _
  // Predicated region
  $region6: #{clip_forward.60} parent=0 // pred_check
    _
  $region7: #{clip_forward.60} parent=0 // pred_check_branch
    %11 = sbr.rel (0) target = $region9
  $region8: #{clip_forward.60} parent=0 // pred_region
    _
  $region9: #{clip_forward.60} parent=0 // pred_fallthru
    _
  // Predicated region
  $region10: #{clip_forward.60} parent=0 // pred_check
    _
  $region11: #{clip_forward.60} parent=0 // pred_check_branch
    %13 = sbr.rel (0) target = $region13
  $region12: #{clip_forward.60} parent=0 // pred_region
    _
  $region13: #{clip_forward.60} parent=0 // pred_fallthru
    _
  %p15 = scmp.eq.s32.totalorder 0, 0
  // Predicated region
  $region14: #{clip_forward.60} parent=0 // pred_check
    %p16 = pneg %p15
  $region15: #{clip_forward.60} parent=0 // pred_check_branch
    %18 = sbr.rel (%p16) target = $region17
  $region16: #{clip_forward.60} parent=0 // pred_region
    %19 = vst [vmem:[#allocation2] sm:$0xff] 0.0
    %20 = vst [vmem:[#allocation2 + $0x8] sm:$0xff] 0.0
  $region17: #{clip_forward.60} parent=0 // pred_fallthru
    _
  %v21 = vld [vmem:[#allocation2] sm:$0xff]
  %v22 = vld [vmem:[#allocation2 + $0x8] sm:$0xff]
  %v23 = vld [vmem:[%s0] sm:$0xf]
  %v24 = vld [vmem:[%s0 + $0x4] sm:$0xf]
  %v25 = vld [vmem:[%s1] sm:$0xf]
  %v26 = vld [vmem:[%s1 + $0x4] sm:$0xf]
  %v27 = vld [vmem:[%s1 + $0x8] sm:$0xf]
  %v28 = vld [vmem:[%s1 + $0xc] sm:$0xf]
  %v31 = vunpack.c.l.b16 %v23
  %v32 = vunpack.c.l.b16 %v24
  %v33 = vpack.c.b16 %v32, %v31
  %v38 = vunpack.c.l.b16 %v25
  %v39 = vunpack.c.l.b16 %v26
  %v40 = vunpack.c.l.b16 %v27
  %v41 = vunpack.c.l.b16 %v28
  %v42 = vpack.c.b16 %v39, %v38
  %v43 = vpack.c.b16 %v41, %v40
  %vm46 = vcmask 261120
  %v48 = vsel %vm46, %v33, 0
  %50 = vmatpush.bf16.msra.mxu0 0
  %51 = vmatpush.bf16.msra.mxu0 0
  %52 = vmatpush.bf16.msra.mxu0 0
  %53 = vmatpush.bf16.msra.mxu0 0
  %54 = vmatpush.bf16.msra.mxu0 0
  %55 = vmatpush.bf16.msra.mxu0 0
  %56 = vmatpush.bf16.msra.mxu0 %v43
  %57 = vmatpush.bf16.msra.mxu0 %v42
  %58 = vmatmul.bf16.gmra.mxu0 %v48
  %v59 = vpop.f32.mrf.mxu0
  %v60 = vadd.f32 0.0, %v59
  %v61 = vpop.f32.mrf.mxu0
  %v62 = vadd.f32 0.0, %v61
  %63 = vdwg.mxu0
  %v64 = vadd.f32 %v21, %v60
  %v65 = vadd.f32 %v22, %v62
  %66 = vst [vmem:[#allocation2] sm:$0xff] %v64
  %67 = vst [vmem:[#allocation2 + $0x8] sm:$0xff] %v65
  // Predicated region
  $region18: #{clip_forward.60} parent=0 // pred_check
    %p68 = pneg %p15
  $region19: #{clip_forward.60} parent=0 // pred_check_branch
    %70 = sbr.rel (%p68) target = $region21
  $region20: #{clip_forward.60} parent=0 // pred_region
    %v71 = vld [vmem:[#allocation2] sm:$0xff]
    %v72 = vld [vmem:[#allocation2 + $0x8] sm:$0xff]
    %v73 = vld [vmem:[%s2] sm:$0x1]
    %v75 = vperm.slane %v73, 0
    %v77 = vadd.f32 %v71, %v75
    %v78 = vadd.f32 %v72, %v75
    %v79 = vmul.f32 %v77, 0.5
    %v80 = vmul.f32 %v78, 0.5
    %v81 = vmul.f32 %v77, 0.70710677
    %v82 = vmul.f32 %v78, 0.70710677
    %v83 = vmul.f32 %v81, %v81
    %v84 = vmin.f32 16.0, %v83
    %v85 = vmul.f32 %v84, 2.1237322e-06
    %v86 = vadd.f32 %v85, 0.00028619796
    %v87 = vmul.f32 %v84, %v86
    %v88 = vadd.f32 %v87, 0.0036580483
    %v89 = vmul.f32 %v84, %v88
    %v90 = vadd.f32 %v89, 0.05243302
    %v91 = vmul.f32 %v84, %v90
    %v92 = vadd.f32 %v91, 0.18741608
    %v93 = vmul.f32 %v84, %v92
    %v94 = vadd.f32 %v93, 1.1283791
    %v95 = vmul.f32 %v81, %v94
    %v96 = vmul.f32 %v84, 3.8918573e-05
    %v97 = vadd.f32 %v96, 0.001143296
    %v98 = vmul.f32 %v84, %v97
    %v99 = vadd.f32 %v98, 0.014752088
    %v100 = vmul.f32 %v84, %v99
    %v101 = vadd.f32 %v100, 0.112945676
    %v102 = vmul.f32 %v84, %v101
    %v103 = vadd.f32 %v102, 0.4994258
    %v104 = vmul.f32 %v84, %v103
    %v105 = vadd.f32 %v104, 1.0
    %v106 = vrcp.pop %v105
    %v107 = vmul.f32 %v105, %v106
    %v108 = vsub.f32 1.0, %v107
    %v109 = vmul.f32 %v106, %v108
    %v110 = vadd.f32 %v106, %v109
    %vm111 = vweird.f32 %v105
    %vm112 = vweird.f32 %v106
    %vm113 = vmor %vm111, %vm112
    %v114 = vsel %vm113, %v106, %v110
    %v115 = vand.u32 2147483647, %v105
    %vm116 = vcmp.eq.f32.partialorder %v115, 8.507059e+37
    %v117 = vand.u32 %v105, 2147483648
    %v118 = vor.u32 1.1754944e-38, %v117
    %v119 = vsel %vm116, %v118, %v114
    %v120 = vmul.f32 %v95, %v119
    %v121 = vmin.f32 %v120, 1.0
    %v122 = vmax.f32 %v121, -1.0
    %v123 = vmul.f32 %v82, %v82
    %v124 = vmin.f32 16.0, %v123
    %v125 = vmul.f32 %v124, 2.1237322e-06
    %v126 = vadd.f32 %v125, 0.00028619796
    %v127 = vmul.f32 %v124, %v126
    %v128 = vadd.f32 %v127, 0.0036580483
    %v129 = vmul.f32 %v124, %v128
    %v130 = vadd.f32 %v129, 0.05243302
    %v131 = vmul.f32 %v124, %v130
    %v132 = vadd.f32 %v131, 0.18741608
    %v133 = vmul.f32 %v124, %v132
    %v134 = vadd.f32 %v133, 1.1283791
    %v135 = vmul.f32 %v82, %v134
    %v136 = vmul.f32 %v124, 3.8918573e-05
    %v137 = vadd.f32 %v136, 0.001143296
    %v138 = vmul.f32 %v124, %v137
    %v139 = vadd.f32 %v138, 0.014752088
    %v140 = vmul.f32 %v124, %v139
    %v141 = vadd.f32 %v140, 0.112945676
    %v142 = vmul.f32 %v124, %v141
    %v143 = vadd.f32 %v142, 0.4994258
    %v144 = vmul.f32 %v124, %v143
    %v145 = vadd.f32 %v144, 1.0
    %v146 = vrcp.pop %v145
    %v147 = vmul.f32 %v145, %v146
    %v148 = vsub.f32 1.0, %v147
    %v149 = vmul.f32 %v146, %v148
    %v150 = vadd.f32 %v146, %v149
    %vm151 = vweird.f32 %v145
    %vm152 = vweird.f32 %v146
    %vm153 = vmor %vm151, %vm152
    %v154 = vsel %vm153, %v146, %v150
    %v155 = vand.u32 2147483647, %v145
    %vm156 = vcmp.eq.f32.partialorder %v155, 8.507059e+37
    %v157 = vand.u32 %v145, 2147483648
    %v158 = vor.u32 1.1754944e-38, %v157
    %v159 = vsel %vm156, %v158, %v154
    %v160 = vmul.f32 %v135, %v159
    %v161 = vmin.f32 %v160, 1.0
    %v162 = vmax.f32 %v161, -1.0
    %v163 = vadd.f32 %v122, 1.0
    %v164 = vadd.f32 %v162, 1.0
    %v165 = vmul.f32 %v79, %v163
    %v166 = vmul.f32 %v80, %v164
    %v167 = vpack.c.bf16 %v165, %v165
    %v168 = vpack.c.bf16 %v166, %v166
    %169 = vst [vmem:[%s3] sm:$0xf] %v167
    %170 = vst [vmem:[%s3 + $0x4] sm:$0xf] %v168
  $region21: #{clip_forward.60} parent=0 // pred_fallthru
    _
  // Predicated region
  $region22: #{clip_forward.60} parent=0 // pred_check
    _
  $region23: #{clip_forward.60} parent=0 // pred_check_branch
    %172 = sbr.rel (0) target = $region25
  $region24: #{clip_forward.60} parent=0 // pred_region
    _
  $region25: #{clip_forward.60} parent=0 // pred_fallthru
    _
  // Predicated region
  $region26: #{clip_forward.60} parent=0 // pred_check
    _
  $region27: #{clip_forward.60} parent=0 // pred_check_branch
    %174 = sbr.rel (0) target = $region29
  $region28: #{clip_forward.60} parent=0 // pred_region
    _
  $region29: #{clip_forward.60} parent=0 // pred_fallthru
    _

// kernel: clip_forward.61
$region0: #{clip_forward.61}
  #allocation0 [shape = 'u32[]', space=smem, size = 0x4, offset = 0x4, fixed_abs, tag = 'smem constant byte address 0x4 - core index']
  #allocation1 [shape = 'u32[72,128]{1,0:T(1,128)}', space=vmem, size = 0x9000, scoped, tag = 'internal scratch']
  #allocation2 [shape = 'f32[16,32]{1,0:T(8,128)}', space=vmem, size = 0x2000, scoped, tag = 'scratch operand']
  %s0 = inlined_call_operand.vmem [shape: bf16[16,128], index: 0, kind: input, shape index: {}]
  %s1 = inlined_call_operand.vmem [shape: bf16[128,32], index: 1, kind: input, shape index: {}]
  %s2 = inlined_call_operand.vmem [shape: f32[1,32], index: 2, kind: input, shape index: {}]
  %s3 = inlined_call_operand.vmem [shape: f32[16,32], index: 3, kind: input, shape index: {}]
  %s4 = inlined_call_operand.vmem [shape: f32[16,32], index: 4, kind: output, shape index: {}]
  %s5 = sld [smem:[#allocation0]]
  $region34: #{clip_forward.61} parent=0
    _
  %s7 = ssub.s32 1, %s5
  %s8 = scalar_select 0, %s7, %s5
  // Predicated region
  $region2: #{clip_forward.61} parent=0 // pred_check
    _
  $region3: #{clip_forward.61} parent=0 // pred_check_branch
    %10 = sbr.rel (0) target = $region5
  $region4: #{clip_forward.61} parent=0 // pred_region
    _
  $region5: #{clip_forward.61} parent=0 // pred_fallthru
    _
  // Predicated region
  $region6: #{clip_forward.61} parent=0 // pred_check
    _
  $region7: #{clip_forward.61} parent=0 // pred_check_branch
    %12 = sbr.rel (0) target = $region9
  $region8: #{clip_forward.61} parent=0 // pred_region
    _
  $region9: #{clip_forward.61} parent=0 // pred_fallthru
    _
  // Predicated region
  $region10: #{clip_forward.61} parent=0 // pred_check
    _
  $region11: #{clip_forward.61} parent=0 // pred_check_branch
    %14 = sbr.rel (0) target = $region13
  $region12: #{clip_forward.61} parent=0 // pred_region
    _
  $region13: #{clip_forward.61} parent=0 // pred_fallthru
    _
  // Predicated region
  $region14: #{clip_forward.61} parent=0 // pred_check
    _
  $region15: #{clip_forward.61} parent=0 // pred_check_branch
    %16 = sbr.rel (0) target = $region17
  $region16: #{clip_forward.61} parent=0 // pred_region
    _
  $region17: #{clip_forward.61} parent=0 // pred_fallthru
    _
  %p17 = scmp.eq.s32.totalorder 0, 0
  // Predicated region
  $region18: #{clip_forward.61} parent=0 // pred_check
    %p18 = pneg %p17
  $region19: #{clip_forward.61} parent=0 // pred_check_branch
    %20 = sbr.rel (%p18) target = $region21
  $region20: #{clip_forward.61} parent=0 // pred_region
    %vm21 = vcmask 261120
    %22 = vst.msk [vmem:[#allocation2] sm:$0xff] %vm21, 0.0
    %23 = vst.msk [vmem:[#allocation2 + $0x8] sm:$0xff] %vm21, 0.0
  $region21: #{clip_forward.61} parent=0 // pred_fallthru
    _
  %v24 = vld [vmem:[#allocation2] sm:$0xff]
  %v25 = vld [vmem:[#allocation2 + $0x8] sm:$0xff]
  %v26 = vld [vmem:[%s0] sm:$0xf]
  %v27 = vld [vmem:[%s0 + $0x4] sm:$0xf]
  %v28 = vld [vmem:[%s1] sm:$0xf]
  %v29 = vld [vmem:[%s1 + $0x4] sm:$0xf]
  %v30 = vld [vmem:[%s1 + $0x8] sm:$0xf]
  %v31 = vld [vmem:[%s1 + $0xc] sm:$0xf]
  %v32 = vld [vmem:[%s1 + $0x10] sm:$0xf]
  %v33 = vld [vmem:[%s1 + $0x14] sm:$0xf]
  %v34 = vld [vmem:[%s1 + $0x18] sm:$0xf]
  %v35 = vld [vmem:[%s1 + $0x1c] sm:$0xf]
  %v36 = vld [vmem:[%s1 + $0x20] sm:$0xf]
  %v37 = vld [vmem:[%s1 + $0x24] sm:$0xf]
  %v38 = vld [vmem:[%s1 + $0x28] sm:$0xf]
  %v39 = vld [vmem:[%s1 + $0x2c] sm:$0xf]
  %v40 = vld [vmem:[%s1 + $0x30] sm:$0xf]
  %v41 = vld [vmem:[%s1 + $0x34] sm:$0xf]
  %v42 = vld [vmem:[%s1 + $0x38] sm:$0xf]
  %v43 = vld [vmem:[%s1 + $0x3c] sm:$0xf]
  %v46 = vunpack.c.l.b16 %v26
  %v47 = vunpack.c.l.b16 %v27
  %v48 = vpack.c.b16 %v47, %v46
  %v66 = vunpack.c.l.b16 %v28
  %v67 = vunpack.c.l.b16 %v29
  %v68 = vunpack.c.l.b16 %v30
  %v69 = vunpack.c.l.b16 %v31
  %v70 = vunpack.c.l.b16 %v32
  %v71 = vunpack.c.l.b16 %v33
  %v72 = vunpack.c.l.b16 %v34
  %v73 = vunpack.c.l.b16 %v35
  %v74 = vunpack.c.l.b16 %v36
  %v75 = vunpack.c.l.b16 %v37
  %v76 = vunpack.c.l.b16 %v38
  %v77 = vunpack.c.l.b16 %v39
  %v78 = vunpack.c.l.b16 %v40
  %v79 = vunpack.c.l.b16 %v41
  %v80 = vunpack.c.l.b16 %v42
  %v81 = vunpack.c.l.b16 %v43
  %v82 = vpack.c.b16 %v67, %v66
  %v83 = vpack.c.b16 %v69, %v68
  %v84 = vpack.c.b16 %v71, %v70
  %v85 = vpack.c.b16 %v73, %v72
  %v86 = vpack.c.b16 %v75, %v74
  %v87 = vpack.c.b16 %v77, %v76
  %v88 = vpack.c.b16 %v79, %v78
  %v89 = vpack.c.b16 %v81, %v80
  %98 = vmatpush.bf16.msra.mxu0 %v89
  %99 = vmatpush.bf16.msra.mxu0 %v88
  %100 = vmatpush.bf16.msra.mxu0 %v87
  %101 = vmatpush.bf16.msra.mxu0 %v86
  %102 = vmatpush.bf16.msra.mxu0 %v85
  %103 = vmatpush.bf16.msra.mxu0 %v84
  %104 = vmatpush.bf16.msra.mxu0 %v83
  %105 = vmatpush.bf16.msra.mxu0 %v82
  %106 = vmatmul.bf16.gmra.mxu0 %v48
  %v107 = vpop.f32.mrf.mxu0
  %v108 = vadd.f32 0.0, %v107
  %v109 = vpop.f32.mrf.mxu0
  %v110 = vadd.f32 0.0, %v109
  %111 = vdwg.mxu0
  %v112 = vadd.f32 %v24, %v108
  %v113 = vadd.f32 %v25, %v110
  %vm114 = vcmask 261120
  %115 = vst.msk [vmem:[#allocation2] sm:$0xff] %vm114, %v112
  %116 = vst.msk [vmem:[#allocation2 + $0x8] sm:$0xff] %vm114, %v113
  // Predicated region
  $region22: #{clip_forward.61} parent=0 // pred_check
    %p117 = pneg %p17
  $region23: #{clip_forward.61} parent=0 // pred_check_branch
    %119 = sbr.rel (%p117) target = $region25
  $region24: #{clip_forward.61} parent=0 // pred_region
    %v120 = vld [vmem:[#allocation2] sm:$0xff]
    %v121 = vld [vmem:[#allocation2 + $0x8] sm:$0xff]
    %v122 = vld [vmem:[%s2] sm:$0x1]
    %v124 = vperm.slane %v122, 0
    %v126 = vadd.f32 %v120, %v124
    %v127 = vadd.f32 %v121, %v124
    %v128 = vld [vmem:[%s3] sm:$0xff]
    %v129 = vld [vmem:[%s3 + $0x8] sm:$0xff]
    %v130 = vadd.f32 %v126, %v128
    %v131 = vadd.f32 %v127, %v129
    %132 = vst.msk [vmem:[%s4] sm:$0xff] %vm114, %v130
    %133 = vst.msk [vmem:[%s4 + $0x8] sm:$0xff] %vm114, %v131
  $region25: #{clip_forward.61} parent=0 // pred_fallthru
    _
  // Predicated region
  $region26: #{clip_forward.61} parent=0 // pred_check
    _
  $region27: #{clip_forward.61} parent=0 // pred_check_branch
    %135 = sbr.rel (0) target = $region29
  $region28: #{clip_forward.61} parent=0 // pred_region
    _
  $region29: #{clip_forward.61} parent=0 // pred_fallthru
    _
  // Predicated region
  $region30: #{clip_forward.61} parent=0 // pred_check
    _
  $region31: #{clip_forward.61} parent=0 // pred_check_branch
    %137 = sbr.rel (0) target = $region33
  $region32: #{clip_forward.61} parent=0 // pred_region
    _
  $region33: #{clip_forward.61} parent=0 // pred_fallthru
    _

// kernel: clip_forward.69
$region0: #{clip_forward.69}
  #allocation0 [shape = 'u32[]', space=smem, size = 0x4, offset = 0x4, fixed_abs, tag = 'smem constant byte address 0x4 - core index']
  #allocation1 [shape = 'u32[72,128]{1,0:T(1,128)}', space=vmem, size = 0x9000, scoped, tag = 'internal scratch']
  %s0 = inlined_call_operand.vmem [shape: f32[16,32], index: 0, kind: input, shape index: {}]
  %s1 = inlined_call_operand.vmem [shape: f32[1,32], index: 1, kind: input, shape index: {}]
  %s2 = inlined_call_operand.vmem [shape: f32[1,32], index: 2, kind: input, shape index: {}]
  %s3 = inlined_call_operand.vmem [shape: f32[16,32], index: 3, kind: output, shape index: {}]
  %s4 = sld [smem:[#allocation0]]
  $region22: #{clip_forward.69} parent=0
    _
  %s6 = ssub.s32 1, %s4
  %s7 = scalar_select 0, %s6, %s4
  // Predicated region
  $region2: #{clip_forward.69} parent=0 // pred_check
    _
  $region3: #{clip_forward.69} parent=0 // pred_check_branch
    %9 = sbr.rel (0) target = $region5
  $region4: #{clip_forward.69} parent=0 // pred_region
    _
  $region5: #{clip_forward.69} parent=0 // pred_fallthru
    _
  // Predicated region
  $region6: #{clip_forward.69} parent=0 // pred_check
    _
  $region7: #{clip_forward.69} parent=0 // pred_check_branch
    %11 = sbr.rel (0) target = $region9
  $region8: #{clip_forward.69} parent=0 // pred_region
    _
  $region9: #{clip_forward.69} parent=0 // pred_fallthru
    _
  // Predicated region
  $region10: #{clip_forward.69} parent=0 // pred_check
    _
  $region11: #{clip_forward.69} parent=0 // pred_check_branch
    %13 = sbr.rel (0) target = $region13
  $region12: #{clip_forward.69} parent=0 // pred_region
    _
  $region13: #{clip_forward.69} parent=0 // pred_fallthru
    _
  %v14 = vld [vmem:[%s0] sm:$0xff]
  %v15 = vld [vmem:[%s0 + $0x8] sm:$0xff]
  %vm16 = vcmask 261120
  %v17 = vsel %vm16, %v14, 0.0
  %18 = vadd.xlane.f32.xlu0 %v17
  %v19 = vpop.xlane.xlu0 %18
  %v20 = vsel %vm16, %v15, 0.0
  %21 = vadd.xlane.f32.xlu0 %v20
  %v22 = vpop.xlane.xlu0 %21
  %v23 = vrcp.pop 32.0
  %v24 = vmul.f32 32.0, %v23
  %v25 = vsub.f32 1.0, %v24
  %v26 = vmul.f32 %v23, %v25
  %v27 = vadd.f32 %v23, %v26
  %vm28 = vweird.f32 %v23
  %v29 = vsel %vm28, %v23, %v27
  %v30 = vmul.f32 %v19, %v29
  %v31 = vmul.f32 %v22, %v29
  %v32 = vsub.f32 %v14, %v30
  %v33 = vsub.f32 %v15, %v31
  %v34 = vmul.f32 %v32, %v32
  %v35 = vmul.f32 %v33, %v33
  %v36 = vsel %vm16, %v34, 0.0
  %37 = vadd.xlane.f32.xlu0 %v36
  %v38 = vpop.xlane.xlu0 %37
  %v39 = vsel %vm16, %v35, 0.0
  %40 = vadd.xlane.f32.xlu0 %v39
  %v41 = vpop.xlane.xlu0 %40
  %v42 = vmul.f32 %v38, %v29
  %v43 = vmul.f32 %v41, %v29
  %v44 = vadd.f32 %v42, 1e-05
  %v45 = vadd.f32 %v43, 1e-05
  %v46 = vrsqrt.pop %v44
  %v47 = vmul.f32 %v46, %v44
  %v48 = vmul.f32 %v47, %v46
  %v49 = vmul.f32 0.5, %v48
  %v50 = vsub.f32 1.5, %v49
  %v51 = vmul.f32 %v46, %v50
  %vm52 = vweird.f32 %v44
  %vm53 = vweird.f32 %v46
  %vm54 = vmor %vm52, %vm53
  %v55 = vsel %vm54, %v46, %v51
  %v56 = vrsqrt.pop %v45
  %v57 = vmul.f32 %v56, %v45
  %v58 = vmul.f32 %v57, %v56
  %v59 = vmul.f32 0.5, %v58
  %v60 = vsub.f32 1.5, %v59
  %v61 = vmul.f32 %v56, %v60
  %vm62 = vweird.f32 %v45
  %vm63 = vweird.f32 %v56
  %vm64 = vmor %vm62, %vm63
  %v65 = vsel %vm64, %v56, %v61
  %v66 = vmul.f32 %v32, %v55
  %v67 = vmul.f32 %v33, %v65
  %v68 = vld [vmem:[%s1] sm:$0x1]
  %v70 = vperm.slane %v68, 0
  %v72 = vmul.f32 %v66, %v70
  %v73 = vmul.f32 %v67, %v70
  %v74 = vld [vmem:[%s2] sm:$0x1]
  %v76 = vperm.slane %v74, 0
  %v78 = vadd.f32 %v72, %v76
  %v79 = vadd.f32 %v73, %v76
  %80 = vst.msk [vmem:[%s3] sm:$0xff] %vm16, %v78
  %81 = vst.msk [vmem:[%s3 + $0x8] sm:$0xff] %vm16, %v79
  // Predicated region
  $region14: #{clip_forward.69} parent=0 // pred_check
    _
  $region15: #{clip_forward.69} parent=0 // pred_check_branch
    %83 = sbr.rel (0) target = $region17
  $region16: #{clip_forward.69} parent=0 // pred_region
    _
  $region17: #{clip_forward.69} parent=0 // pred_fallthru
    _
  // Predicated region
  $region18: #{clip_forward.69} parent=0 // pred_check
    _
  $region19: #{clip_forward.69} parent=0 // pred_check_branch
    %85 = sbr.rel (0) target = $region21
  $region20: #{clip_forward.69} parent=0 // pred_region
    _
  $region21: #{clip_forward.69} parent=0 // pred_fallthru
    _

</llo_original>
